<compile_context>
chip_gen: v7x
topology: tpu7x:2x2x1
jax: 0.10.0
libtpu: 0.0.40
codegen_flags: <defaults>
</compile_context>

<pallas_src>
import functools

import jax
import jax.numpy as jnp
from jax.experimental import pallas as pl
from jax.experimental.pallas import tpu as pltpu  # noqa: F401  (TPU backend assumed)


# ----------------------------------------------------------------------------
# In-kernel helpers (pure jnp, traced into the kernel bodies)
# ----------------------------------------------------------------------------
def _select_matrix(n, m, stride, offset):
    """(n, m) f32 selection matrix: S[i, j] = 1 iff i == stride*j + offset.

    Right-multiplying by S extracts columns stride*j+offset exactly (0/1 weights),
    so strided subsampling / even-odd extraction become a single MXU matmul.
    """
    rows = jax.lax.broadcasted_iota(jnp.int32, (n, m), 0)
    cols = jax.lax.broadcasted_iota(jnp.int32, (n, m), 1)
    return (rows == stride * cols + offset).astype(jnp.float32)


def _conv1d_same(x, w2d, batch, length, k):
    """Per-batch stride-1 'same' conv via one im2col matmul.

    x:    (cin, batch*length)   lane-dense activation slab
    w2d:  (cout, k*cin)         with w2d[o, kk*cin + c] == W_pytorch[o, c, kk]
    ->    (cout, batch*length)
    """
    cin = x.shape[0]
    pad = k // 2
    if k == 1:
        return jnp.dot(w2d, x, preferred_element_type=jnp.float32)
    lp = length + 2 * pad
    zpad = jnp.zeros((cin, pad), jnp.float32)
    segs = []
    for b in range(batch):
        segs += [zpad, x[:, b * length:(b + 1) * length], zpad]
    xp = jnp.concatenate(segs, axis=1)                          # (cin, batch*lp)
    taps = []
    for kk in range(k):
        cols = [xp[:, b * lp + kk: b * lp + kk + length] for b in range(batch)]
        taps.append(jnp.concatenate(cols, axis=1))              # (cin, batch*length)
    im2col = jnp.concatenate(taps, axis=0)                      # (k*cin, batch*length)
    return jnp.dot(w2d, im2col, preferred_element_type=jnp.float32)


# ----------------------------------------------------------------------------
# Fused Pallas kernels (one pallas_call each, everything stays in VMEM)
# ----------------------------------------------------------------------------
def _stem_kernel(x_ref, w_ref, scale_ref, shift_ref, o_ref, *, batch, length, k):
    """RevCompConv1D (as plain conv on precomputed full weights) + BN + ReLU + MaxPool(2)."""
    x = x_ref[...]                                              # (4, batch*length)
    y = _conv1d_same(x, w_ref[...], batch, length, k)           # (c0, batch*length)
    y = jnp.maximum(y * scale_ref[...] + shift_ref[...], 0.0)
    n = batch * length
    even = jnp.dot(y, _select_matrix(n, n // 2, 2, 0), preferred_element_type=jnp.float32)
    odd = jnp.dot(y, _select_matrix(n, n // 2, 2, 1), preferred_element_type=jnp.float32)
    o_ref[...] = jnp.maximum(even, odd)                         # (c0, batch*length/2)


def _block_kernel(x_ref, w1_ref, s1_ref, h1_ref, w2_ref, s2_ref, h2_ref, *rest,
                  batch, length, k, stride, has_down):
    """Whole BasicBlock: conv1+BN+ReLU (strided), conv2+BN, optional 1x1 downsample+BN,
    residual add + ReLU -- one kernel, one output store."""
    if has_down:
        wd_ref, sd_ref, hd_ref, o_ref = rest
    else:
        (o_ref,) = rest

    x = x_ref[...]                                              # (cin, batch*length)
    l_out = length // stride
    n_in = batch * length
    n_out = batch * l_out

    y = _conv1d_same(x, w1_ref[...], batch, length, k)          # (cmid, n_in)
    if stride > 1:
        sel = _select_matrix(n_in, n_out, stride, 0)
        y = jnp.dot(y, sel, preferred_element_type=jnp.float32)  # strided subsample
    y = jnp.maximum(y * s1_ref[...] + h1_ref[...], 0.0)

    y = _conv1d_same(y, w2_ref[...], batch, l_out, k)           # (cout, n_out)
    y = y * s2_ref[...] + h2_ref[...]

    if has_down:
        xs = jnp.dot(x, sel, preferred_element_type=jnp.float32) if stride > 1 else x
        idn = jnp.dot(wd_ref[...], xs, preferred_element_type=jnp.float32)
        idn = idn * sd_ref[...] + hd_ref[...]
    else:
        idn = x

    o_ref[...] = jnp.maximum(y + idn, 0.0)


def _head_kernel(x_ref, w1_ref, b1_ref, w2_ref, b2_ref, w3_ref, b3_ref, o_ref,
                 *, batch, length):
    """AdaptiveAvgPool1d(1) + flatten + Linear(256)+ReLU + Linear(96)+ReLU + Linear(1).

    Works in (features, batch) layout so all matmuls use the PyTorch (out, in) weights
    directly and intermediates never leave VMEM.  Dropout(p=0.0) is the identity.
    """
    x = x_ref[...]                                              # (c, batch*length)
    inv = 1.0 / float(length)
    feats = [jnp.sum(x[:, b * length:(b + 1) * length], axis=1, keepdims=True) * inv
             for b in range(batch)]
    g = jnp.concatenate(feats, axis=1)                          # (c, batch)
    a = jnp.maximum(jnp.dot(w1_ref[...], g, preferred_element_type=jnp.float32)
                    + b1_ref[...], 0.0)                         # (256, batch)
    a = jnp.maximum(jnp.dot(w2_ref[...], a, preferred_element_type=jnp.float32)
                    + b2_ref[...], 0.0)                         # (96, batch)
    o_ref[...] = jnp.dot(w3_ref[...], a, preferred_element_type=jnp.float32) + b3_ref[...]


# ----------------------------------------------------------------------------
# Parameter initialization (deterministic, synthetic)
# ----------------------------------------------------------------------------
def _bn_fold(key, c, eps=1e-5):
    k1, k2, k3 = jax.random.split(key, 3)
    gamma = 1.0 + 0.1 * jax.random.normal(k1, (c,))
    beta = 0.1 * jax.random.normal(k2, (c,))
    mean = 0.1 * jax.random.normal(k3, (c,))
    var = jnp.ones((c,))
    scale = gamma / jnp.sqrt(var + eps)
    shift = beta - mean * scale
    return (scale.reshape(c, 1).astype(jnp.float32),
            shift.reshape(c, 1).astype(jnp.float32))


def _flatten_conv_w(w):
    """(cout, cin, k) -> (cout, k*cin) matching the tap-major im2col ordering."""
    cout, cin, k = w.shape
    return jnp.transpose(w, (0, 2, 1)).reshape(cout, k * cin).astype(jnp.float32)


def _conv_w(key, cout, cin, k):
    return (jax.random.normal(key, (cout, cin, k)) /
            jnp.sqrt(float(cin * k))).astype(jnp.float32)


def init_params(key, base_width=8, layers=(1, 1, 1, 1), k=3, expansion=1):
    keys = iter(jax.random.split(key, 256))
    params = {"k": k}

    # --- input stem: RevCompConv1D(4, base_width, k) + BN (folded) ---
    w_half = (jax.random.normal(next(keys), (base_width // 2, 4, k)) /
              jnp.sqrt(4.0 * k))
    b_half = 0.05 * jax.random.normal(next(keys), (base_width // 2,))
    w_full = jnp.concatenate([w_half, w_half[:, ::-1, ::-1]], axis=0).astype(jnp.float32)
    bias = jnp.concatenate([b_half, b_half]).astype(jnp.float32)
    scale, shift = _bn_fold(next(keys), base_width)
    shift = shift + scale * bias.reshape(-1, 1)            # fold conv bias into BN shift
    params["stem"] = dict(w=_flatten_conv_w(w_full), scale=scale, shift=shift)

    # --- residual stages (flattened list of BasicBlocks) ---
    widths = [base_width, 2 * base_width, 4 * base_width, 8 * base_width]
    strides = [1, 2, 2, 2]
    c_in = base_width
    blocks = []
    for width, n_rep, stage_stride in zip(widths, layers, strides):
        for r in range(n_rep):
            s = stage_stride if r == 0 else 1
            out_c = width * expansion
            blk = {"stride": s, "w1": _flatten_conv_w(_conv_w(next(keys), width, c_in, k))}
            blk["s1"], blk["h1"] = _bn_fold(next(keys), width)
            blk["w2"] = _flatten_conv_w(_conv_w(next(keys), out_c, width, k))
            blk["s2"], blk["h2"] = _bn_fold(next(keys), out_c)
            if s != 1 or c_in != out_c:
                blk["wd"] = _conv_w(next(keys), out_c, c_in, 1)[:, :, 0]   # (out_c, c_in)
                blk["sd"], blk["hd"] = _bn_fold(next(keys), out_c)
            c_in = out_c
            blocks.append(blk)
    params["blocks"] = blocks

    # --- fc head: Linear(8*bw*exp, 256) -> ReLU -> Linear(256, 96) -> ReLU -> Linear(96, 1)
    # TODO(synk): Dropout(p=0.0) is the identity and is omitted.
    dims = [8 * base_width * expansion, 256, 96, 1]
    fcs = []
    for i in range(3):
        w = (jax.random.normal(next(keys), (dims[i + 1], dims[i])) /      # PyTorch (out, in)
             jnp.sqrt(float(dims[i]))).astype(jnp.float32)
        b = (0.05 * jax.random.normal(next(keys), (dims[i + 1], 1))).astype(jnp.float32)
        fcs.append(dict(w=w, b=b))
    params["fc"] = fcs
    return params


# ----------------------------------------------------------------------------
# Forward pass (6 pallas_calls: stem, 4 blocks, head)
# ----------------------------------------------------------------------------
def generic_resnet_forward(x, params):
    batch, _, length = x.shape
    k = params["k"]

    # one-time layout glue: (B, 4, L) -> lane-dense (4, B*L)
    x2d = jnp.transpose(x, (1, 0, 2)).reshape(4, batch * length)

    # stem: RevComp conv + BN + ReLU + MaxPool(2)
    stem = params["stem"]
    c0 = stem["w"].shape[0]
    y = pl.pallas_call(
        functools.partial(_stem_kernel, batch=batch, length=length, k=k),
        out_shape=jax.ShapeDtypeStruct((c0, batch * (length // 2)), jnp.float32),
    )(x2d, stem["w"], stem["scale"], stem["shift"])
    cur_len = length // 2

    # layer1..layer4 (each BasicBlock is one fused kernel)
    for blk in params["blocks"]:
        s = blk["stride"]
        cout = blk["w2"].shape[0]
        out_len = cur_len // s
        has_down = "wd" in blk
        ins = [y, blk["w1"], blk["s1"], blk["h1"], blk["w2"], blk["s2"], blk["h2"]]
        if has_down:
            ins += [blk["wd"], blk["sd"], blk["hd"]]
        y = pl.pallas_call(
            functools.partial(_block_kernel, batch=batch, length=cur_len, k=k,
                              stride=s, has_down=has_down),
            out_shape=jax.ShapeDtypeStruct((cout, batch * out_len), jnp.float32),
        )(*ins)
        cur_len = out_len

    # fused head: GAP + FC(256)+ReLU + FC(96)+ReLU + FC(1)
    fc = params["fc"]
    out = pl.pallas_call(
        functools.partial(_head_kernel, batch=batch, length=cur_len),
        out_shape=jax.ShapeDtypeStruct((1, batch), jnp.float32),
    )(y, fc[0]["w"], fc[0]["b"], fc[1]["w"], fc[1]["b"], fc[2]["w"], fc[2]["b"])

    return out.reshape(batch, 1)


# ----------------------------------------------------------------------------
if __name__ == "__main__":
    key = jax.random.PRNGKey(0)
    pkey, xkey = jax.random.split(key)

    params = init_params(pkey, base_width=8, layers=(1, 1, 1, 1), k=3, expansion=1)
    x = jax.random.normal(xkey, (2, 4, 64), dtype=jnp.float32)  # (N, 4 one-hot, L)

    @jax.jit
    def run(inp):
        return generic_resnet_forward(inp, params)

    out = run(x)
    jax.block_until_ready(out)
    assert out.shape == (2, 1), out.shape
    assert bool(jnp.all(jnp.isfinite(out)))
    print("KERNEL_OK")
</pallas_src>

<mosaic_0001>
module attributes {stable_mosaic.version = 11 : i64} {
  func.func @_stem_kernel(%arg0: memref<4x128xf32, #tpu.memory_space<vmem>>, %arg1: memref<8x12xf32, #tpu.memory_space<vmem>>, %arg2: memref<8x1xf32, #tpu.memory_space<vmem>>, %arg3: memref<8x1xf32, #tpu.memory_space<vmem>>, %arg4: memref<8x64xf32, #tpu.memory_space<vmem>>) attributes {dimension_semantics = [], scalar_prefetch = 0 : i64, scratch_operands = 0 : i64, tpu.core_type = #tpu.core_type<tc>} {
    %c0 = arith.constant 0 : index
    %c0_0 = arith.constant 0 : index
    %0 = vector.load %arg0[%c0, %c0_0] : memref<4x128xf32, #tpu.memory_space<vmem>>, vector<4x128xf32>
    %c0_1 = arith.constant 0 : index
    %c0_2 = arith.constant 0 : index
    %1 = vector.load %arg1[%c0_1, %c0_2] : memref<8x12xf32, #tpu.memory_space<vmem>>, vector<8x12xf32>
    %cst = arith.constant 0.000000e+00 : f32
    %2 = vector.broadcast %cst : f32 to vector<4x1xf32>
    %3 = vector.extract_strided_slice %0 {offsets = [0, 0], sizes = [4, 64], strides = [1, 1]} : vector<4x128xf32> to vector<4x64xf32>
    %4 = vector.extract_strided_slice %0 {offsets = [0, 64], sizes = [4, 64], strides = [1, 1]} : vector<4x128xf32> to vector<4x64xf32>
    %5 = tpu.concatenate %2, %3, %2, %2, %4, %2 in 1 : vector<4x1xf32>, vector<4x64xf32>, vector<4x1xf32>, vector<4x1xf32>, vector<4x64xf32>, vector<4x1xf32> -> vector<4x132xf32>
    %6 = vector.extract_strided_slice %5 {offsets = [0, 0], sizes = [4, 64], strides = [1, 1]} : vector<4x132xf32> to vector<4x64xf32>
    %7 = vector.extract_strided_slice %5 {offsets = [0, 66], sizes = [4, 64], strides = [1, 1]} : vector<4x132xf32> to vector<4x64xf32>
    %8 = tpu.concatenate %6, %7 in 1 : vector<4x64xf32>, vector<4x64xf32> -> vector<4x128xf32>
    %9 = vector.extract_strided_slice %5 {offsets = [0, 1], sizes = [4, 64], strides = [1, 1]} : vector<4x132xf32> to vector<4x64xf32>
    %10 = vector.extract_strided_slice %5 {offsets = [0, 67], sizes = [4, 64], strides = [1, 1]} : vector<4x132xf32> to vector<4x64xf32>
    %11 = tpu.concatenate %9, %10 in 1 : vector<4x64xf32>, vector<4x64xf32> -> vector<4x128xf32>
    %12 = vector.extract_strided_slice %5 {offsets = [0, 2], sizes = [4, 64], strides = [1, 1]} : vector<4x132xf32> to vector<4x64xf32>
    %13 = vector.extract_strided_slice %5 {offsets = [0, 68], sizes = [4, 64], strides = [1, 1]} : vector<4x132xf32> to vector<4x64xf32>
    %14 = tpu.concatenate %12, %13 in 1 : vector<4x64xf32>, vector<4x64xf32> -> vector<4x128xf32>
    %15 = tpu.concatenate %8, %11, %14 in 0 : vector<4x128xf32>, vector<4x128xf32>, vector<4x128xf32> -> vector<12x128xf32>
    %cst_3 = arith.constant dense<0.000000e+00> : vector<8x128xf32>
    %16 = tpu.matmul %1, %15, %cst_3 {dimension_numbers = #tpu.dot_dimension_numbers<[1], [0], [0], [1], [0, 0, 1, 1], [], []>} : vector<8x12xf32>, vector<12x128xf32>, vector<8x128xf32> -> vector<8x128xf32>
    %c0_4 = arith.constant 0 : index
    %c0_5 = arith.constant 0 : index
    %17 = vector.load %arg2[%c0_4, %c0_5] : memref<8x1xf32, #tpu.memory_space<vmem>>, vector<8x1xf32>
    %18 = vector.broadcast %17 : vector<8x1xf32> to vector<8x128xf32>
    %19 = arith.mulf %16, %18 : vector<8x128xf32>
    %c0_6 = arith.constant 0 : index
    %c0_7 = arith.constant 0 : index
    %20 = vector.load %arg3[%c0_6, %c0_7] : memref<8x1xf32, #tpu.memory_space<vmem>>, vector<8x1xf32>
    %21 = vector.broadcast %20 : vector<8x1xf32> to vector<8x128xf32>
    %22 = arith.addf %19, %21 : vector<8x128xf32>
    %cst_8 = arith.constant 0.000000e+00 : f32
    %23 = vector.broadcast %cst_8 : f32 to vector<8x128xf32>
    %24 = arith.maximumf %22, %23 : vector<8x128xf32>
    %25 = tpu.iota {dimensions = array<i32: 0>} : vector<128x64xi32>
    %26 = tpu.iota {dimensions = array<i32: 1>} : vector<128x64xi32>
    %c2_i32 = arith.constant 2 : i32
    %27 = vector.broadcast %c2_i32 : i32 to vector<128x64xi32>
    %28 = arith.muli %27, %26 : vector<128x64xi32>
    %c0_i32 = arith.constant 0 : i32
    %29 = vector.broadcast %c0_i32 : i32 to vector<128x64xi32>
    %30 = arith.addi %28, %29 : vector<128x64xi32>
    %31 = arith.cmpi eq, %25, %30 : vector<128x64xi32>
    %32 = arith.extui %31 : vector<128x64xi1> to vector<128x64xi32>
    %33 = arith.sitofp %32 : vector<128x64xi32> to vector<128x64xf32>
    %cst_9 = arith.constant dense<0.000000e+00> : vector<8x64xf32>
    %34 = tpu.matmul %24, %33, %cst_9 {dimension_numbers = #tpu.dot_dimension_numbers<[1], [0], [0], [1], [0, 0, 1, 1], [], []>} : vector<8x128xf32>, vector<128x64xf32>, vector<8x64xf32> -> vector<8x64xf32>
    %35 = tpu.iota {dimensions = array<i32: 0>} : vector<128x64xi32>
    %36 = tpu.iota {dimensions = array<i32: 1>} : vector<128x64xi32>
    %c2_i32_10 = arith.constant 2 : i32
    %37 = vector.broadcast %c2_i32_10 : i32 to vector<128x64xi32>
    %38 = arith.muli %37, %36 : vector<128x64xi32>
    %c1_i32 = arith.constant 1 : i32
    %39 = vector.broadcast %c1_i32 : i32 to vector<128x64xi32>
    %40 = arith.addi %38, %39 : vector<128x64xi32>
    %41 = arith.cmpi eq, %35, %40 : vector<128x64xi32>
    %42 = arith.extui %41 : vector<128x64xi1> to vector<128x64xi32>
    %43 = arith.sitofp %42 : vector<128x64xi32> to vector<128x64xf32>
    %cst_11 = arith.constant dense<0.000000e+00> : vector<8x64xf32>
    %44 = tpu.matmul %24, %43, %cst_11 {dimension_numbers = #tpu.dot_dimension_numbers<[1], [0], [0], [1], [0, 0, 1, 1], [], []>} : vector<8x128xf32>, vector<128x64xf32>, vector<8x64xf32> -> vector<8x64xf32>
    %45 = arith.maximumf %34, %44 : vector<8x64xf32>
    %c0_12 = arith.constant 0 : index
    %c0_13 = arith.constant 0 : index
    %46 = vector.load %arg4[%c0_12, %c0_13] : memref<8x64xf32, #tpu.memory_space<vmem>>, vector<8x64xf32>
    tpu.vector_store %arg4[%c0_12, %c0_13], %45 {strides = array<i32>} : memref<8x64xf32, #tpu.memory_space<vmem>>, vector<8x64xf32>,
    return
  }
}

module attributes {stable_mosaic.version = 11 : i64} {
  func.func @_block_kernel(%arg0: memref<8x64xf32, #tpu.memory_space<vmem>>, %arg1: memref<8x24xf32, #tpu.memory_space<vmem>>, %arg2: memref<8x1xf32, #tpu.memory_space<vmem>>, %arg3: memref<8x1xf32, #tpu.memory_space<vmem>>, %arg4: memref<8x24xf32, #tpu.memory_space<vmem>>, %arg5: memref<8x1xf32, #tpu.memory_space<vmem>>, %arg6: memref<8x1xf32, #tpu.memory_space<vmem>>, %arg7: memref<8x64xf32, #tpu.memory_space<vmem>>) attributes {dimension_semantics = [], scalar_prefetch = 0 : i64, scratch_operands = 0 : i64, tpu.core_type = #tpu.core_type<tc>} {
    %c0 = arith.constant 0 : index
    %c0_0 = arith.constant 0 : index
    %0 = vector.load %arg0[%c0, %c0_0] : memref<8x64xf32, #tpu.memory_space<vmem>>, vector<8x64xf32>
    %c0_1 = arith.constant 0 : index
    %c0_2 = arith.constant 0 : index
    %1 = vector.load %arg1[%c0_1, %c0_2] : memref<8x24xf32, #tpu.memory_space<vmem>>, vector<8x24xf32>
    %cst = arith.constant 0.000000e+00 : f32
    %2 = vector.broadcast %cst : f32 to vector<8x1xf32>
    %3 = vector.extract_strided_slice %0 {offsets = [0, 0], sizes = [8, 32], strides = [1, 1]} : vector<8x64xf32> to vector<8x32xf32>
    %4 = vector.extract_strided_slice %0 {offsets = [0, 32], sizes = [8, 32], strides = [1, 1]} : vector<8x64xf32> to vector<8x32xf32>
    %5 = tpu.concatenate %2, %3, %2, %2, %4, %2 in 1 : vector<8x1xf32>, vector<8x32xf32>, vector<8x1xf32>, vector<8x1xf32>, vector<8x32xf32>, vector<8x1xf32> -> vector<8x68xf32>
    %6 = vector.extract_strided_slice %5 {offsets = [0, 0], sizes = [8, 32], strides = [1, 1]} : vector<8x68xf32> to vector<8x32xf32>
    %7 = vector.extract_strided_slice %5 {offsets = [0, 34], sizes = [8, 32], strides = [1, 1]} : vector<8x68xf32> to vector<8x32xf32>
    %8 = tpu.concatenate %6, %7 in 1 : vector<8x32xf32>, vector<8x32xf32> -> vector<8x64xf32>
    %9 = vector.extract_strided_slice %5 {offsets = [0, 1], sizes = [8, 32], strides = [1, 1]} : vector<8x68xf32> to vector<8x32xf32>
    %10 = vector.extract_strided_slice %5 {offsets = [0, 35], sizes = [8, 32], strides = [1, 1]} : vector<8x68xf32> to vector<8x32xf32>
    %11 = tpu.concatenate %9, %10 in 1 : vector<8x32xf32>, vector<8x32xf32> -> vector<8x64xf32>
    %12 = vector.extract_strided_slice %5 {offsets = [0, 2], sizes = [8, 32], strides = [1, 1]} : vector<8x68xf32> to vector<8x32xf32>
    %13 = vector.extract_strided_slice %5 {offsets = [0, 36], sizes = [8, 32], strides = [1, 1]} : vector<8x68xf32> to vector<8x32xf32>
    %14 = tpu.concatenate %12, %13 in 1 : vector<8x32xf32>, vector<8x32xf32> -> vector<8x64xf32>
    %15 = tpu.concatenate %8, %11, %14 in 0 : vector<8x64xf32>, vector<8x64xf32>, vector<8x64xf32> -> vector<24x64xf32>
    %cst_3 = arith.constant dense<0.000000e+00> : vector<8x64xf32>
    %16 = tpu.matmul %1, %15, %cst_3 {dimension_numbers = #tpu.dot_dimension_numbers<[1], [0], [0], [1], [0, 0, 1, 1], [], []>} : vector<8x24xf32>, vector<24x64xf32>, vector<8x64xf32> -> vector<8x64xf32>
    %c0_4 = arith.constant 0 : index
    %c0_5 = arith.constant 0 : index
    %17 = vector.load %arg2[%c0_4, %c0_5] : memref<8x1xf32, #tpu.memory_space<vmem>>, vector<8x1xf32>
    %18 = vector.broadcast %17 : vector<8x1xf32> to vector<8x64xf32>
    %19 = arith.mulf %16, %18 : vector<8x64xf32>
    %c0_6 = arith.constant 0 : index
    %c0_7 = arith.constant 0 : index
    %20 = vector.load %arg3[%c0_6, %c0_7] : memref<8x1xf32, #tpu.memory_space<vmem>>, vector<8x1xf32>
    %21 = vector.broadcast %20 : vector<8x1xf32> to vector<8x64xf32>
    %22 = arith.addf %19, %21 : vector<8x64xf32>
    %cst_8 = arith.constant 0.000000e+00 : f32
    %23 = vector.broadcast %cst_8 : f32 to vector<8x64xf32>
    %24 = arith.maximumf %22, %23 : vector<8x64xf32>
    %c0_9 = arith.constant 0 : index
    %c0_10 = arith.constant 0 : index
    %25 = vector.load %arg4[%c0_9, %c0_10] : memref<8x24xf32, #tpu.memory_space<vmem>>, vector<8x24xf32>
    %cst_11 = arith.constant 0.000000e+00 : f32
    %26 = vector.broadcast %cst_11 : f32 to vector<8x1xf32>
    %27 = vector.extract_strided_slice %24 {offsets = [0, 0], sizes = [8, 32], strides = [1, 1]} : vector<8x64xf32> to vector<8x32xf32>
    %28 = vector.extract_strided_slice %24 {offsets = [0, 32], sizes = [8, 32], strides = [1, 1]} : vector<8x64xf32> to vector<8x32xf32>
    %29 = tpu.concatenate %26, %27, %26, %26, %28, %26 in 1 : vector<8x1xf32>, vector<8x32xf32>, vector<8x1xf32>, vector<8x1xf32>, vector<8x32xf32>, vector<8x1xf32> -> vector<8x68xf32>
    %30 = vector.extract_strided_slice %29 {offsets = [0, 0], sizes = [8, 32], strides = [1, 1]} : vector<8x68xf32> to vector<8x32xf32>
    %31 = vector.extract_strided_slice %29 {offsets = [0, 34], sizes = [8, 32], strides = [1, 1]} : vector<8x68xf32> to vector<8x32xf32>
    %32 = tpu.concatenate %30, %31 in 1 : vector<8x32xf32>, vector<8x32xf32> -> vector<8x64xf32>
    %33 = vector.extract_strided_slice %29 {offsets = [0, 1], sizes = [8, 32], strides = [1, 1]} : vector<8x68xf32> to vector<8x32xf32>
    %34 = vector.extract_strided_slice %29 {offsets = [0, 35], sizes = [8, 32], strides = [1, 1]} : vector<8x68xf32> to vector<8x32xf32>
    %35 = tpu.concatenate %33, %34 in 1 : vector<8x32xf32>, vector<8x32xf32> -> vector<8x64xf32>
    %36 = vector.extract_strided_slice %29 {offsets = [0, 2], sizes = [8, 32], strides = [1, 1]} : vector<8x68xf32> to vector<8x32xf32>
    %37 = vector.extract_strided_slice %29 {offsets = [0, 36], sizes = [8, 32], strides = [1, 1]} : vector<8x68xf32> to vector<8x32xf32>
    %38 = tpu.concatenate %36, %37 in 1 : vector<8x32xf32>, vector<8x32xf32> -> vector<8x64xf32>
    %39 = tpu.concatenate %32, %35, %38 in 0 : vector<8x64xf32>, vector<8x64xf32>, vector<8x64xf32> -> vector<24x64xf32>
    %cst_12 = arith.constant dense<0.000000e+00> : vector<8x64xf32>
    %40 = tpu.matmul %25, %39, %cst_12 {dimension_numbers = #tpu.dot_dimension_numbers<[1], [0], [0], [1], [0, 0, 1, 1], [], []>} : vector<8x24xf32>, vector<24x64xf32>, vector<8x64xf32> -> vector<8x64xf32>
    %c0_13 = arith.constant 0 : index
    %c0_14 = arith.constant 0 : index
    %41 = vector.load %arg5[%c0_13, %c0_14] : memref<8x1xf32, #tpu.memory_space<vmem>>, vector<8x1xf32>
    %42 = vector.broadcast %41 : vector<8x1xf32> to vector<8x64xf32>
    %43 = arith.mulf %40, %42 : vector<8x64xf32>
    %c0_15 = arith.constant 0 : index
    %c0_16 = arith.constant 0 : index
    %44 = vector.load %arg6[%c0_15, %c0_16] : memref<8x1xf32, #tpu.memory_space<vmem>>, vector<8x1xf32>
    %45 = vector.broadcast %44 : vector<8x1xf32> to vector<8x64xf32>
    %46 = arith.addf %43, %45 : vector<8x64xf32>
    %47 = arith.addf %46, %0 : vector<8x64xf32>
    %cst_17 = arith.constant 0.000000e+00 : f32
    %48 = vector.broadcast %cst_17 : f32 to vector<8x64xf32>
    %49 = arith.maximumf %47, %48 : vector<8x64xf32>
    %c0_18 = arith.constant 0 : index
    %c0_19 = arith.constant 0 : index
    %50 = vector.load %arg7[%c0_18, %c0_19] : memref<8x64xf32, #tpu.memory_space<vmem>>, vector<8x64xf32>
    tpu.vector_store %arg7[%c0_18, %c0_19], %49 {strides = array<i32>} : memref<8x64xf32, #tpu.memory_space<vmem>>, vector<8x64xf32>,
    return
  }
}

module attributes {stable_mosaic.version = 11 : i64} {
  func.func @_block_kernel(%arg0: memref<16x32xf32, #tpu.memory_space<vmem>>, %arg1: memref<32x48xf32, #tpu.memory_space<vmem>>, %arg2: memref<32x1xf32, #tpu.memory_space<vmem>>, %arg3: memref<32x1xf32, #tpu.memory_space<vmem>>, %arg4: memref<32x96xf32, #tpu.memory_space<vmem>>, %arg5: memref<32x1xf32, #tpu.memory_space<vmem>>, %arg6: memref<32x1xf32, #tpu.memory_space<vmem>>, %arg7: memref<32x16xf32, #tpu.memory_space<vmem>>, %arg8: memref<32x1xf32, #tpu.memory_space<vmem>>, %arg9: memref<32x1xf32, #tpu.memory_space<vmem>>, %arg10: memref<32x16xf32, #tpu.memory_space<vmem>>) attributes {dimension_semantics = [], scalar_prefetch = 0 : i64, scratch_operands = 0 : i64, tpu.core_type = #tpu.core_type<tc>} {
    %c0 = arith.constant 0 : index
    %c0_0 = arith.constant 0 : index
    %0 = vector.load %arg0[%c0, %c0_0] : memref<16x32xf32, #tpu.memory_space<vmem>>, vector<16x32xf32>
    %c0_1 = arith.constant 0 : index
    %c0_2 = arith.constant 0 : index
    %1 = vector.load %arg1[%c0_1, %c0_2] : memref<32x48xf32, #tpu.memory_space<vmem>>, vector<32x48xf32>
    %cst = arith.constant 0.000000e+00 : f32
    %2 = vector.broadcast %cst : f32 to vector<16x1xf32>
    %3 = vector.extract_strided_slice %0 {offsets = [0, 0], sizes = [16, 16], strides = [1, 1]} : vector<16x32xf32> to vector<16x16xf32>
    %4 = vector.extract_strided_slice %0 {offsets = [0, 16], sizes = [16, 16], strides = [1, 1]} : vector<16x32xf32> to vector<16x16xf32>
    %5 = tpu.concatenate %2, %3, %2, %2, %4, %2 in 1 : vector<16x1xf32>, vector<16x16xf32>, vector<16x1xf32>, vector<16x1xf32>, vector<16x16xf32>, vector<16x1xf32> -> vector<16x36xf32>
    %6 = vector.extract_strided_slice %5 {offsets = [0, 0], sizes = [16, 16], strides = [1, 1]} : vector<16x36xf32> to vector<16x16xf32>
    %7 = vector.extract_strided_slice %5 {offsets = [0, 18], sizes = [16, 16], strides = [1, 1]} : vector<16x36xf32> to vector<16x16xf32>
    %8 = tpu.concatenate %6, %7 in 1 : vector<16x16xf32>, vector<16x16xf32> -> vector<16x32xf32>
    %9 = vector.extract_strided_slice %5 {offsets = [0, 1], sizes = [16, 16], strides = [1, 1]} : vector<16x36xf32> to vector<16x16xf32>
    %10 = vector.extract_strided_slice %5 {offsets = [0, 19], sizes = [16, 16], strides = [1, 1]} : vector<16x36xf32> to vector<16x16xf32>
    %11 = tpu.concatenate %9, %10 in 1 : vector<16x16xf32>, vector<16x16xf32> -> vector<16x32xf32>
    %12 = vector.extract_strided_slice %5 {offsets = [0, 2], sizes = [16, 16], strides = [1, 1]} : vector<16x36xf32> to vector<16x16xf32>
    %13 = vector.extract_strided_slice %5 {offsets = [0, 20], sizes = [16, 16], strides = [1, 1]} : vector<16x36xf32> to vector<16x16xf32>
    %14 = tpu.concatenate %12, %13 in 1 : vector<16x16xf32>, vector<16x16xf32> -> vector<16x32xf32>
    %15 = tpu.concatenate %8, %11, %14 in 0 : vector<16x32xf32>, vector<16x32xf32>, vector<16x32xf32> -> vector<48x32xf32>
    %cst_3 = arith.constant dense<0.000000e+00> : vector<32x32xf32>
    %16 = tpu.matmul %1, %15, %cst_3 {dimension_numbers = #tpu.dot_dimension_numbers<[1], [0], [0], [1], [0, 0, 1, 1], [], []>} : vector<32x48xf32>, vector<48x32xf32>, vector<32x32xf32> -> vector<32x32xf32>
    %17 = tpu.iota {dimensions = array<i32: 0>} : vector<32x16xi32>
    %18 = tpu.iota {dimensions = array<i32: 1>} : vector<32x16xi32>
    %c2_i32 = arith.constant 2 : i32
    %19 = vector.broadcast %c2_i32 : i32 to vector<32x16xi32>
    %20 = arith.muli %19, %18 : vector<32x16xi32>
    %c0_i32 = arith.constant 0 : i32
    %21 = vector.broadcast %c0_i32 : i32 to vector<32x16xi32>
    %22 = arith.addi %20, %21 : vector<32x16xi32>
    %23 = arith.cmpi eq, %17, %22 : vector<32x16xi32>
    %24 = arith.extui %23 : vector<32x16xi1> to vector<32x16xi32>
    %25 = arith.sitofp %24 : vector<32x16xi32> to vector<32x16xf32>
    %cst_4 = arith.constant dense<0.000000e+00> : vector<32x16xf32>
    %26 = tpu.matmul %16, %25, %cst_4 {dimension_numbers = #tpu.dot_dimension_numbers<[1], [0], [0], [1], [0, 0, 1, 1], [], []>} : vector<32x32xf32>, vector<32x16xf32>, vector<32x16xf32> -> vector<32x16xf32>
    %c0_5 = arith.constant 0 : index
    %c0_6 = arith.constant 0 : index
    %27 = vector.load %arg2[%c0_5, %c0_6] : memref<32x1xf32, #tpu.memory_space<vmem>>, vector<32x1xf32>
    %28 = vector.broadcast %27 : vector<32x1xf32> to vector<32x16xf32>
    %29 = arith.mulf %26, %28 : vector<32x16xf32>
    %c0_7 = arith.constant 0 : index
    %c0_8 = arith.constant 0 : index
    %30 = vector.load %arg3[%c0_7, %c0_8] : memref<32x1xf32, #tpu.memory_space<vmem>>, vector<32x1xf32>
    %31 = vector.broadcast %30 : vector<32x1xf32> to vector<32x16xf32>
    %32 = arith.addf %29, %31 : vector<32x16xf32>
    %cst_9 = arith.constant 0.000000e+00 : f32
    %33 = vector.broadcast %cst_9 : f32 to vector<32x16xf32>
    %34 = arith.maximumf %32, %33 : vector<32x16xf32>
    %c0_10 = arith.constant 0 : index
    %c0_11 = arith.constant 0 : index
    %35 = vector.load %arg4[%c0_10, %c0_11] : memref<32x96xf32, #tpu.memory_space<vmem>>, vector<32x96xf32>
    %cst_12 = arith.constant 0.000000e+00 : f32
    %36 = vector.broadcast %cst_12 : f32 to vector<32x1xf32>
    %37 = vector.extract_strided_slice %34 {offsets = [0, 0], sizes = [32, 8], strides = [1, 1]} : vector<32x16xf32> to vector<32x8xf32>
    %38 = vector.extract_strided_slice %34 {offsets = [0, 8], sizes = [32, 8], strides = [1, 1]} : vector<32x16xf32> to vector<32x8xf32>
    %39 = tpu.concatenate %36, %37, %36, %36, %38, %36 in 1 : vector<32x1xf32>, vector<32x8xf32>, vector<32x1xf32>, vector<32x1xf32>, vector<32x8xf32>, vector<32x1xf32> -> vector<32x20xf32>
    %40 = vector.extract_strided_slice %39 {offsets = [0, 0], sizes = [32, 8], strides = [1, 1]} : vector<32x20xf32> to vector<32x8xf32>
    %41 = vector.extract_strided_slice %39 {offsets = [0, 10], sizes = [32, 8], strides = [1, 1]} : vector<32x20xf32> to vector<32x8xf32>
    %42 = tpu.concatenate %40, %41 in 1 : vector<32x8xf32>, vector<32x8xf32> -> vector<32x16xf32>
    %43 = vector.extract_strided_slice %39 {offsets = [0, 1], sizes = [32, 8], strides = [1, 1]} : vector<32x20xf32> to vector<32x8xf32>
    %44 = vector.extract_strided_slice %39 {offsets = [0, 11], sizes = [32, 8], strides = [1, 1]} : vector<32x20xf32> to vector<32x8xf32>
    %45 = tpu.concatenate %43, %44 in 1 : vector<32x8xf32>, vector<32x8xf32> -> vector<32x16xf32>
    %46 = vector.extract_strided_slice %39 {offsets = [0, 2], sizes = [32, 8], strides = [1, 1]} : vector<32x20xf32> to vector<32x8xf32>
    %47 = vector.extract_strided_slice %39 {offsets = [0, 12], sizes = [32, 8], strides = [1, 1]} : vector<32x20xf32> to vector<32x8xf32>
    %48 = tpu.concatenate %46, %47 in 1 : vector<32x8xf32>, vector<32x8xf32> -> vector<32x16xf32>
    %49 = tpu.concatenate %42, %45, %48 in 0 : vector<32x16xf32>, vector<32x16xf32>, vector<32x16xf32> -> vector<96x16xf32>
    %cst_13 = arith.constant dense<0.000000e+00> : vector<32x16xf32>
    %50 = tpu.matmul %35, %49, %cst_13 {dimension_numbers = #tpu.dot_dimension_numbers<[1], [0], [0], [1], [0, 0, 1, 1], [], []>} : vector<32x96xf32>, vector<96x16xf32>, vector<32x16xf32> -> vector<32x16xf32>
    %c0_14 = arith.constant 0 : index
    %c0_15 = arith.constant 0 : index
    %51 = vector.load %arg5[%c0_14, %c0_15] : memref<32x1xf32, #tpu.memory_space<vmem>>, vector<32x1xf32>
    %52 = vector.broadcast %51 : vector<32x1xf32> to vector<32x16xf32>
    %53 = arith.mulf %50, %52 : vector<32x16xf32>
    %c0_16 = arith.constant 0 : index
    %c0_17 = arith.constant 0 : index
    %54 = vector.load %arg6[%c0_16, %c0_17] : memref<32x1xf32, #tpu.memory_space<vmem>>, vector<32x1xf32>
    %55 = vector.broadcast %54 : vector<32x1xf32> to vector<32x16xf32>
    %56 = arith.addf %53, %55 : vector<32x16xf32>
    %cst_18 = arith.constant dense<0.000000e+00> : vector<16x16xf32>
    %57 = tpu.matmul %0, %25, %cst_18 {dimension_numbers = #tpu.dot_dimension_numbers<[1], [0], [0], [1], [0, 0, 1, 1], [], []>} : vector<16x32xf32>, vector<32x16xf32>, vector<16x16xf32> -> vector<16x16xf32>
    %c0_19 = arith.constant 0 : index
    %c0_20 = arith.constant 0 : index
    %58 = vector.load %arg7[%c0_19, %c0_20] : memref<32x16xf32, #tpu.memory_space<vmem>>, vector<32x16xf32>
    %cst_21 = arith.constant dense<0.000000e+00> : vector<32x16xf32>
    %59 = tpu.matmul %58, %57, %cst_21 {dimension_numbers = #tpu.dot_dimension_numbers<[1], [0], [0], [1], [0, 0, 1, 1], [], []>} : vector<32x16xf32>, vector<16x16xf32>, vector<32x16xf32> -> vector<32x16xf32>
    %c0_22 = arith.constant 0 : index
    %c0_23 = arith.constant 0 : index
    %60 = vector.load %arg8[%c0_22, %c0_23] : memref<32x1xf32, #tpu.memory_space<vmem>>, vector<32x1xf32>
    %61 = vector.broadcast %60 : vector<32x1xf32> to vector<32x16xf32>
    %62 = arith.mulf %59, %61 : vector<32x16xf32>
    %c0_24 = arith.constant 0 : index
    %c0_25 = arith.constant 0 : index
    %63 = vector.load %arg9[%c0_24, %c0_25] : memref<32x1xf32, #tpu.memory_space<vmem>>, vector<32x1xf32>
    %64 = vector.broadcast %63 : vector<32x1xf32> to vector<32x16xf32>
    %65 = arith.addf %62, %64 : vector<32x16xf32>
    %66 = arith.addf %56, %65 : vector<32x16xf32>
    %cst_26 = arith.constant 0.000000e+00 : f32
    %67 = vector.broadcast %cst_26 : f32 to vector<32x16xf32>
    %68 = arith.maximumf %66, %67 : vector<32x16xf32>
    %c0_27 = arith.constant 0 : index
    %c0_28 = arith.constant 0 : index
    %69 = vector.load %arg10[%c0_27, %c0_28] : memref<32x16xf32, #tpu.memory_space<vmem>>, vector<32x16xf32>
    tpu.vector_store %arg10[%c0_27, %c0_28], %68 {strides = array<i32>} : memref<32x16xf32, #tpu.memory_space<vmem>>, vector<32x16xf32>,
    return
  }
}

module attributes {stable_mosaic.version = 11 : i64} {
  func.func @_block_kernel(%arg0: memref<8x64xf32, #tpu.memory_space<vmem>>, %arg1: memref<16x24xf32, #tpu.memory_space<vmem>>, %arg2: memref<16x1xf32, #tpu.memory_space<vmem>>, %arg3: memref<16x1xf32, #tpu.memory_space<vmem>>, %arg4: memref<16x48xf32, #tpu.memory_space<vmem>>, %arg5: memref<16x1xf32, #tpu.memory_space<vmem>>, %arg6: memref<16x1xf32, #tpu.memory_space<vmem>>, %arg7: memref<16x8xf32, #tpu.memory_space<vmem>>, %arg8: memref<16x1xf32, #tpu.memory_space<vmem>>, %arg9: memref<16x1xf32, #tpu.memory_space<vmem>>, %arg10: memref<16x32xf32, #tpu.memory_space<vmem>>) attributes {dimension_semantics = [], scalar_prefetch = 0 : i64, scratch_operands = 0 : i64, tpu.core_type = #tpu.core_type<tc>} {
    %c0 = arith.constant 0 : index
    %c0_0 = arith.constant 0 : index
    %0 = vector.load %arg0[%c0, %c0_0] : memref<8x64xf32, #tpu.memory_space<vmem>>, vector<8x64xf32>
    %c0_1 = arith.constant 0 : index
    %c0_2 = arith.constant 0 : index
    %1 = vector.load %arg1[%c0_1, %c0_2] : memref<16x24xf32, #tpu.memory_space<vmem>>, vector<16x24xf32>
    %cst = arith.constant 0.000000e+00 : f32
    %2 = vector.broadcast %cst : f32 to vector<8x1xf32>
    %3 = vector.extract_strided_slice %0 {offsets = [0, 0], sizes = [8, 32], strides = [1, 1]} : vector<8x64xf32> to vector<8x32xf32>
    %4 = vector.extract_strided_slice %0 {offsets = [0, 32], sizes = [8, 32], strides = [1, 1]} : vector<8x64xf32> to vector<8x32xf32>
    %5 = tpu.concatenate %2, %3, %2, %2, %4, %2 in 1 : vector<8x1xf32>, vector<8x32xf32>, vector<8x1xf32>, vector<8x1xf32>, vector<8x32xf32>, vector<8x1xf32> -> vector<8x68xf32>
    %6 = vector.extract_strided_slice %5 {offsets = [0, 0], sizes = [8, 32], strides = [1, 1]} : vector<8x68xf32> to vector<8x32xf32>
    %7 = vector.extract_strided_slice %5 {offsets = [0, 34], sizes = [8, 32], strides = [1, 1]} : vector<8x68xf32> to vector<8x32xf32>
    %8 = tpu.concatenate %6, %7 in 1 : vector<8x32xf32>, vector<8x32xf32> -> vector<8x64xf32>
    %9 = vector.extract_strided_slice %5 {offsets = [0, 1], sizes = [8, 32], strides = [1, 1]} : vector<8x68xf32> to vector<8x32xf32>
    %10 = vector.extract_strided_slice %5 {offsets = [0, 35], sizes = [8, 32], strides = [1, 1]} : vector<8x68xf32> to vector<8x32xf32>
    %11 = tpu.concatenate %9, %10 in 1 : vector<8x32xf32>, vector<8x32xf32> -> vector<8x64xf32>
    %12 = vector.extract_strided_slice %5 {offsets = [0, 2], sizes = [8, 32], strides = [1, 1]} : vector<8x68xf32> to vector<8x32xf32>
    %13 = vector.extract_strided_slice %5 {offsets = [0, 36], sizes = [8, 32], strides = [1, 1]} : vector<8x68xf32> to vector<8x32xf32>
    %14 = tpu.concatenate %12, %13 in 1 : vector<8x32xf32>, vector<8x32xf32> -> vector<8x64xf32>
    %15 = tpu.concatenate %8, %11, %14 in 0 : vector<8x64xf32>, vector<8x64xf32>, vector<8x64xf32> -> vector<24x64xf32>
    %cst_3 = arith.constant dense<0.000000e+00> : vector<16x64xf32>
    %16 = tpu.matmul %1, %15, %cst_3 {dimension_numbers = #tpu.dot_dimension_numbers<[1], [0], [0], [1], [0, 0, 1, 1], [], []>} : vector<16x24xf32>, vector<24x64xf32>, vector<16x64xf32> -> vector<16x64xf32>
    %17 = tpu.iota {dimensions = array<i32: 0>} : vector<64x32xi32>
    %18 = tpu.iota {dimensions = array<i32: 1>} : vector<64x32xi32>
    %c2_i32 = arith.constant 2 : i32
    %19 = vector.broadcast %c2_i32 : i32 to vector<64x32xi32>
    %20 = arith.muli %19, %18 : vector<64x32xi32>
    %c0_i32 = arith.constant 0 : i32
    %21 = vector.broadcast %c0_i32 : i32 to vector<64x32xi32>
    %22 = arith.addi %20, %21 : vector<64x32xi32>
    %23 = arith.cmpi eq, %17, %22 : vector<64x32xi32>
    %24 = arith.extui %23 : vector<64x32xi1> to vector<64x32xi32>
    %25 = arith.sitofp %24 : vector<64x32xi32> to vector<64x32xf32>
    %cst_4 = arith.constant dense<0.000000e+00> : vector<16x32xf32>
    %26 = tpu.matmul %16, %25, %cst_4 {dimension_numbers = #tpu.dot_dimension_numbers<[1], [0], [0], [1], [0, 0, 1, 1], [], []>} : vector<16x64xf32>, vector<64x32xf32>, vector<16x32xf32> -> vector<16x32xf32>
    %c0_5 = arith.constant 0 : index
    %c0_6 = arith.constant 0 : index
    %27 = vector.load %arg2[%c0_5, %c0_6] : memref<16x1xf32, #tpu.memory_space<vmem>>, vector<16x1xf32>
    %28 = vector.broadcast %27 : vector<16x1xf32> to vector<16x32xf32>
    %29 = arith.mulf %26, %28 : vector<16x32xf32>
    %c0_7 = arith.constant 0 : index
    %c0_8 = arith.constant 0 : index
    %30 = vector.load %arg3[%c0_7, %c0_8] : memref<16x1xf32, #tpu.memory_space<vmem>>, vector<16x1xf32>
    %31 = vector.broadcast %30 : vector<16x1xf32> to vector<16x32xf32>
    %32 = arith.addf %29, %31 : vector<16x32xf32>
    %cst_9 = arith.constant 0.000000e+00 : f32
    %33 = vector.broadcast %cst_9 : f32 to vector<16x32xf32>
    %34 = arith.maximumf %32, %33 : vector<16x32xf32>
    %c0_10 = arith.constant 0 : index
    %c0_11 = arith.constant 0 : index
    %35 = vector.load %arg4[%c0_10, %c0_11] : memref<16x48xf32, #tpu.memory_space<vmem>>, vector<16x48xf32>
    %cst_12 = arith.constant 0.000000e+00 : f32
    %36 = vector.broadcast %cst_12 : f32 to vector<16x1xf32>
    %37 = vector.extract_strided_slice %34 {offsets = [0, 0], sizes = [16, 16], strides = [1, 1]} : vector<16x32xf32> to vector<16x16xf32>
    %38 = vector.extract_strided_slice %34 {offsets = [0, 16], sizes = [16, 16], strides = [1, 1]} : vector<16x32xf32> to vector<16x16xf32>
    %39 = tpu.concatenate %36, %37, %36, %36, %38, %36 in 1 : vector<16x1xf32>, vector<16x16xf32>, vector<16x1xf32>, vector<16x1xf32>, vector<16x16xf32>, vector<16x1xf32> -> vector<16x36xf32>
    %40 = vector.extract_strided_slice %39 {offsets = [0, 0], sizes = [16, 16], strides = [1, 1]} : vector<16x36xf32> to vector<16x16xf32>
    %41 = vector.extract_strided_slice %39 {offsets = [0, 18], sizes = [16, 16], strides = [1, 1]} : vector<16x36xf32> to vector<16x16xf32>
    %42 = tpu.concatenate %40, %41 in 1 : vector<16x16xf32>, vector<16x16xf32> -> vector<16x32xf32>
    %43 = vector.extract_strided_slice %39 {offsets = [0, 1], sizes = [16, 16], strides = [1, 1]} : vector<16x36xf32> to vector<16x16xf32>
    %44 = vector.extract_strided_slice %39 {offsets = [0, 19], sizes = [16, 16], strides = [1, 1]} : vector<16x36xf32> to vector<16x16xf32>
    %45 = tpu.concatenate %43, %44 in 1 : vector<16x16xf32>, vector<16x16xf32> -> vector<16x32xf32>
    %46 = vector.extract_strided_slice %39 {offsets = [0, 2], sizes = [16, 16], strides = [1, 1]} : vector<16x36xf32> to vector<16x16xf32>
    %47 = vector.extract_strided_slice %39 {offsets = [0, 20], sizes = [16, 16], strides = [1, 1]} : vector<16x36xf32> to vector<16x16xf32>
    %48 = tpu.concatenate %46, %47 in 1 : vector<16x16xf32>, vector<16x16xf32> -> vector<16x32xf32>
    %49 = tpu.concatenate %42, %45, %48 in 0 : vector<16x32xf32>, vector<16x32xf32>, vector<16x32xf32> -> vector<48x32xf32>
    %cst_13 = arith.constant dense<0.000000e+00> : vector<16x32xf32>
    %50 = tpu.matmul %35, %49, %cst_13 {dimension_numbers = #tpu.dot_dimension_numbers<[1], [0], [0], [1], [0, 0, 1, 1], [], []>} : vector<16x48xf32>, vector<48x32xf32>, vector<16x32xf32> -> vector<16x32xf32>
    %c0_14 = arith.constant 0 : index
    %c0_15 = arith.constant 0 : index
    %51 = vector.load %arg5[%c0_14, %c0_15] : memref<16x1xf32, #tpu.memory_space<vmem>>, vector<16x1xf32>
    %52 = vector.broadcast %51 : vector<16x1xf32> to vector<16x32xf32>
    %53 = arith.mulf %50, %52 : vector<16x32xf32>
    %c0_16 = arith.constant 0 : index
    %c0_17 = arith.constant 0 : index
    %54 = vector.load %arg6[%c0_16, %c0_17] : memref<16x1xf32, #tpu.memory_space<vmem>>, vector<16x1xf32>
    %55 = vector.broadcast %54 : vector<16x1xf32> to vector<16x32xf32>
    %56 = arith.addf %53, %55 : vector<16x32xf32>
    %cst_18 = arith.constant dense<0.000000e+00> : vector<8x32xf32>
    %57 = tpu.matmul %0, %25, %cst_18 {dimension_numbers = #tpu.dot_dimension_numbers<[1], [0], [0], [1], [0, 0, 1, 1], [], []>} : vector<8x64xf32>, vector<64x32xf32>, vector<8x32xf32> -> vector<8x32xf32>
    %c0_19 = arith.constant 0 : index
    %c0_20 = arith.constant 0 : index
    %58 = vector.load %arg7[%c0_19, %c0_20] : memref<16x8xf32, #tpu.memory_space<vmem>>, vector<16x8xf32>
    %cst_21 = arith.constant dense<0.000000e+00> : vector<16x32xf32>
    %59 = tpu.matmul %58, %57, %cst_21 {dimension_numbers = #tpu.dot_dimension_numbers<[1], [0], [0], [1], [0, 0, 1, 1], [], []>} : vector<16x8xf32>, vector<8x32xf32>, vector<16x32xf32> -> vector<16x32xf32>
    %c0_22 = arith.constant 0 : index
    %c0_23 = arith.constant 0 : index
    %60 = vector.load %arg8[%c0_22, %c0_23] : memref<16x1xf32, #tpu.memory_space<vmem>>, vector<16x1xf32>
    %61 = vector.broadcast %60 : vector<16x1xf32> to vector<16x32xf32>
    %62 = arith.mulf %59, %61 : vector<16x32xf32>
    %c0_24 = arith.constant 0 : index
    %c0_25 = arith.constant 0 : index
    %63 = vector.load %arg9[%c0_24, %c0_25] : memref<16x1xf32, #tpu.memory_space<vmem>>, vector<16x1xf32>
    %64 = vector.broadcast %63 : vector<16x1xf32> to vector<16x32xf32>
    %65 = arith.addf %62, %64 : vector<16x32xf32>
    %66 = arith.addf %56, %65 : vector<16x32xf32>
    %cst_26 = arith.constant 0.000000e+00 : f32
    %67 = vector.broadcast %cst_26 : f32 to vector<16x32xf32>
    %68 = arith.maximumf %66, %67 : vector<16x32xf32>
    %c0_27 = arith.constant 0 : index
    %c0_28 = arith.constant 0 : index
    %69 = vector.load %arg10[%c0_27, %c0_28] : memref<16x32xf32, #tpu.memory_space<vmem>>, vector<16x32xf32>
    tpu.vector_store %arg10[%c0_27, %c0_28], %68 {strides = array<i32>} : memref<16x32xf32, #tpu.memory_space<vmem>>, vector<16x32xf32>,
    return
  }
}

module attributes {stable_mosaic.version = 11 : i64} {
  func.func @_block_kernel(%arg0: memref<32x16xf32, #tpu.memory_space<vmem>>, %arg1: memref<64x96xf32, #tpu.memory_space<vmem>>, %arg2: memref<64x1xf32, #tpu.memory_space<vmem>>, %arg3: memref<64x1xf32, #tpu.memory_space<vmem>>, %arg4: memref<64x192xf32, #tpu.memory_space<vmem>>, %arg5: memref<64x1xf32, #tpu.memory_space<vmem>>, %arg6: memref<64x1xf32, #tpu.memory_space<vmem>>, %arg7: memref<64x32xf32, #tpu.memory_space<vmem>>, %arg8: memref<64x1xf32, #tpu.memory_space<vmem>>, %arg9: memref<64x1xf32, #tpu.memory_space<vmem>>, %arg10: memref<64x8xf32, #tpu.memory_space<vmem>>) attributes {dimension_semantics = [], scalar_prefetch = 0 : i64, scratch_operands = 0 : i64, tpu.core_type = #tpu.core_type<tc>} {
    %c0 = arith.constant 0 : index
    %c0_0 = arith.constant 0 : index
    %0 = vector.load %arg0[%c0, %c0_0] : memref<32x16xf32, #tpu.memory_space<vmem>>, vector<32x16xf32>
    %c0_1 = arith.constant 0 : index
    %c0_2 = arith.constant 0 : index
    %1 = vector.load %arg1[%c0_1, %c0_2] : memref<64x96xf32, #tpu.memory_space<vmem>>, vector<64x96xf32>
    %cst = arith.constant 0.000000e+00 : f32
    %2 = vector.broadcast %cst : f32 to vector<32x1xf32>
    %3 = vector.extract_strided_slice %0 {offsets = [0, 0], sizes = [32, 8], strides = [1, 1]} : vector<32x16xf32> to vector<32x8xf32>
    %4 = vector.extract_strided_slice %0 {offsets = [0, 8], sizes = [32, 8], strides = [1, 1]} : vector<32x16xf32> to vector<32x8xf32>
    %5 = tpu.concatenate %2, %3, %2, %2, %4, %2 in 1 : vector<32x1xf32>, vector<32x8xf32>, vector<32x1xf32>, vector<32x1xf32>, vector<32x8xf32>, vector<32x1xf32> -> vector<32x20xf32>
    %6 = vector.extract_strided_slice %5 {offsets = [0, 0], sizes = [32, 8], strides = [1, 1]} : vector<32x20xf32> to vector<32x8xf32>
    %7 = vector.extract_strided_slice %5 {offsets = [0, 10], sizes = [32, 8], strides = [1, 1]} : vector<32x20xf32> to vector<32x8xf32>
    %8 = tpu.concatenate %6, %7 in 1 : vector<32x8xf32>, vector<32x8xf32> -> vector<32x16xf32>
    %9 = vector.extract_strided_slice %5 {offsets = [0, 1], sizes = [32, 8], strides = [1, 1]} : vector<32x20xf32> to vector<32x8xf32>
    %10 = vector.extract_strided_slice %5 {offsets = [0, 11], sizes = [32, 8], strides = [1, 1]} : vector<32x20xf32> to vector<32x8xf32>
    %11 = tpu.concatenate %9, %10 in 1 : vector<32x8xf32>, vector<32x8xf32> -> vector<32x16xf32>
    %12 = vector.extract_strided_slice %5 {offsets = [0, 2], sizes = [32, 8], strides = [1, 1]} : vector<32x20xf32> to vector<32x8xf32>
    %13 = vector.extract_strided_slice %5 {offsets = [0, 12], sizes = [32, 8], strides = [1, 1]} : vector<32x20xf32> to vector<32x8xf32>
    %14 = tpu.concatenate %12, %13 in 1 : vector<32x8xf32>, vector<32x8xf32> -> vector<32x16xf32>
    %15 = tpu.concatenate %8, %11, %14 in 0 : vector<32x16xf32>, vector<32x16xf32>, vector<32x16xf32> -> vector<96x16xf32>
    %cst_3 = arith.constant dense<0.000000e+00> : vector<64x16xf32>
    %16 = tpu.matmul %1, %15, %cst_3 {dimension_numbers = #tpu.dot_dimension_numbers<[1], [0], [0], [1], [0, 0, 1, 1], [], []>} : vector<64x96xf32>, vector<96x16xf32>, vector<64x16xf32> -> vector<64x16xf32>
    %17 = tpu.iota {dimensions = array<i32: 0>} : vector<16x8xi32>
    %18 = tpu.iota {dimensions = array<i32: 1>} : vector<16x8xi32>
    %c2_i32 = arith.constant 2 : i32
    %19 = vector.broadcast %c2_i32 : i32 to vector<16x8xi32>
    %20 = arith.muli %19, %18 : vector<16x8xi32>
    %c0_i32 = arith.constant 0 : i32
    %21 = vector.broadcast %c0_i32 : i32 to vector<16x8xi32>
    %22 = arith.addi %20, %21 : vector<16x8xi32>
    %23 = arith.cmpi eq, %17, %22 : vector<16x8xi32>
    %24 = arith.extui %23 : vector<16x8xi1> to vector<16x8xi32>
    %25 = arith.sitofp %24 : vector<16x8xi32> to vector<16x8xf32>
    %cst_4 = arith.constant dense<0.000000e+00> : vector<64x8xf32>
    %26 = tpu.matmul %16, %25, %cst_4 {dimension_numbers = #tpu.dot_dimension_numbers<[1], [0], [0], [1], [0, 0, 1, 1], [], []>} : vector<64x16xf32>, vector<16x8xf32>, vector<64x8xf32> -> vector<64x8xf32>
    %c0_5 = arith.constant 0 : index
    %c0_6 = arith.constant 0 : index
    %27 = vector.load %arg2[%c0_5, %c0_6] : memref<64x1xf32, #tpu.memory_space<vmem>>, vector<64x1xf32>
    %28 = vector.broadcast %27 : vector<64x1xf32> to vector<64x8xf32>
    %29 = arith.mulf %26, %28 : vector<64x8xf32>
    %c0_7 = arith.constant 0 : index
    %c0_8 = arith.constant 0 : index
    %30 = vector.load %arg3[%c0_7, %c0_8] : memref<64x1xf32, #tpu.memory_space<vmem>>, vector<64x1xf32>
    %31 = vector.broadcast %30 : vector<64x1xf32> to vector<64x8xf32>
    %32 = arith.addf %29, %31 : vector<64x8xf32>
    %cst_9 = arith.constant 0.000000e+00 : f32
    %33 = vector.broadcast %cst_9 : f32 to vector<64x8xf32>
    %34 = arith.maximumf %32, %33 : vector<64x8xf32>
    %c0_10 = arith.constant 0 : index
    %c0_11 = arith.constant 0 : index
    %35 = vector.load %arg4[%c0_10, %c0_11] : memref<64x192xf32, #tpu.memory_space<vmem>>, vector<64x192xf32>
    %cst_12 = arith.constant 0.000000e+00 : f32
    %36 = vector.broadcast %cst_12 : f32 to vector<64x1xf32>
    %37 = vector.extract_strided_slice %34 {offsets = [0, 0], sizes = [64, 4], strides = [1, 1]} : vector<64x8xf32> to vector<64x4xf32>
    %38 = vector.extract_strided_slice %34 {offsets = [0, 4], sizes = [64, 4], strides = [1, 1]} : vector<64x8xf32> to vector<64x4xf32>
    %39 = tpu.concatenate %36, %37, %36, %36, %38, %36 in 1 : vector<64x1xf32>, vector<64x4xf32>, vector<64x1xf32>, vector<64x1xf32>, vector<64x4xf32>, vector<64x1xf32> -> vector<64x12xf32>
    %40 = vector.extract_strided_slice %39 {offsets = [0, 0], sizes = [64, 4], strides = [1, 1]} : vector<64x12xf32> to vector<64x4xf32>
    %41 = vector.extract_strided_slice %39 {offsets = [0, 6], sizes = [64, 4], strides = [1, 1]} : vector<64x12xf32> to vector<64x4xf32>
    %42 = tpu.concatenate %40, %41 in 1 : vector<64x4xf32>, vector<64x4xf32> -> vector<64x8xf32>
    %43 = vector.extract_strided_slice %39 {offsets = [0, 1], sizes = [64, 4], strides = [1, 1]} : vector<64x12xf32> to vector<64x4xf32>
    %44 = vector.extract_strided_slice %39 {offsets = [0, 7], sizes = [64, 4], strides = [1, 1]} : vector<64x12xf32> to vector<64x4xf32>
    %45 = tpu.concatenate %43, %44 in 1 : vector<64x4xf32>, vector<64x4xf32> -> vector<64x8xf32>
    %46 = vector.extract_strided_slice %39 {offsets = [0, 2], sizes = [64, 4], strides = [1, 1]} : vector<64x12xf32> to vector<64x4xf32>
    %47 = vector.extract_strided_slice %39 {offsets = [0, 8], sizes = [64, 4], strides = [1, 1]} : vector<64x12xf32> to vector<64x4xf32>
    %48 = tpu.concatenate %46, %47 in 1 : vector<64x4xf32>, vector<64x4xf32> -> vector<64x8xf32>
    %49 = tpu.concatenate %42, %45, %48 in 0 : vector<64x8xf32>, vector<64x8xf32>, vector<64x8xf32> -> vector<192x8xf32>
    %cst_13 = arith.constant dense<0.000000e+00> : vector<64x8xf32>
    %50 = tpu.matmul %35, %49, %cst_13 {dimension_numbers = #tpu.dot_dimension_numbers<[1], [0], [0], [1], [0, 0, 1, 1], [], []>} : vector<64x192xf32>, vector<192x8xf32>, vector<64x8xf32> -> vector<64x8xf32>
    %c0_14 = arith.constant 0 : index
    %c0_15 = arith.constant 0 : index
    %51 = vector.load %arg5[%c0_14, %c0_15] : memref<64x1xf32, #tpu.memory_space<vmem>>, vector<64x1xf32>
    %52 = vector.broadcast %51 : vector<64x1xf32> to vector<64x8xf32>
    %53 = arith.mulf %50, %52 : vector<64x8xf32>
    %c0_16 = arith.constant 0 : index
    %c0_17 = arith.constant 0 : index
    %54 = vector.load %arg6[%c0_16, %c0_17] : memref<64x1xf32, #tpu.memory_space<vmem>>, vector<64x1xf32>
    %55 = vector.broadcast %54 : vector<64x1xf32> to vector<64x8xf32>
    %56 = arith.addf %53, %55 : vector<64x8xf32>
    %cst_18 = arith.constant dense<0.000000e+00> : vector<32x8xf32>
    %57 = tpu.matmul %0, %25, %cst_18 {dimension_numbers = #tpu.dot_dimension_numbers<[1], [0], [0], [1], [0, 0, 1, 1], [], []>} : vector<32x16xf32>, vector<16x8xf32>, vector<32x8xf32> -> vector<32x8xf32>
    %c0_19 = arith.constant 0 : index
    %c0_20 = arith.constant 0 : index
    %58 = vector.load %arg7[%c0_19, %c0_20] : memref<64x32xf32, #tpu.memory_space<vmem>>, vector<64x32xf32>
    %cst_21 = arith.constant dense<0.000000e+00> : vector<64x8xf32>
    %59 = tpu.matmul %58, %57, %cst_21 {dimension_numbers = #tpu.dot_dimension_numbers<[1], [0], [0], [1], [0, 0, 1, 1], [], []>} : vector<64x32xf32>, vector<32x8xf32>, vector<64x8xf32> -> vector<64x8xf32>
    %c0_22 = arith.constant 0 : index
    %c0_23 = arith.constant 0 : index
    %60 = vector.load %arg8[%c0_22, %c0_23] : memref<64x1xf32, #tpu.memory_space<vmem>>, vector<64x1xf32>
    %61 = vector.broadcast %60 : vector<64x1xf32> to vector<64x8xf32>
    %62 = arith.mulf %59, %61 : vector<64x8xf32>
    %c0_24 = arith.constant 0 : index
    %c0_25 = arith.constant 0 : index
    %63 = vector.load %arg9[%c0_24, %c0_25] : memref<64x1xf32, #tpu.memory_space<vmem>>, vector<64x1xf32>
    %64 = vector.broadcast %63 : vector<64x1xf32> to vector<64x8xf32>
    %65 = arith.addf %62, %64 : vector<64x8xf32>
    %66 = arith.addf %56, %65 : vector<64x8xf32>
    %cst_26 = arith.constant 0.000000e+00 : f32
    %67 = vector.broadcast %cst_26 : f32 to vector<64x8xf32>
    %68 = arith.maximumf %66, %67 : vector<64x8xf32>
    %c0_27 = arith.constant 0 : index
    %c0_28 = arith.constant 0 : index
    %69 = vector.load %arg10[%c0_27, %c0_28] : memref<64x8xf32, #tpu.memory_space<vmem>>, vector<64x8xf32>
    tpu.vector_store %arg10[%c0_27, %c0_28], %68 {strides = array<i32>} : memref<64x8xf32, #tpu.memory_space<vmem>>, vector<64x8xf32>,
    return
  }
}

module attributes {stable_mosaic.version = 11 : i64} {
  func.func @_head_kernel(%arg0: memref<64x8xf32, #tpu.memory_space<vmem>>, %arg1: memref<256x64xf32, #tpu.memory_space<vmem>>, %arg2: memref<256x1xf32, #tpu.memory_space<vmem>>, %arg3: memref<96x256xf32, #tpu.memory_space<vmem>>, %arg4: memref<96x1xf32, #tpu.memory_space<vmem>>, %arg5: memref<1x96xf32, #tpu.memory_space<vmem>>, %arg6: memref<1x1xf32, #tpu.memory_space<vmem>>, %arg7: memref<1x2xf32, #tpu.memory_space<vmem>>) attributes {dimension_semantics = [], scalar_prefetch = 0 : i64, scratch_operands = 0 : i64, tpu.core_type = #tpu.core_type<tc>} {
    %c0 = arith.constant 0 : index
    %c0_0 = arith.constant 0 : index
    %0 = vector.load %arg0[%c0, %c0_0] : memref<64x8xf32, #tpu.memory_space<vmem>>, vector<64x8xf32>
    %1 = vector.extract_strided_slice %0 {offsets = [0, 0], sizes = [64, 4], strides = [1, 1]} : vector<64x8xf32> to vector<64x4xf32>
    %cst = arith.constant dense<0.000000e+00> : vector<64xf32>
    %2 = vector.multi_reduction <add>, %1, %cst [1] : vector<64x4xf32> to vector<64xf32>
    %3 = vector.shape_cast %2 : vector<64xf32> to vector<64x1xf32>
    %cst_1 = arith.constant 2.500000e-01 : f32
    %4 = vector.broadcast %cst_1 : f32 to vector<64x1xf32>
    %5 = arith.mulf %3, %4 : vector<64x1xf32>
    %6 = vector.extract_strided_slice %0 {offsets = [0, 4], sizes = [64, 4], strides = [1, 1]} : vector<64x8xf32> to vector<64x4xf32>
    %cst_2 = arith.constant dense<0.000000e+00> : vector<64xf32>
    %7 = vector.multi_reduction <add>, %6, %cst_2 [1] : vector<64x4xf32> to vector<64xf32>
    %8 = vector.shape_cast %7 : vector<64xf32> to vector<64x1xf32>
    %cst_3 = arith.constant 2.500000e-01 : f32
    %9 = vector.broadcast %cst_3 : f32 to vector<64x1xf32>
    %10 = arith.mulf %8, %9 : vector<64x1xf32>
    %11 = tpu.concatenate %5, %10 in 1 : vector<64x1xf32>, vector<64x1xf32> -> vector<64x2xf32>
    %c0_4 = arith.constant 0 : index
    %c0_5 = arith.constant 0 : index
    %12 = vector.load %arg1[%c0_4, %c0_5] : memref<256x64xf32, #tpu.memory_space<vmem>>, vector<256x64xf32>
    %cst_6 = arith.constant dense<0.000000e+00> : vector<256x2xf32>
    %13 = tpu.matmul %12, %11, %cst_6 {dimension_numbers = #tpu.dot_dimension_numbers<[1], [0], [0], [1], [0, 0, 1, 1], [], []>} : vector<256x64xf32>, vector<64x2xf32>, vector<256x2xf32> -> vector<256x2xf32>
    %c0_7 = arith.constant 0 : index
    %c0_8 = arith.constant 0 : index
    %14 = vector.load %arg2[%c0_7, %c0_8] : memref<256x1xf32, #tpu.memory_space<vmem>>, vector<256x1xf32>
    %15 = vector.broadcast %14 : vector<256x1xf32> to vector<256x2xf32>
    %16 = arith.addf %13, %15 : vector<256x2xf32>
    %cst_9 = arith.constant 0.000000e+00 : f32
    %17 = vector.broadcast %cst_9 : f32 to vector<256x2xf32>
    %18 = arith.maximumf %16, %17 : vector<256x2xf32>
    %c0_10 = arith.constant 0 : index
    %c0_11 = arith.constant 0 : index
    %19 = vector.load %arg3[%c0_10, %c0_11] : memref<96x256xf32, #tpu.memory_space<vmem>>, vector<96x256xf32>
    %cst_12 = arith.constant dense<0.000000e+00> : vector<96x2xf32>
    %20 = tpu.matmul %19, %18, %cst_12 {dimension_numbers = #tpu.dot_dimension_numbers<[1], [0], [0], [1], [0, 0, 1, 1], [], []>} : vector<96x256xf32>, vector<256x2xf32>, vector<96x2xf32> -> vector<96x2xf32>
    %c0_13 = arith.constant 0 : index
    %c0_14 = arith.constant 0 : index
    %21 = vector.load %arg4[%c0_13, %c0_14] : memref<96x1xf32, #tpu.memory_space<vmem>>, vector<96x1xf32>
    %22 = vector.broadcast %21 : vector<96x1xf32> to vector<96x2xf32>
    %23 = arith.addf %20, %22 : vector<96x2xf32>
    %cst_15 = arith.constant 0.000000e+00 : f32
    %24 = vector.broadcast %cst_15 : f32 to vector<96x2xf32>
    %25 = arith.maximumf %23, %24 : vector<96x2xf32>
    %c0_16 = arith.constant 0 : index
    %c0_17 = arith.constant 0 : index
    %26 = vector.load %arg5[%c0_16, %c0_17] : memref<1x96xf32, #tpu.memory_space<vmem>>, vector<1x96xf32>
    %cst_18 = arith.constant dense<0.000000e+00> : vector<1x2xf32>
    %27 = tpu.matmul %26, %25, %cst_18 {dimension_numbers = #tpu.dot_dimension_numbers<[1], [0], [0], [1], [0, 0, 1, 1], [], []>} : vector<1x96xf32>, vector<96x2xf32>, vector<1x2xf32> -> vector<1x2xf32>
    %c0_19 = arith.constant 0 : index
    %c0_20 = arith.constant 0 : index
    %28 = vector.load %arg6[%c0_19, %c0_20] : memref<1x1xf32, #tpu.memory_space<vmem>>, vector<1x1xf32>
    %29 = vector.broadcast %28 : vector<1x1xf32> to vector<1x2xf32>
    %30 = arith.addf %27, %29 : vector<1x2xf32>
    %c0_21 = arith.constant 0 : index
    %c0_22 = arith.constant 0 : index
    %31 = vector.load %arg7[%c0_21, %c0_22] : memref<1x2xf32, #tpu.memory_space<vmem>>, vector<1x2xf32>
    tpu.vector_store %arg7[%c0_21, %c0_22], %30 {strides = array<i32>} : memref<1x2xf32, #tpu.memory_space<vmem>>, vector<1x2xf32>,
    return
  }
}

</mosaic_0001>

<llo_original>
// kernel: run.6
$region0: #{run.6}
  #allocation0 [shape = 'u32[]', space=smem, size = 0x4, offset = 0x4, fixed_abs, tag = 'smem constant byte address 0x4 - core index']
  #allocation1 [shape = 'u32[144,128]{1,0:T(1,128)}', space=vmem, size = 0x12000, scoped, tag = 'internal scratch']
  %s0 = inlined_call_operand.vmem [shape: f32[4,128], index: 0, kind: input, shape index: {}]
  %s1 = inlined_call_operand.vmem [shape: f32[8,12], index: 1, kind: input, shape index: {}]
  %s2 = inlined_call_operand.vmem [shape: f32[8,1], index: 2, kind: input, shape index: {}]
  %s3 = inlined_call_operand.vmem [shape: f32[8,1], index: 3, kind: input, shape index: {}]
  %s4 = inlined_call_operand.vmem [shape: f32[8,64], index: 4, kind: output, shape index: {}]
  %s5 = sld [smem:[#allocation0]]
  $region26: #{run.6} parent=0
    _
  %s7 = ssub.s32 1, %s5
  %s8 = scalar_select 0, %s7, %s5
  // Predicated region
  $region2: #{run.6} parent=0 // pred_check
    _
  $region3: #{run.6} parent=0 // pred_check_branch
    %10 = sbr.rel (0) target = $region5
  $region4: #{run.6} parent=0 // pred_region
    _
  $region5: #{run.6} parent=0 // pred_fallthru
    _
  // Predicated region
  $region6: #{run.6} parent=0 // pred_check
    _
  $region7: #{run.6} parent=0 // pred_check_branch
    %12 = sbr.rel (0) target = $region9
  $region8: #{run.6} parent=0 // pred_region
    _
  $region9: #{run.6} parent=0 // pred_fallthru
    _
  // Predicated region
  $region10: #{run.6} parent=0 // pred_check
    _
  $region11: #{run.6} parent=0 // pred_check_branch
    %14 = sbr.rel (0) target = $region13
  $region12: #{run.6} parent=0 // pred_region
    _
  $region13: #{run.6} parent=0 // pred_fallthru
    _
  // Predicated region
  $region14: #{run.6} parent=0 // pred_check
    _
  $region15: #{run.6} parent=0 // pred_check_branch
    %16 = sbr.rel (0) target = $region17
  $region16: #{run.6} parent=0 // pred_region
    _
  $region17: #{run.6} parent=0 // pred_fallthru
    _
  %v17 = vld [vmem:[%s0] sm:$0xf]
  %v18 = vld [vmem:[%s1] sm:$0xff]
  %20 = vrot.lane.b32.xlu0 %v17, 1
  %v21 = vpop.permute.xlu0 %20
  %23 = vrot.lane.b32.xlu0 %v17, 3
  %v24 = vpop.permute.xlu0 %23
  %vm26 = vcmask 7168
  %v27 = vsel %vm26, 0.0, %v21
  %vm28 = vcmask 531456
  %v29 = vsel %vm28, %v27, 0.0
  %vm30 = vcmask 539648
  %v31 = vsel %vm30, %v29, 0.0
  %vm32 = vcmask 547840
  %v33 = vsel %vm32, %v31, %v24
  %vm34 = vcmask 23552
  %v35 = vsel %vm34, %v24, 0.0
  %38 = vrot.lane.b32.xlu0 %v33, 126
  %v39 = vpop.permute.xlu0 %38
  %40 = vrot.lane.b32.xlu0 %v35, 126
  %v41 = vpop.permute.xlu0 %40
  %vm42 = vcmask 1031168
  %v43 = vsel %vm42, %v39, %v41
  %vm45 = vcmask 523264
  %v46 = vsel %vm45, %v33, %v43
  %47 = vrot.lane.b32.xlu0 %v33, 127
  %v48 = vpop.permute.xlu0 %47
  %50 = vrot.lane.b32.xlu0 %v33, 125
  %v51 = vpop.permute.xlu0 %50
  %52 = vrot.lane.b32.xlu0 %v35, 125
  %v53 = vpop.permute.xlu0 %52
  %vm54 = vcmask 1022976
  %v55 = vsel %vm54, %v51, %v53
  %v57 = vsel %vm45, %v48, %v55
  %59 = vrot.lane.b32.xlu0 %v33, 124
  %v60 = vpop.permute.xlu0 %59
  %61 = vrot.lane.b32.xlu0 %v35, 124
  %v62 = vpop.permute.xlu0 %61
  %vm63 = vcmask 1014784
  %v64 = vsel %vm63, %v60, %v62
  %v66 = vsel %vm45, %v39, %v64
  %v68 = vrot.slane %v57, 4
  %vm70 = vcmask 1043456
  %v71 = vsel %vm70, %v46, %v68
  %vm72 = vcmask 97280
  %v74 = vsel %vm72, %v18, 0
  %v77 = vsel %vm70, %v66, 0
  %79 = vmatprep.subr.mxu0 0.0
  %80 = vmatpush1.msra.mxu0 %v71
  %81 = vmatprep.subr.mxu0 0.0
  %82 = vmatpush1.msra.mxu0 %v77
  %83 = vmatprep.subr.mxu0 0.0
  %84 = vmatpush1.msra.mxu0 0.0
  %85 = vmatprep.subr.mxu0 0.0
  %86 = vmatpush1.msra.mxu0 0.0
  %87 = vmatprep.subr.mxu0 0.0
  %88 = vmatpush1.msra.mxu0 0.0
  %89 = vmatprep.subr.mxu0 0.0
  %90 = vmatpush1.msra.mxu0 0.0
  %91 = vmatprep.subr.mxu0 0.0
  %92 = vmatpush1.msra.mxu0 0.0
  %93 = vmatprep.subr.mxu0 0.0
  %94 = vmatpush1.msra.mxu0 0.0
  %95 = vmatprep.subr.mxu0 0.0
  %96 = vmatpush1.msra.mxu0 0.0
  %97 = vmatprep.subr.mxu0 0.0
  %98 = vmatpush1.msra.mxu0 0.0
  %99 = vmatprep.subr.mxu0 0.0
  %100 = vmatpush1.msra.mxu0 0.0
  %101 = vmatprep.subr.mxu0 0.0
  %102 = vmatpush1.msra.mxu0 0.0
  %103 = vmatprep.subr.mxu0 0.0
  %104 = vmatpush1.msra.mxu0 0.0
  %105 = vmatprep.subr.mxu0 0.0
  %106 = vmatpush1.msra.mxu0 0.0
  %107 = vmatprep.subr.mxu0 0.0
  %108 = vmatpush1.msra.mxu0 0.0
  %109 = vmatprep.subr.mxu0 0.0
  %110 = vmatpush1.msra.mxu0 0.0
  %111 = vmatprep.subr.mxu0 0.0
  %112 = vmatpush1.msra.mxu0 0.0
  %113 = vmatprep.subr.mxu0 0.0
  %114 = vmatpush1.msra.mxu0 0.0
  %115 = vmatprep.subr.mxu0 0.0
  %116 = vmatpush1.msra.mxu0 0.0
  %117 = vmatprep.subr.mxu0 0.0
  %118 = vmatpush1.msra.mxu0 0.0
  %119 = vmatprep.subr.mxu0 0.0
  %120 = vmatpush1.msra.mxu0 0.0
  %121 = vmatprep.subr.mxu0 0.0
  %122 = vmatpush1.msra.mxu0 0.0
  %123 = vmatprep.subr.mxu0 0.0
  %124 = vmatpush1.msra.mxu0 0.0
  %125 = vmatprep.subr.mxu0 0.0
  %126 = vmatpush1.msra.mxu0 0.0
  %127 = vmatprep.subr.mxu0 0.0
  %128 = vmatpush1.msra.mxu0 0.0
  %129 = vmatprep.subr.mxu0 0.0
  %130 = vmatpush1.msra.mxu0 0.0
  %131 = vmatprep.subr.mxu0 0.0
  %132 = vmatpush1.msra.mxu0 0.0
  %133 = vmatprep.subr.mxu0 0.0
  %134 = vmatpush1.msra.mxu0 0.0
  %135 = vmatprep.subr.mxu0 0.0
  %136 = vmatpush1.msra.mxu0 0.0
  %137 = vmatprep.subr.mxu0 0.0
  %138 = vmatpush1.msra.mxu0 0.0
  %139 = vmatprep.subr.mxu0 0.0
  %140 = vmatpush1.msra.mxu0 0.0
  %141 = vmatprep.subr.mxu0 0.0
  %142 = vmatpush1.msra.mxu0 0.0
  %143 = vmatprep.mubr.f32.mxu0 0.0
  %144 = vmatmul.mubr.f32.gmra.mrb[0].mxu0 %v74
  %v145 = vpop.f32.mrb[0].mxu0
  %v146 = vadd.f32 0.0, %v145
  %v147 = vpop.f32.mrb[0].mxu0
  %148 = vdwg.mxu0
  %v149 = vld [vmem:[%s2] sm:$0xff]
  %151 = vset.pattern.permute.xlu0 0
  %152 = vperm.xlu0 %151, %v149
  %v153 = vpop.permute.xlu0 %152
  %v155 = vmul.f32 %v146, %v153
  %v156 = vld [vmem:[%s3] sm:$0xff]
  %158 = vset.pattern.permute.xlu0 0
  %159 = vperm.xlu0 %158, %v156
  %v160 = vpop.permute.xlu0 %159
  %v162 = vadd.f32 %v155, %v160
  %v163 = vmax.f32 %v162, 0.0
  %v164 = vlaneseq
  %v165 = vshrl.u32 %v164, 7
  %v166 = vadd.s32 %v165, 8
  %v167 = vadd.s32 %v165, 16
  %v168 = vadd.s32 %v165, 24
  %v169 = vadd.s32 %v165, 32
  %v170 = vadd.s32 %v165, 40
  %v171 = vadd.s32 %v165, 48
  %v172 = vadd.s32 %v165, 56
  %v173 = vadd.s32 %v165, 64
  %v174 = vadd.s32 %v165, 72
  %v175 = vadd.s32 %v165, 80
  %v176 = vadd.s32 %v165, 88
  %v177 = vadd.s32 %v165, 96
  %v178 = vadd.s32 %v165, 104
  %v179 = vadd.s32 %v165, 112
  %v180 = vadd.s32 %v165, 120
  %v181 = vlaneseq
  %v182 = vand.u32 %v181, 127
  %v183 = vmul.u32 %v182, 2
  %vm184 = vcmp.eq.s32.totalorder %v165, %v183
  %vm185 = vcmp.eq.s32.totalorder %v166, %v183
  %vm186 = vcmp.eq.s32.totalorder %v167, %v183
  %vm187 = vcmp.eq.s32.totalorder %v168, %v183
  %vm188 = vcmp.eq.s32.totalorder %v169, %v183
  %vm189 = vcmp.eq.s32.totalorder %v170, %v183
  %vm190 = vcmp.eq.s32.totalorder %v171, %v183
  %vm191 = vcmp.eq.s32.totalorder %v172, %v183
  %vm192 = vcmp.eq.s32.totalorder %v173, %v183
  %vm193 = vcmp.eq.s32.totalorder %v174, %v183
  %vm194 = vcmp.eq.s32.totalorder %v175, %v183
  %vm195 = vcmp.eq.s32.totalorder %v176, %v183
  %vm196 = vcmp.eq.s32.totalorder %v177, %v183
  %vm197 = vcmp.eq.s32.totalorder %v178, %v183
  %vm198 = vcmp.eq.s32.totalorder %v179, %v183
  %vm199 = vcmp.eq.s32.totalorder %v180, %v183
  %v200 = vsel %vm184, 1, 0
  %v201 = vsel %vm185, 1, 0
  %v202 = vsel %vm186, 1, 0
  %v203 = vsel %vm187, 1, 0
  %v204 = vsel %vm188, 1, 0
  %v205 = vsel %vm189, 1, 0
  %v206 = vsel %vm190, 1, 0
  %v207 = vsel %vm191, 1, 0
  %v208 = vsel %vm192, 1, 0
  %v209 = vsel %vm193, 1, 0
  %v210 = vsel %vm194, 1, 0
  %v211 = vsel %vm195, 1, 0
  %v212 = vsel %vm196, 1, 0
  %v213 = vsel %vm197, 1, 0
  %v214 = vsel %vm198, 1, 0
  %v215 = vsel %vm199, 1, 0
  %v216 = vcvt.s32.f32 %v200
  %v217 = vcvt.s32.f32 %v201
  %v218 = vcvt.s32.f32 %v202
  %v219 = vcvt.s32.f32 %v203
  %v220 = vcvt.s32.f32 %v204
  %v221 = vcvt.s32.f32 %v205
  %v222 = vcvt.s32.f32 %v206
  %v223 = vcvt.s32.f32 %v207
  %v224 = vcvt.s32.f32 %v208
  %v225 = vcvt.s32.f32 %v209
  %v226 = vcvt.s32.f32 %v210
  %v227 = vcvt.s32.f32 %v211
  %v228 = vcvt.s32.f32 %v212
  %v229 = vcvt.s32.f32 %v213
  %v230 = vcvt.s32.f32 %v214
  %v231 = vcvt.s32.f32 %v215
  %232 = vmatprep.subr.mxu0 0.0
  %233 = vmatpush1.msra.mxu0 %v216
  %234 = vmatprep.subr.mxu0 0.0
  %235 = vmatpush1.msra.mxu0 %v217
  %236 = vmatprep.subr.mxu0 0.0
  %237 = vmatpush1.msra.mxu0 %v218
  %238 = vmatprep.subr.mxu0 0.0
  %239 = vmatpush1.msra.mxu0 %v219
  %240 = vmatprep.subr.mxu0 0.0
  %241 = vmatpush1.msra.mxu0 %v220
  %242 = vmatprep.subr.mxu0 0.0
  %243 = vmatpush1.msra.mxu0 %v221
  %244 = vmatprep.subr.mxu0 0.0
  %245 = vmatpush1.msra.mxu0 %v222
  %246 = vmatprep.subr.mxu0 0.0
  %247 = vmatpush1.msra.mxu0 %v223
  %248 = vmatprep.subr.mxu0 0.0
  %249 = vmatpush1.msra.mxu0 %v224
  %250 = vmatprep.subr.mxu0 0.0
  %251 = vmatpush1.msra.mxu0 %v225
  %252 = vmatprep.subr.mxu0 0.0
  %253 = vmatpush1.msra.mxu0 %v226
  %254 = vmatprep.subr.mxu0 0.0
  %255 = vmatpush1.msra.mxu0 %v227
  %256 = vmatprep.subr.mxu0 0.0
  %257 = vmatpush1.msra.mxu0 %v228
  %258 = vmatprep.subr.mxu0 0.0
  %259 = vmatpush1.msra.mxu0 %v229
  %260 = vmatprep.subr.mxu0 0.0
  %261 = vmatpush1.msra.mxu0 %v230
  %262 = vmatprep.subr.mxu0 0.0
  %263 = vmatpush1.msra.mxu0 %v231
  %264 = vmatprep.subr.mxu0 0.0
  %265 = vmatpush1.msra.mxu0 0.0
  %266 = vmatprep.subr.mxu0 0.0
  %267 = vmatpush1.msra.mxu0 0.0
  %268 = vmatprep.subr.mxu0 0.0
  %269 = vmatpush1.msra.mxu0 0.0
  %270 = vmatprep.subr.mxu0 0.0
  %271 = vmatpush1.msra.mxu0 0.0
  %272 = vmatprep.subr.mxu0 0.0
  %273 = vmatpush1.msra.mxu0 0.0
  %274 = vmatprep.subr.mxu0 0.0
  %275 = vmatpush1.msra.mxu0 0.0
  %276 = vmatprep.subr.mxu0 0.0
  %277 = vmatpush1.msra.mxu0 0.0
  %278 = vmatprep.subr.mxu0 0.0
  %279 = vmatpush1.msra.mxu0 0.0
  %280 = vmatprep.subr.mxu0 0.0
  %281 = vmatpush1.msra.mxu0 0.0
  %282 = vmatprep.subr.mxu0 0.0
  %283 = vmatpush1.msra.mxu0 0.0
  %284 = vmatprep.subr.mxu0 0.0
  %285 = vmatpush1.msra.mxu0 0.0
  %286 = vmatprep.subr.mxu0 0.0
  %287 = vmatpush1.msra.mxu0 0.0
  %288 = vmatprep.subr.mxu0 0.0
  %289 = vmatpush1.msra.mxu0 0.0
  %290 = vmatprep.subr.mxu0 0.0
  %291 = vmatpush1.msra.mxu0 0.0
  %292 = vmatprep.subr.mxu0 0.0
  %293 = vmatpush1.msra.mxu0 0.0
  %294 = vmatprep.subr.mxu0 0.0
  %295 = vmatpush1.msra.mxu0 0.0
  %296 = vmatprep.mubr.f32.mxu0 0.0
  %297 = vmatmul.mubr.f32.gmra.mrb[0].mxu0 %v163
  %v298 = vpop.f32.mrb[0].mxu0
  %v299 = vadd.f32 0.0, %v298
  %v300 = vpop.f32.mrb[0].mxu0
  %301 = vdwg.mxu0
  %v302 = vadd.s32 %v183, 1
  %vm303 = vcmp.eq.s32.totalorder %v165, %v302
  %vm304 = vcmp.eq.s32.totalorder %v166, %v302
  %vm305 = vcmp.eq.s32.totalorder %v167, %v302
  %vm306 = vcmp.eq.s32.totalorder %v168, %v302
  %vm307 = vcmp.eq.s32.totalorder %v169, %v302
  %vm308 = vcmp.eq.s32.totalorder %v170, %v302
  %vm309 = vcmp.eq.s32.totalorder %v171, %v302
  %vm310 = vcmp.eq.s32.totalorder %v172, %v302
  %vm311 = vcmp.eq.s32.totalorder %v173, %v302
  %vm312 = vcmp.eq.s32.totalorder %v174, %v302
  %vm313 = vcmp.eq.s32.totalorder %v175, %v302
  %vm314 = vcmp.eq.s32.totalorder %v176, %v302
  %vm315 = vcmp.eq.s32.totalorder %v177, %v302
  %vm316 = vcmp.eq.s32.totalorder %v178, %v302
  %vm317 = vcmp.eq.s32.totalorder %v179, %v302
  %vm318 = vcmp.eq.s32.totalorder %v180, %v302
  %v319 = vsel %vm303, 1, 0
  %v320 = vsel %vm304, 1, 0
  %v321 = vsel %vm305, 1, 0
  %v322 = vsel %vm306, 1, 0
  %v323 = vsel %vm307, 1, 0
  %v324 = vsel %vm308, 1, 0
  %v325 = vsel %vm309, 1, 0
  %v326 = vsel %vm310, 1, 0
  %v327 = vsel %vm311, 1, 0
  %v328 = vsel %vm312, 1, 0
  %v329 = vsel %vm313, 1, 0
  %v330 = vsel %vm314, 1, 0
  %v331 = vsel %vm315, 1, 0
  %v332 = vsel %vm316, 1, 0
  %v333 = vsel %vm317, 1, 0
  %v334 = vsel %vm318, 1, 0
  %v335 = vcvt.s32.f32 %v319
  %v336 = vcvt.s32.f32 %v320
  %v337 = vcvt.s32.f32 %v321
  %v338 = vcvt.s32.f32 %v322
  %v339 = vcvt.s32.f32 %v323
  %v340 = vcvt.s32.f32 %v324
  %v341 = vcvt.s32.f32 %v325
  %v342 = vcvt.s32.f32 %v326
  %v343 = vcvt.s32.f32 %v327
  %v344 = vcvt.s32.f32 %v328
  %v345 = vcvt.s32.f32 %v329
  %v346 = vcvt.s32.f32 %v330
  %v347 = vcvt.s32.f32 %v331
  %v348 = vcvt.s32.f32 %v332
  %v349 = vcvt.s32.f32 %v333
  %v350 = vcvt.s32.f32 %v334
  %351 = vmatprep.subr.mxu0 0.0
  %352 = vmatpush1.msra.mxu0 %v335
  %353 = vmatprep.subr.mxu0 0.0
  %354 = vmatpush1.msra.mxu0 %v336
  %355 = vmatprep.subr.mxu0 0.0
  %356 = vmatpush1.msra.mxu0 %v337
  %357 = vmatprep.subr.mxu0 0.0
  %358 = vmatpush1.msra.mxu0 %v338
  %359 = vmatprep.subr.mxu0 0.0
  %360 = vmatpush1.msra.mxu0 %v339
  %361 = vmatprep.subr.mxu0 0.0
  %362 = vmatpush1.msra.mxu0 %v340
  %363 = vmatprep.subr.mxu0 0.0
  %364 = vmatpush1.msra.mxu0 %v341
  %365 = vmatprep.subr.mxu0 0.0
  %366 = vmatpush1.msra.mxu0 %v342
  %367 = vmatprep.subr.mxu0 0.0
  %368 = vmatpush1.msra.mxu0 %v343
  %369 = vmatprep.subr.mxu0 0.0
  %370 = vmatpush1.msra.mxu0 %v344
  %371 = vmatprep.subr.mxu0 0.0
  %372 = vmatpush1.msra.mxu0 %v345
  %373 = vmatprep.subr.mxu0 0.0
  %374 = vmatpush1.msra.mxu0 %v346
  %375 = vmatprep.subr.mxu0 0.0
  %376 = vmatpush1.msra.mxu0 %v347
  %377 = vmatprep.subr.mxu0 0.0
  %378 = vmatpush1.msra.mxu0 %v348
  %379 = vmatprep.subr.mxu0 0.0
  %380 = vmatpush1.msra.mxu0 %v349
  %381 = vmatprep.subr.mxu0 0.0
  %382 = vmatpush1.msra.mxu0 %v350
  %383 = vmatprep.subr.mxu0 0.0
  %384 = vmatpush1.msra.mxu0 0.0
  %385 = vmatprep.subr.mxu0 0.0
  %386 = vmatpush1.msra.mxu0 0.0
  %387 = vmatprep.subr.mxu0 0.0
  %388 = vmatpush1.msra.mxu0 0.0
  %389 = vmatprep.subr.mxu0 0.0
  %390 = vmatpush1.msra.mxu0 0.0
  %391 = vmatprep.subr.mxu0 0.0
  %392 = vmatpush1.msra.mxu0 0.0
  %393 = vmatprep.subr.mxu0 0.0
  %394 = vmatpush1.msra.mxu0 0.0
  %395 = vmatprep.subr.mxu0 0.0
  %396 = vmatpush1.msra.mxu0 0.0
  %397 = vmatprep.subr.mxu0 0.0
  %398 = vmatpush1.msra.mxu0 0.0
  %399 = vmatprep.subr.mxu0 0.0
  %400 = vmatpush1.msra.mxu0 0.0
  %401 = vmatprep.subr.mxu0 0.0
  %402 = vmatpush1.msra.mxu0 0.0
  %403 = vmatprep.subr.mxu0 0.0
  %404 = vmatpush1.msra.mxu0 0.0
  %405 = vmatprep.subr.mxu0 0.0
  %406 = vmatpush1.msra.mxu0 0.0
  %407 = vmatprep.subr.mxu0 0.0
  %408 = vmatpush1.msra.mxu0 0.0
  %409 = vmatprep.subr.mxu0 0.0
  %410 = vmatpush1.msra.mxu0 0.0
  %411 = vmatprep.subr.mxu0 0.0
  %412 = vmatpush1.msra.mxu0 0.0
  %413 = vmatprep.subr.mxu0 0.0
  %414 = vmatpush1.msra.mxu0 0.0
  %415 = vmatprep.mubr.f32.mxu0 0.0
  %416 = vmatmul.mubr.f32.gmra.mrb[0].mxu0 %v163
  %v417 = vpop.f32.mrb[0].mxu0
  %v418 = vadd.f32 0.0, %v417
  %v419 = vpop.f32.mrb[0].mxu0
  %420 = vdwg.mxu0
  %v421 = vmax.f32 %v299, %v418
  %422 = vst.msk [vmem:[%s4] sm:$0xff] %vm45, %v421
  // Predicated region
  $region18: #{run.6} parent=0 // pred_check
    _
  $region19: #{run.6} parent=0 // pred_check_branch
    %424 = sbr.rel (0) target = $region21
  $region20: #{run.6} parent=0 // pred_region
    _
  $region21: #{run.6} parent=0 // pred_fallthru
    _
  // Predicated region
  $region22: #{run.6} parent=0 // pred_check
    _
  $region23: #{run.6} parent=0 // pred_check_branch
    %426 = sbr.rel (0) target = $region25
  $region24: #{run.6} parent=0 // pred_region
    _
  $region25: #{run.6} parent=0 // pred_fallthru
    _

// kernel: run.7
$region0: #{run.7}
  #allocation0 [shape = 'u32[]', space=smem, size = 0x4, offset = 0x4, fixed_abs, tag = 'smem constant byte address 0x4 - core index']
  #allocation1 [shape = 'u32[144,128]{1,0:T(1,128)}', space=vmem, size = 0x12000, scoped, tag = 'internal scratch']
  %s0 = inlined_call_operand.vmem [shape: f32[8,64], index: 0, kind: input, shape index: {}]
  %s1 = inlined_call_operand.hbm [shape: f32[8,24], index: 1, kind: input, shape index: {}]
  %s2 = inlined_call_operand.hbm [shape: f32[8,1], index: 2, kind: input, shape index: {}]
  %s3 = inlined_call_operand.hbm [shape: f32[8,1], index: 3, kind: input, shape index: {}]
  %s4 = inlined_call_operand.hbm [shape: f32[8,24], index: 4, kind: input, shape index: {}]
  %s5 = inlined_call_operand.hbm [shape: f32[8,1], index: 5, kind: input, shape index: {}]
  %s6 = inlined_call_operand.hbm [shape: f32[8,1], index: 6, kind: input, shape index: {}]
  %s7 = inlined_call_operand.vmem [shape: f32[8,64], index: 7, kind: output, shape index: {}]
  %s8 = sld [smem:[#allocation0]]
  $region62: #{run.7} parent=0
    _
  %s10 = ssub.s32 1, %s8
  %s11 = scalar_select 0, %s10, %s8
  $region1: #{run.7} parent=0
    #allocation2 [shape = 'u8[4096]{0}', space=vmem, size = 0x1000, scoped, tag = 'input window, operand 1, single buffered']
    #allocation3 [shape = 's32[1]{0}', space=sflag, size = 0x4, scoped, tag = 'scoped memory for run.7']
    #allocation4 [shape = 'u8[4096]{0}', space=vmem, size = 0x1000, scoped, tag = 'input window, operand 2, single buffered']
    #allocation5 [shape = 's32[1]{0}', space=sflag, size = 0x4, scoped, tag = 'scoped memory for run.7']
    #allocation6 [shape = 'u8[4096]{0}', space=vmem, size = 0x1000, scoped, tag = 'input window, operand 3, single buffered']
    #allocation7 [shape = 'u8[4096]{0}', space=vmem, size = 0x1000, scoped, tag = 'input window, operand 4, single buffered']
    #allocation8 [shape = 's32[1]{0}', space=sflag, size = 0x4, scoped, tag = 'scoped memory for run.7']
    #allocation9 [shape = 'u8[4096]{0}', space=vmem, size = 0x1000, scoped, tag = 'input window, operand 5, single buffered']
    #allocation10 [shape = 'u8[4096]{0}', space=vmem, size = 0x1000, scoped, tag = 'input window, operand 6, single buffered']
    #allocation11 [shape = 's32[1]{0}', space=sflag, size = 0x4, scoped, tag = 'scoped memory for run.7']
    %12 = vsyncpa [#allocation3], 0
    %13 = vsyncpa [#allocation5], 0
    %14 = vsyncpa [#allocation8], 0
    %15 = vsyncpa [#allocation11], 0
    // Predicated region
    $region2: #{run.7} parent=1 // pred_check
      _
    $region3: #{run.7} parent=1 // pred_check_branch
      %17 = sbr.rel (0) target = $region5
    $region4: #{run.7} parent=1 // pred_region
      _
    $region5: #{run.7} parent=1 // pred_fallthru
      _
    // Predicated region
    $region6: #{run.7} parent=1 // pred_check
      _
    $region7: #{run.7} parent=1 // pred_check_branch
      %19 = sbr.rel (0) target = $region9
    $region8: #{run.7} parent=1 // pred_region
      %s21 = ssub.s32 128, 128
      %22 = vsyncadd [#allocation3], %s21
      %s24 = sshll.u32 [#allocation2], 4
      %s25 = int_to_ptr.vmem [resolvable:$true] %s24
      %27 = dma.hbm_to_vmem [thread:$0]  %s1, 128, %s25, [#allocation3]
    $region9: #{run.7} parent=1 // pred_fallthru
      _
    // Predicated region
    $region10: #{run.7} parent=1 // pred_check
      _
    $region11: #{run.7} parent=1 // pred_check_branch
      %29 = sbr.rel (0) target = $region13
    $region12: #{run.7} parent=1 // pred_region
      %s31 = ssub.s32 128, 128
      %32 = vsyncadd [#allocation5], %s31
      %s34 = sshll.u32 [#allocation4], 4
      %s35 = int_to_ptr.vmem [resolvable:$true] %s34
      %37 = dma.hbm_to_vmem [thread:$0]  %s2, 128, %s35, [#allocation5]
    $region13: #{run.7} parent=1 // pred_fallthru
      _
    // Predicated region
    $region14: #{run.7} parent=1 // pred_check
      _
    $region15: #{run.7} parent=1 // pred_check_branch
      %39 = sbr.rel (0) target = $region17
    $region16: #{run.7} parent=1 // pred_region
      %s41 = ssub.s32 128, 128
      %42 = vsyncadd [#allocation5], %s41
      %s44 = sshll.u32 [#allocation6], 4
      %s45 = int_to_ptr.vmem [resolvable:$true] %s44
      %47 = dma.hbm_to_vmem [thread:$0]  %s3, 128, %s45, [#allocation5]
    $region17: #{run.7} parent=1 // pred_fallthru
      _
    // Predicated region
    $region18: #{run.7} parent=1 // pred_check
      _
    $region19: #{run.7} parent=1 // pred_check_branch
      %49 = sbr.rel (0) target = $region21
    $region20: #{run.7} parent=1 // pred_region
      %s51 = ssub.s32 128, 128
      %52 = vsyncadd [#allocation8], %s51
      %s54 = sshll.u32 [#allocation7], 4
      %s55 = int_to_ptr.vmem [resolvable:$true] %s54
      %57 = dma.hbm_to_vmem [thread:$0]  %s4, 128, %s55, [#allocation8]
    $region21: #{run.7} parent=1 // pred_fallthru
      _
    // Predicated region
    $region22: #{run.7} parent=1 // pred_check
      _
    $region23: #{run.7} parent=1 // pred_check_branch
      %59 = sbr.rel (0) target = $region25
    $region24: #{run.7} parent=1 // pred_region
      %s61 = ssub.s32 128, 128
      %62 = vsyncadd [#allocation8], %s61
      %s64 = sshll.u32 [#allocation9], 4
      %s65 = int_to_ptr.vmem [resolvable:$true] %s64
      %67 = dma.hbm_to_vmem [thread:$0]  %s5, 128, %s65, [#allocation8]
    $region25: #{run.7} parent=1 // pred_fallthru
      _
    // Predicated region
    $region26: #{run.7} parent=1 // pred_check
      _
    $region27: #{run.7} parent=1 // pred_check_branch
      %69 = sbr.rel (0) target = $region29
    $region28: #{run.7} parent=1 // pred_region
      %s71 = ssub.s32 128, 128
      %72 = vsyncadd [#allocation11], %s71
      %s74 = sshll.u32 [#allocation10], 4
      %s75 = int_to_ptr.vmem [resolvable:$true] %s74
      %77 = dma.hbm_to_vmem [thread:$0]  %s6, 128, %s75, [#allocation11]
    $region29: #{run.7} parent=1 // pred_fallthru
      _
    // Predicated region
    $region30: #{run.7} parent=1 // pred_check
      _
    $region31: #{run.7} parent=1 // pred_check_branch
      %79 = sbr.rel (0) target = $region33
    $region32: #{run.7} parent=1 // pred_region
      %80 = dma.done [#allocation3], 128
    $region33: #{run.7} parent=1 // pred_fallthru
      _
    // Predicated region
    $region34: #{run.7} parent=1 // pred_check
      _
    $region35: #{run.7} parent=1 // pred_check_branch
      %82 = sbr.rel (0) target = $region37
    $region36: #{run.7} parent=1 // pred_region
      %83 = dma.done [#allocation5], 128
    $region37: #{run.7} parent=1 // pred_fallthru
      _
    // Predicated region
    $region38: #{run.7} parent=1 // pred_check
      _
    $region39: #{run.7} parent=1 // pred_check_branch
      %85 = sbr.rel (0) target = $region41
    $region40: #{run.7} parent=1 // pred_region
      %86 = dma.done [#allocation5], 128
    $region41: #{run.7} parent=1 // pred_fallthru
      _
    // Predicated region
    $region42: #{run.7} parent=1 // pred_check
      _
    $region43: #{run.7} parent=1 // pred_check_branch
      %88 = sbr.rel (0) target = $region45
    $region44: #{run.7} parent=1 // pred_region
      %89 = dma.done [#allocation8], 128
    $region45: #{run.7} parent=1 // pred_fallthru
      _
    // Predicated region
    $region46: #{run.7} parent=1 // pred_check
      _
    $region47: #{run.7} parent=1 // pred_check_branch
      %91 = sbr.rel (0) target = $region49
    $region48: #{run.7} parent=1 // pred_region
      %92 = dma.done [#allocation8], 128
    $region49: #{run.7} parent=1 // pred_fallthru
      _
    // Predicated region
    $region50: #{run.7} parent=1 // pred_check
      _
    $region51: #{run.7} parent=1 // pred_check_branch
      %94 = sbr.rel (0) target = $region53
    $region52: #{run.7} parent=1 // pred_region
      %95 = dma.done [#allocation11], 128
    $region53: #{run.7} parent=1 // pred_fallthru
      _
    %v96 = vld [vmem:[%s0] sm:$0xff]
    %v97 = vld [vmem:[#allocation2] sm:$0xff]
    %99 = vrot.lane.b32.xlu0 %v96, 1
    %v100 = vpop.permute.xlu0 %99
    %102 = vrot.lane.b32.xlu0 %v96, 3
    %v103 = vpop.permute.xlu0 %102
    %vm105 = vcmask 7168
    %v106 = vsel %vm105, 0.0, %v100
    %vm107 = vcmask 269312
    %v108 = vsel %vm107, %v106, 0.0
    %vm109 = vcmask 277504
    %v110 = vsel %vm109, %v108, 0.0
    %vm111 = vcmask 285696
    %v112 = vsel %vm111, %v110, %v103
    %vm113 = vcmask 547840
    %v114 = vsel %vm113, %v112, 0.0
    %116 = vrot.lane.b32.xlu0 %v114, 126
    %v117 = vpop.permute.xlu0 %116
    %vm119 = vcmask 261120
    %v120 = vsel %vm119, %v114, %v117
    %121 = vrot.lane.b32.xlu0 %v114, 127
    %v122 = vpop.permute.xlu0 %121
    %124 = vrot.lane.b32.xlu0 %v114, 125
    %v125 = vpop.permute.xlu0 %124
    %v127 = vsel %vm119, %v122, %v125
    %128 = vrot.lane.b32.xlu0 %v114, 124
    %v129 = vpop.permute.xlu0 %128
    %v131 = vsel %vm119, %v117, %v129
    %vm132 = vcmask 195584
    %v134 = vsel %vm132, %v97, 0
    %136 = vmatprep.subr.mxu0 0.0
    %137 = vmatpush1.msra.mxu0 %v120
    %138 = vmatprep.subr.mxu0 0.0
    %139 = vmatpush1.msra.mxu0 %v127
    %140 = vmatprep.subr.mxu0 0.0
    %141 = vmatpush1.msra.mxu0 %v131
    %142 = vmatprep.subr.mxu0 0.0
    %143 = vmatpush1.msra.mxu0 0.0
    %144 = vmatprep.subr.mxu0 0.0
    %145 = vmatpush1.msra.mxu0 0.0
    %146 = vmatprep.subr.mxu0 0.0
    %147 = vmatpush1.msra.mxu0 0.0
    %148 = vmatprep.subr.mxu0 0.0
    %149 = vmatpush1.msra.mxu0 0.0
    %150 = vmatprep.subr.mxu0 0.0
    %151 = vmatpush1.msra.mxu0 0.0
    %152 = vmatprep.subr.mxu0 0.0
    %153 = vmatpush1.msra.mxu0 0.0
    %154 = vmatprep.subr.mxu0 0.0
    %155 = vmatpush1.msra.mxu0 0.0
    %156 = vmatprep.subr.mxu0 0.0
    %157 = vmatpush1.msra.mxu0 0.0
    %158 = vmatprep.subr.mxu0 0.0
    %159 = vmatpush1.msra.mxu0 0.0
    %160 = vmatprep.subr.mxu0 0.0
    %161 = vmatpush1.msra.mxu0 0.0
    %162 = vmatprep.subr.mxu0 0.0
    %163 = vmatpush1.msra.mxu0 0.0
    %164 = vmatprep.subr.mxu0 0.0
    %165 = vmatpush1.msra.mxu0 0.0
    %166 = vmatprep.subr.mxu0 0.0
    %167 = vmatpush1.msra.mxu0 0.0
    %168 = vmatprep.subr.mxu0 0.0
    %169 = vmatpush1.msra.mxu0 0.0
    %170 = vmatprep.subr.mxu0 0.0
    %171 = vmatpush1.msra.mxu0 0.0
    %172 = vmatprep.subr.mxu0 0.0
    %173 = vmatpush1.msra.mxu0 0.0
    %174 = vmatprep.subr.mxu0 0.0
    %175 = vmatpush1.msra.mxu0 0.0
    %176 = vmatprep.subr.mxu0 0.0
    %177 = vmatpush1.msra.mxu0 0.0
    %178 = vmatprep.subr.mxu0 0.0
    %179 = vmatpush1.msra.mxu0 0.0
    %180 = vmatprep.subr.mxu0 0.0
    %181 = vmatpush1.msra.mxu0 0.0
    %182 = vmatprep.subr.mxu0 0.0
    %183 = vmatpush1.msra.mxu0 0.0
    %184 = vmatprep.subr.mxu0 0.0
    %185 = vmatpush1.msra.mxu0 0.0
    %186 = vmatprep.subr.mxu0 0.0
    %187 = vmatpush1.msra.mxu0 0.0
    %188 = vmatprep.subr.mxu0 0.0
    %189 = vmatpush1.msra.mxu0 0.0
    %190 = vmatprep.subr.mxu0 0.0
    %191 = vmatpush1.msra.mxu0 0.0
    %192 = vmatprep.subr.mxu0 0.0
    %193 = vmatpush1.msra.mxu0 0.0
    %194 = vmatprep.subr.mxu0 0.0
    %195 = vmatpush1.msra.mxu0 0.0
    %196 = vmatprep.subr.mxu0 0.0
    %197 = vmatpush1.msra.mxu0 0.0
    %198 = vmatprep.subr.mxu0 0.0
    %199 = vmatpush1.msra.mxu0 0.0
    %200 = vmatprep.mubr.f32.mxu0 0.0
    %201 = vmatmul.mubr.f32.gmra.mrb[0].mxu0 %v134
    %v202 = vpop.f32.mrb[0].mxu0
    %v203 = vadd.f32 0.0, %v202
    %v204 = vpop.f32.mrb[0].mxu0
    %205 = vdwg.mxu0
    %v206 = vld [vmem:[#allocation4] sm:$0xff]
    %208 = vset.pattern.permute.xlu0 0
    %209 = vperm.xlu0 %208, %v206
    %v210 = vpop.permute.xlu0 %209
    %v212 = vmul.f32 %v203, %v210
    %v213 = vld [vmem:[#allocation6] sm:$0xff]
    %215 = vset.pattern.permute.xlu0 0
    %216 = vperm.xlu0 %215, %v213
    %v217 = vpop.permute.xlu0 %216
    %v219 = vadd.f32 %v212, %v217
    %v220 = vmax.f32 %v219, 0.0
    %v221 = vld [vmem:[#allocation7] sm:$0xff]
    %223 = vrot.lane.b32.xlu0 %v220, 1
    %v224 = vpop.permute.xlu0 %223
    %226 = vrot.lane.b32.xlu0 %v220, 3
    %v227 = vpop.permute.xlu0 %226
    %v229 = vsel %vm105, 0.0, %v224
    %v230 = vsel %vm107, %v229, 0.0
    %v231 = vsel %vm109, %v230, 0.0
    %v232 = vsel %vm111, %v231, %v227
    %v233 = vsel %vm113, %v232, 0.0
    %235 = vrot.lane.b32.xlu0 %v233, 126
    %v236 = vpop.permute.xlu0 %235
    %v238 = vsel %vm119, %v233, %v236
    %239 = vrot.lane.b32.xlu0 %v233, 127
    %v240 = vpop.permute.xlu0 %239
    %242 = vrot.lane.b32.xlu0 %v233, 125
    %v243 = vpop.permute.xlu0 %242
    %v245 = vsel %vm119, %v240, %v243
    %246 = vrot.lane.b32.xlu0 %v233, 124
    %v247 = vpop.permute.xlu0 %246
    %v249 = vsel %vm119, %v236, %v247
    %v251 = vsel %vm132, %v221, 0
    %253 = vmatprep.subr.mxu0 0.0
    %254 = vmatpush1.msra.mxu0 %v238
    %255 = vmatprep.subr.mxu0 0.0
    %256 = vmatpush1.msra.mxu0 %v245
    %257 = vmatprep.subr.mxu0 0.0
    %258 = vmatpush1.msra.mxu0 %v249
    %259 = vmatprep.subr.mxu0 0.0
    %260 = vmatpush1.msra.mxu0 0.0
    %261 = vmatprep.subr.mxu0 0.0
    %262 = vmatpush1.msra.mxu0 0.0
    %263 = vmatprep.subr.mxu0 0.0
    %264 = vmatpush1.msra.mxu0 0.0
    %265 = vmatprep.subr.mxu0 0.0
    %266 = vmatpush1.msra.mxu0 0.0
    %267 = vmatprep.subr.mxu0 0.0
    %268 = vmatpush1.msra.mxu0 0.0
    %269 = vmatprep.subr.mxu0 0.0
    %270 = vmatpush1.msra.mxu0 0.0
    %271 = vmatprep.subr.mxu0 0.0
    %272 = vmatpush1.msra.mxu0 0.0
    %273 = vmatprep.subr.mxu0 0.0
    %274 = vmatpush1.msra.mxu0 0.0
    %275 = vmatprep.subr.mxu0 0.0
    %276 = vmatpush1.msra.mxu0 0.0
    %277 = vmatprep.subr.mxu0 0.0
    %278 = vmatpush1.msra.mxu0 0.0
    %279 = vmatprep.subr.mxu0 0.0
    %280 = vmatpush1.msra.mxu0 0.0
    %281 = vmatprep.subr.mxu0 0.0
    %282 = vmatpush1.msra.mxu0 0.0
    %283 = vmatprep.subr.mxu0 0.0
    %284 = vmatpush1.msra.mxu0 0.0
    %285 = vmatprep.subr.mxu0 0.0
    %286 = vmatpush1.msra.mxu0 0.0
    %287 = vmatprep.subr.mxu0 0.0
    %288 = vmatpush1.msra.mxu0 0.0
    %289 = vmatprep.subr.mxu0 0.0
    %290 = vmatpush1.msra.mxu0 0.0
    %291 = vmatprep.subr.mxu0 0.0
    %292 = vmatpush1.msra.mxu0 0.0
    %293 = vmatprep.subr.mxu0 0.0
    %294 = vmatpush1.msra.mxu0 0.0
    %295 = vmatprep.subr.mxu0 0.0
    %296 = vmatpush1.msra.mxu0 0.0
    %297 = vmatprep.subr.mxu0 0.0
    %298 = vmatpush1.msra.mxu0 0.0
    %299 = vmatprep.subr.mxu0 0.0
    %300 = vmatpush1.msra.mxu0 0.0
    %301 = vmatprep.subr.mxu0 0.0
    %302 = vmatpush1.msra.mxu0 0.0
    %303 = vmatprep.subr.mxu0 0.0
    %304 = vmatpush1.msra.mxu0 0.0
    %305 = vmatprep.subr.mxu0 0.0
    %306 = vmatpush1.msra.mxu0 0.0
    %307 = vmatprep.subr.mxu0 0.0
    %308 = vmatpush1.msra.mxu0 0.0
    %309 = vmatprep.subr.mxu0 0.0
    %310 = vmatpush1.msra.mxu0 0.0
    %311 = vmatprep.subr.mxu0 0.0
    %312 = vmatpush1.msra.mxu0 0.0
    %313 = vmatprep.subr.mxu0 0.0
    %314 = vmatpush1.msra.mxu0 0.0
    %315 = vmatprep.subr.mxu0 0.0
    %316 = vmatpush1.msra.mxu0 0.0
    %317 = vmatprep.mubr.f32.mxu0 0.0
    %318 = vmatmul.mubr.f32.gmra.mrb[0].mxu0 %v251
    %v319 = vpop.f32.mrb[0].mxu0
    %v320 = vadd.f32 0.0, %v319
    %v321 = vpop.f32.mrb[0].mxu0
    %322 = vdwg.mxu0
    %v323 = vld [vmem:[#allocation9] sm:$0xff]
    %325 = vset.pattern.permute.xlu0 0
    %326 = vperm.xlu0 %325, %v323
    %v327 = vpop.permute.xlu0 %326
    %v329 = vmul.f32 %v320, %v327
    %v330 = vld [vmem:[#allocation10] sm:$0xff]
    %332 = vset.pattern.permute.xlu0 0
    %333 = vperm.xlu0 %332, %v330
    %v334 = vpop.permute.xlu0 %333
    %v336 = vadd.f32 %v329, %v334
    %v337 = vadd.f32 %v336, %v96
    %v338 = vmax.f32 %v337, 0.0
    %vm339 = vcmask 523264
    %340 = vst.msk [vmem:[%s7] sm:$0xff] %vm339, %v338
    // Predicated region
    $region54: #{run.7} parent=1 // pred_check
      _
    $region55: #{run.7} parent=1 // pred_check_branch
      %342 = sbr.rel (0) target = $region57
    $region56: #{run.7} parent=1 // pred_region
      _
    $region57: #{run.7} parent=1 // pred_fallthru
      _
    // Predicated region
    $region58: #{run.7} parent=1 // pred_check
      _
    $region59: #{run.7} parent=1 // pred_check_branch
      %344 = sbr.rel (0) target = $region61
    $region60: #{run.7} parent=1 // pred_region
      _
    $region61: #{run.7} parent=1 // pred_fallthru
      _
    %345 = vsyncpa [#allocation3], 1
    %346 = vsyncpa [#allocation5], 1
    %347 = vsyncpa [#allocation8], 1
    %348 = vsyncpa [#allocation11], 1

// kernel: run.8
$region0: #{run.8}
  #allocation0 [shape = 'u32[]', space=smem, size = 0x4, offset = 0x4, fixed_abs, tag = 'smem constant byte address 0x4 - core index']
  #allocation1 [shape = 'u32[144,128]{1,0:T(1,128)}', space=vmem, size = 0x12000, scoped, tag = 'internal scratch']
  %s0 = inlined_call_operand.vmem [shape: f32[8,64], index: 0, kind: input, shape index: {}]
  %s1 = inlined_call_operand.hbm [shape: f32[16,24], index: 1, kind: input, shape index: {}]
  %s2 = inlined_call_operand.hbm [shape: f32[16,1], index: 2, kind: input, shape index: {}]
  %s3 = inlined_call_operand.hbm [shape: f32[16,1], index: 3, kind: input, shape index: {}]
  %s4 = inlined_call_operand.hbm [shape: f32[16,48], index: 4, kind: input, shape index: {}]
  %s5 = inlined_call_operand.hbm [shape: f32[16,1], index: 5, kind: input, shape index: {}]
  %s6 = inlined_call_operand.hbm [shape: f32[16,1], index: 6, kind: input, shape index: {}]
  %s7 = inlined_call_operand.vmem [shape: f32[16,8], index: 7, kind: input, shape index: {}]
  %s8 = inlined_call_operand.vmem [shape: f32[16,1], index: 8, kind: input, shape index: {}]
  %s9 = inlined_call_operand.vmem [shape: f32[16,1], index: 9, kind: input, shape index: {}]
  %s10 = inlined_call_operand.vmem [shape: f32[16,32], index: 10, kind: output, shape index: {}]
  %s11 = sld [smem:[#allocation0]]
  $region74: #{run.8} parent=0
    _
  %s13 = ssub.s32 1, %s11
  %s14 = scalar_select 0, %s13, %s11
  $region1: #{run.8} parent=0
    #allocation2 [shape = 'u8[8192]{0}', space=vmem, size = 0x2000, scoped, tag = 'input window, operand 1, single buffered']
    #allocation3 [shape = 's32[1]{0}', space=sflag, size = 0x4, scoped, tag = 'scoped memory for run.8']
    #allocation4 [shape = 'u8[8192]{0}', space=vmem, size = 0x2000, scoped, tag = 'input window, operand 2, single buffered']
    #allocation5 [shape = 's32[1]{0}', space=sflag, size = 0x4, scoped, tag = 'scoped memory for run.8']
    #allocation6 [shape = 'u8[8192]{0}', space=vmem, size = 0x2000, scoped, tag = 'input window, operand 3, single buffered']
    #allocation7 [shape = 'u8[8192]{0}', space=vmem, size = 0x2000, scoped, tag = 'input window, operand 4, single buffered']
    #allocation8 [shape = 's32[1]{0}', space=sflag, size = 0x4, scoped, tag = 'scoped memory for run.8']
    #allocation9 [shape = 'u8[8192]{0}', space=vmem, size = 0x2000, scoped, tag = 'input window, operand 5, single buffered']
    #allocation10 [shape = 'u8[8192]{0}', space=vmem, size = 0x2000, scoped, tag = 'input window, operand 6, single buffered']
    #allocation11 [shape = 's32[1]{0}', space=sflag, size = 0x4, scoped, tag = 'scoped memory for run.8']
    %15 = vsyncpa [#allocation3], 0
    %16 = vsyncpa [#allocation5], 0
    %17 = vsyncpa [#allocation8], 0
    %18 = vsyncpa [#allocation11], 0
    // Predicated region
    $region2: #{run.8} parent=1 // pred_check
      _
    $region3: #{run.8} parent=1 // pred_check_branch
      %20 = sbr.rel (0) target = $region5
    $region4: #{run.8} parent=1 // pred_region
      _
    $region5: #{run.8} parent=1 // pred_fallthru
      _
    // Predicated region
    $region6: #{run.8} parent=1 // pred_check
      _
    $region7: #{run.8} parent=1 // pred_check_branch
      %22 = sbr.rel (0) target = $region9
    $region8: #{run.8} parent=1 // pred_region
      %s24 = ssub.s32 256, 256
      %25 = vsyncadd [#allocation3], %s24
      %s26 = sshll.u32 [#allocation2], 4
      %s27 = int_to_ptr.vmem [resolvable:$true] %s26
      %32 = dma.hbm_to_vmem [thread:$0]  %s1, 256, %s27, [#allocation3], 128, 128, 8
    $region9: #{run.8} parent=1 // pred_fallthru
      _
    // Predicated region
    $region10: #{run.8} parent=1 // pred_check
      _
    $region11: #{run.8} parent=1 // pred_check_branch
      %34 = sbr.rel (0) target = $region13
    $region12: #{run.8} parent=1 // pred_region
      %s36 = ssub.s32 256, 256
      %37 = vsyncadd [#allocation5], %s36
      %s38 = sshll.u32 [#allocation4], 4
      %s39 = int_to_ptr.vmem [resolvable:$true] %s38
      %44 = dma.hbm_to_vmem [thread:$0]  %s2, 256, %s39, [#allocation5], 128, 128, 8
    $region13: #{run.8} parent=1 // pred_fallthru
      _
    // Predicated region
    $region14: #{run.8} parent=1 // pred_check
      _
    $region15: #{run.8} parent=1 // pred_check_branch
      %46 = sbr.rel (0) target = $region17
    $region16: #{run.8} parent=1 // pred_region
      %s48 = ssub.s32 256, 256
      %49 = vsyncadd [#allocation5], %s48
      %s50 = sshll.u32 [#allocation6], 4
      %s51 = int_to_ptr.vmem [resolvable:$true] %s50
      %56 = dma.hbm_to_vmem [thread:$0]  %s3, 256, %s51, [#allocation5], 128, 128, 8
    $region17: #{run.8} parent=1 // pred_fallthru
      _
    // Predicated region
    $region18: #{run.8} parent=1 // pred_check
      _
    $region19: #{run.8} parent=1 // pred_check_branch
      %58 = sbr.rel (0) target = $region21
    $region20: #{run.8} parent=1 // pred_region
      %s60 = ssub.s32 256, 256
      %61 = vsyncadd [#allocation8], %s60
      %s62 = sshll.u32 [#allocation7], 4
      %s63 = int_to_ptr.vmem [resolvable:$true] %s62
      %68 = dma.hbm_to_vmem [thread:$0]  %s4, 256, %s63, [#allocation8], 128, 128, 8
    $region21: #{run.8} parent=1 // pred_fallthru
      _
    // Predicated region
    $region22: #{run.8} parent=1 // pred_check
      _
    $region23: #{run.8} parent=1 // pred_check_branch
      %70 = sbr.rel (0) target = $region25
    $region24: #{run.8} parent=1 // pred_region
      %s72 = ssub.s32 256, 256
      %73 = vsyncadd [#allocation8], %s72
      %s74 = sshll.u32 [#allocation9], 4
      %s75 = int_to_ptr.vmem [resolvable:$true] %s74
      %80 = dma.hbm_to_vmem [thread:$0]  %s5, 256, %s75, [#allocation8], 128, 128, 8
    $region25: #{run.8} parent=1 // pred_fallthru
      _
    // Predicated region
    $region26: #{run.8} parent=1 // pred_check
      _
    $region27: #{run.8} parent=1 // pred_check_branch
      %82 = sbr.rel (0) target = $region29
    $region28: #{run.8} parent=1 // pred_region
      %s84 = ssub.s32 256, 256
      %85 = vsyncadd [#allocation11], %s84
      %s86 = sshll.u32 [#allocation10], 4
      %s87 = int_to_ptr.vmem [resolvable:$true] %s86
      %92 = dma.hbm_to_vmem [thread:$0]  %s6, 256, %s87, [#allocation11], 128, 128, 8
    $region29: #{run.8} parent=1 // pred_fallthru
      _
    // Predicated region
    $region30: #{run.8} parent=1 // pred_check
      _
    $region31: #{run.8} parent=1 // pred_check_branch
      %94 = sbr.rel (0) target = $region33
    $region32: #{run.8} parent=1 // pred_region
      _
    $region33: #{run.8} parent=1 // pred_fallthru
      _
    // Predicated region
    $region34: #{run.8} parent=1 // pred_check
      _
    $region35: #{run.8} parent=1 // pred_check_branch
      %96 = sbr.rel (0) target = $region37
    $region36: #{run.8} parent=1 // pred_region
      _
    $region37: #{run.8} parent=1 // pred_fallthru
      _
    // Predicated region
    $region38: #{run.8} parent=1 // pred_check
      _
    $region39: #{run.8} parent=1 // pred_check_branch
      %98 = sbr.rel (0) target = $region41
    $region40: #{run.8} parent=1 // pred_region
      _
    $region41: #{run.8} parent=1 // pred_fallthru
      _
    // Predicated region
    $region42: #{run.8} parent=1 // pred_check
      _
    $region43: #{run.8} parent=1 // pred_check_branch
      %100 = sbr.rel (0) target = $region45
    $region44: #{run.8} parent=1 // pred_region
      %101 = dma.done [#allocation3], 256
    $region45: #{run.8} parent=1 // pred_fallthru
      _
    // Predicated region
    $region46: #{run.8} parent=1 // pred_check
      _
    $region47: #{run.8} parent=1 // pred_check_branch
      %103 = sbr.rel (0) target = $region49
    $region48: #{run.8} parent=1 // pred_region
      %104 = dma.done [#allocation5], 256
    $region49: #{run.8} parent=1 // pred_fallthru
      _
    // Predicated region
    $region50: #{run.8} parent=1 // pred_check
      _
    $region51: #{run.8} parent=1 // pred_check_branch
      %106 = sbr.rel (0) target = $region53
    $region52: #{run.8} parent=1 // pred_region
      %107 = dma.done [#allocation5], 256
    $region53: #{run.8} parent=1 // pred_fallthru
      _
    // Predicated region
    $region54: #{run.8} parent=1 // pred_check
      _
    $region55: #{run.8} parent=1 // pred_check_branch
      %109 = sbr.rel (0) target = $region57
    $region56: #{run.8} parent=1 // pred_region
      %110 = dma.done [#allocation8], 256
    $region57: #{run.8} parent=1 // pred_fallthru
      _
    // Predicated region
    $region58: #{run.8} parent=1 // pred_check
      _
    $region59: #{run.8} parent=1 // pred_check_branch
      %112 = sbr.rel (0) target = $region61
    $region60: #{run.8} parent=1 // pred_region
      %113 = dma.done [#allocation8], 256
    $region61: #{run.8} parent=1 // pred_fallthru
      _
    // Predicated region
    $region62: #{run.8} parent=1 // pred_check
      _
    $region63: #{run.8} parent=1 // pred_check_branch
      %115 = sbr.rel (0) target = $region65
    $region64: #{run.8} parent=1 // pred_region
      %116 = dma.done [#allocation11], 256
    $region65: #{run.8} parent=1 // pred_fallthru
      _
    %v117 = vld [vmem:[%s0] sm:$0xff]
    %v118 = vld [vmem:[#allocation2] sm:$0xff]
    %v119 = vld [vmem:[#allocation2 + $0x8] sm:$0xff]
    %121 = vrot.lane.b32.xlu0 %v117, 1
    %v122 = vpop.permute.xlu0 %121
    %124 = vrot.lane.b32.xlu0 %v117, 3
    %v125 = vpop.permute.xlu0 %124
    %vm127 = vcmask 7168
    %v128 = vsel %vm127, 0.0, %v122
    %vm129 = vcmask 269312
    %v130 = vsel %vm129, %v128, 0.0
    %vm131 = vcmask 277504
    %v132 = vsel %vm131, %v130, 0.0
    %vm133 = vcmask 285696
    %v134 = vsel %vm133, %v132, %v125
    %vm135 = vcmask 547840
    %v136 = vsel %vm135, %v134, 0.0
    %138 = vrot.lane.b32.xlu0 %v136, 126
    %v139 = vpop.permute.xlu0 %138
    %vm141 = vcmask 261120
    %v142 = vsel %vm141, %v136, %v139
    %143 = vrot.lane.b32.xlu0 %v136, 127
    %v144 = vpop.permute.xlu0 %143
    %146 = vrot.lane.b32.xlu0 %v136, 125
    %v147 = vpop.permute.xlu0 %146
    %v149 = vsel %vm141, %v144, %v147
    %150 = vrot.lane.b32.xlu0 %v136, 124
    %v151 = vpop.permute.xlu0 %150
    %v153 = vsel %vm141, %v139, %v151
    %vm154 = vcmask 195584
    %v156 = vsel %vm154, %v118, 0
    %v159 = vsel %vm154, %v119, 0
    %161 = vmatprep.subr.mxu0 0.0
    %162 = vmatpush1.msra.mxu0 %v142
    %163 = vmatprep.subr.mxu0 0.0
    %164 = vmatpush1.msra.mxu0 %v149
    %165 = vmatprep.subr.mxu0 0.0
    %166 = vmatpush1.msra.mxu0 %v153
    %167 = vmatprep.subr.mxu0 0.0
    %168 = vmatpush1.msra.mxu0 0.0
    %169 = vmatprep.subr.mxu0 0.0
    %170 = vmatpush1.msra.mxu0 0.0
    %171 = vmatprep.subr.mxu0 0.0
    %172 = vmatpush1.msra.mxu0 0.0
    %173 = vmatprep.subr.mxu0 0.0
    %174 = vmatpush1.msra.mxu0 0.0
    %175 = vmatprep.subr.mxu0 0.0
    %176 = vmatpush1.msra.mxu0 0.0
    %177 = vmatprep.subr.mxu0 0.0
    %178 = vmatpush1.msra.mxu0 0.0
    %179 = vmatprep.subr.mxu0 0.0
    %180 = vmatpush1.msra.mxu0 0.0
    %181 = vmatprep.subr.mxu0 0.0
    %182 = vmatpush1.msra.mxu0 0.0
    %183 = vmatprep.subr.mxu0 0.0
    %184 = vmatpush1.msra.mxu0 0.0
    %185 = vmatprep.subr.mxu0 0.0
    %186 = vmatpush1.msra.mxu0 0.0
    %187 = vmatprep.subr.mxu0 0.0
    %188 = vmatpush1.msra.mxu0 0.0
    %189 = vmatprep.subr.mxu0 0.0
    %190 = vmatpush1.msra.mxu0 0.0
    %191 = vmatprep.subr.mxu0 0.0
    %192 = vmatpush1.msra.mxu0 0.0
    %193 = vmatprep.subr.mxu0 0.0
    %194 = vmatpush1.msra.mxu0 0.0
    %195 = vmatprep.subr.mxu0 0.0
    %196 = vmatpush1.msra.mxu0 0.0
    %197 = vmatprep.subr.mxu0 0.0
    %198 = vmatpush1.msra.mxu0 0.0
    %199 = vmatprep.subr.mxu0 0.0
    %200 = vmatpush1.msra.mxu0 0.0
    %201 = vmatprep.subr.mxu0 0.0
    %202 = vmatpush1.msra.mxu0 0.0
    %203 = vmatprep.subr.mxu0 0.0
    %204 = vmatpush1.msra.mxu0 0.0
    %205 = vmatprep.subr.mxu0 0.0
    %206 = vmatpush1.msra.mxu0 0.0
    %207 = vmatprep.subr.mxu0 0.0
    %208 = vmatpush1.msra.mxu0 0.0
    %209 = vmatprep.subr.mxu0 0.0
    %210 = vmatpush1.msra.mxu0 0.0
    %211 = vmatprep.subr.mxu0 0.0
    %212 = vmatpush1.msra.mxu0 0.0
    %213 = vmatprep.subr.mxu0 0.0
    %214 = vmatpush1.msra.mxu0 0.0
    %215 = vmatprep.subr.mxu0 0.0
    %216 = vmatpush1.msra.mxu0 0.0
    %217 = vmatprep.subr.mxu0 0.0
    %218 = vmatpush1.msra.mxu0 0.0
    %219 = vmatprep.subr.mxu0 0.0
    %220 = vmatpush1.msra.mxu0 0.0
    %221 = vmatprep.subr.mxu0 0.0
    %222 = vmatpush1.msra.mxu0 0.0
    %223 = vmatprep.subr.mxu0 0.0
    %224 = vmatpush1.msra.mxu0 0.0
    %225 = vmatprep.mubr.f32.mxu0 0.0
    %226 = vmatmul.mubr.f32.gmra.mrb[0].mxu0 %v156
    %v227 = vpop.f32.mrb[0].mxu0
    %v228 = vadd.f32 0.0, %v227
    %v229 = vpop.f32.mrb[0].mxu0
    %230 = vmatprep.mubr.f32.mxu0 0.0
    %231 = vmatmul.mubr.f32.gmra.mrb[0].mxu0 %v159
    %v232 = vpop.f32.mrb[0].mxu0
    %v233 = vadd.f32 0.0, %v232
    %v234 = vpop.f32.mrb[0].mxu0
    %235 = vdwg.mxu0
    %v236 = vlaneseq
    %v237 = vshrl.u32 %v236, 7
    %v238 = vadd.s32 %v237, 8
    %v239 = vadd.s32 %v237, 16
    %v240 = vadd.s32 %v237, 24
    %v241 = vadd.s32 %v237, 32
    %v242 = vadd.s32 %v237, 40
    %v243 = vadd.s32 %v237, 48
    %v244 = vadd.s32 %v237, 56
    %v245 = vlaneseq
    %v246 = vand.u32 %v245, 127
    %v247 = vmul.u32 %v246, 2
    %vm248 = vcmp.eq.s32.totalorder %v237, %v247
    %vm249 = vcmp.eq.s32.totalorder %v238, %v247
    %vm250 = vcmp.eq.s32.totalorder %v239, %v247
    %vm251 = vcmp.eq.s32.totalorder %v240, %v247
    %vm252 = vcmp.eq.s32.totalorder %v241, %v247
    %vm253 = vcmp.eq.s32.totalorder %v242, %v247
    %vm254 = vcmp.eq.s32.totalorder %v243, %v247
    %vm255 = vcmp.eq.s32.totalorder %v244, %v247
    %v256 = vsel %vm248, 1, 0
    %v257 = vsel %vm249, 1, 0
    %v258 = vsel %vm250, 1, 0
    %v259 = vsel %vm251, 1, 0
    %v260 = vsel %vm252, 1, 0
    %v261 = vsel %vm253, 1, 0
    %v262 = vsel %vm254, 1, 0
    %v263 = vsel %vm255, 1, 0
    %v264 = vcvt.s32.f32 %v256
    %v265 = vcvt.s32.f32 %v257
    %v266 = vcvt.s32.f32 %v258
    %v267 = vcvt.s32.f32 %v259
    %v268 = vcvt.s32.f32 %v260
    %v269 = vcvt.s32.f32 %v261
    %v270 = vcvt.s32.f32 %v262
    %v271 = vcvt.s32.f32 %v263
    %vm272 = vcmask 523264
    %v274 = vsel %vm272, %v228, 0
    %v277 = vsel %vm272, %v233, 0
    %279 = vmatprep.subr.mxu0 0.0
    %280 = vmatpush1.msra.mxu0 %v264
    %281 = vmatprep.subr.mxu0 0.0
    %282 = vmatpush1.msra.mxu0 %v265
    %283 = vmatprep.subr.mxu0 0.0
    %284 = vmatpush1.msra.mxu0 %v266
    %285 = vmatprep.subr.mxu0 0.0
    %286 = vmatpush1.msra.mxu0 %v267
    %287 = vmatprep.subr.mxu0 0.0
    %288 = vmatpush1.msra.mxu0 %v268
    %289 = vmatprep.subr.mxu0 0.0
    %290 = vmatpush1.msra.mxu0 %v269
    %291 = vmatprep.subr.mxu0 0.0
    %292 = vmatpush1.msra.mxu0 %v270
    %293 = vmatprep.subr.mxu0 0.0
    %294 = vmatpush1.msra.mxu0 %v271
    %295 = vmatprep.subr.mxu0 0.0
    %296 = vmatpush1.msra.mxu0 0.0
    %297 = vmatprep.subr.mxu0 0.0
    %298 = vmatpush1.msra.mxu0 0.0
    %299 = vmatprep.subr.mxu0 0.0
    %300 = vmatpush1.msra.mxu0 0.0
    %301 = vmatprep.subr.mxu0 0.0
    %302 = vmatpush1.msra.mxu0 0.0
    %303 = vmatprep.subr.mxu0 0.0
    %304 = vmatpush1.msra.mxu0 0.0
    %305 = vmatprep.subr.mxu0 0.0
    %306 = vmatpush1.msra.mxu0 0.0
    %307 = vmatprep.subr.mxu0 0.0
    %308 = vmatpush1.msra.mxu0 0.0
    %309 = vmatprep.subr.mxu0 0.0
    %310 = vmatpush1.msra.mxu0 0.0
    %311 = vmatprep.subr.mxu0 0.0
    %312 = vmatpush1.msra.mxu0 0.0
    %313 = vmatprep.subr.mxu0 0.0
    %314 = vmatpush1.msra.mxu0 0.0
    %315 = vmatprep.subr.mxu0 0.0
    %316 = vmatpush1.msra.mxu0 0.0
    %317 = vmatprep.subr.mxu0 0.0
    %318 = vmatpush1.msra.mxu0 0.0
    %319 = vmatprep.subr.mxu0 0.0
    %320 = vmatpush1.msra.mxu0 0.0
    %321 = vmatprep.subr.mxu0 0.0
    %322 = vmatpush1.msra.mxu0 0.0
    %323 = vmatprep.subr.mxu0 0.0
    %324 = vmatpush1.msra.mxu0 0.0
    %325 = vmatprep.subr.mxu0 0.0
    %326 = vmatpush1.msra.mxu0 0.0
    %327 = vmatprep.subr.mxu0 0.0
    %328 = vmatpush1.msra.mxu0 0.0
    %329 = vmatprep.subr.mxu0 0.0
    %330 = vmatpush1.msra.mxu0 0.0
    %331 = vmatprep.subr.mxu0 0.0
    %332 = vmatpush1.msra.mxu0 0.0
    %333 = vmatprep.subr.mxu0 0.0
    %334 = vmatpush1.msra.mxu0 0.0
    %335 = vmatprep.subr.mxu0 0.0
    %336 = vmatpush1.msra.mxu0 0.0
    %337 = vmatprep.subr.mxu0 0.0
    %338 = vmatpush1.msra.mxu0 0.0
    %339 = vmatprep.subr.mxu0 0.0
    %340 = vmatpush1.msra.mxu0 0.0
    %341 = vmatprep.subr.mxu0 0.0
    %342 = vmatpush1.msra.mxu0 0.0
    %343 = vmatprep.mubr.f32.mxu0 0.0
    %344 = vmatmul.mubr.f32.gmra.mrb[0].mxu0 %v274
    %v345 = vpop.f32.mrb[0].mxu0
    %v346 = vadd.f32 0.0, %v345
    %v347 = vpop.f32.mrb[0].mxu0
    %348 = vmatprep.mubr.f32.mxu0 0.0
    %349 = vmatmul.mubr.f32.gmra.mrb[0].mxu0 %v277
    %v350 = vpop.f32.mrb[0].mxu0
    %v351 = vadd.f32 0.0, %v350
    %v352 = vpop.f32.mrb[0].mxu0
    %353 = vdwg.mxu0
    %v354 = vld [vmem:[#allocation4] sm:$0xff]
    %v355 = vld [vmem:[#allocation4 + $0x8] sm:$0xff]
    %357 = vset.pattern.permute.xlu0 0
    %358 = vperm.xlu0 %357, %v354
    %v359 = vpop.permute.xlu0 %358
    %362 = vset.pattern.permute.xlu0 0
    %363 = vperm.xlu0 %362, %v355
    %v364 = vpop.permute.xlu0 %363
    %v366 = vmul.f32 %v346, %v359
    %v367 = vmul.f32 %v351, %v364
    %v368 = vld [vmem:[#allocation6] sm:$0xff]
    %v369 = vld [vmem:[#allocation6 + $0x8] sm:$0xff]
    %371 = vset.pattern.permute.xlu0 0
    %372 = vperm.xlu0 %371, %v368
    %v373 = vpop.permute.xlu0 %372
    %376 = vset.pattern.permute.xlu0 0
    %377 = vperm.xlu0 %376, %v369
    %v378 = vpop.permute.xlu0 %377
    %v380 = vadd.f32 %v366, %v373
    %v381 = vadd.f32 %v367, %v378
    %v382 = vmax.f32 %v380, 0.0
    %v383 = vmax.f32 %v381, 0.0
    %v384 = vld [vmem:[#allocation7] sm:$0xff]
    %v385 = vld [vmem:[#allocation7 + $0x8] sm:$0xff]
    %388 = vrot.lane.b32.xlu0 %v382, 1
    %v389 = vpop.permute.xlu0 %388
    %390 = vrot.lane.b32.xlu0 %v383, 1
    %v391 = vpop.permute.xlu0 %390
    %394 = vrot.lane.b32.xlu0 %v382, 3
    %v395 = vpop.permute.xlu0 %394
    %396 = vrot.lane.b32.xlu0 %v383, 3
    %v397 = vpop.permute.xlu0 %396
    %v400 = vsel %vm127, 0.0, %v389
    %v401 = vsel %vm127, 0.0, %v391
    %vm402 = vcmask 138240
    %v403 = vsel %vm402, %v400, 0.0
    %v404 = vsel %vm402, %v401, 0.0
    %vm405 = vcmask 146432
    %v406 = vsel %vm405, %v403, 0.0
    %v407 = vsel %vm405, %v404, 0.0
    %vm408 = vcmask 154624
    %v409 = vsel %vm408, %v406, %v395
    %v410 = vsel %vm408, %v407, %v397
    %v411 = vsel %vm133, %v409, 0.0
    %v412 = vsel %vm133, %v410, 0.0
    %415 = vrot.lane.b32.xlu0 %v411, 126
    %v416 = vpop.permute.xlu0 %415
    %417 = vrot.lane.b32.xlu0 %v412, 126
    %v418 = vpop.permute.xlu0 %417
    %vm421 = vcmask 130048
    %v422 = vsel %vm421, %v411, %v416
    %v423 = vsel %vm421, %v412, %v418
    %424 = vrot.lane.b32.xlu0 %v411, 127
    %v425 = vpop.permute.xlu0 %424
    %426 = vrot.lane.b32.xlu0 %v412, 127
    %v427 = vpop.permute.xlu0 %426
    %430 = vrot.lane.b32.xlu0 %v411, 125
    %v431 = vpop.permute.xlu0 %430
    %432 = vrot.lane.b32.xlu0 %v412, 125
    %v433 = vpop.permute.xlu0 %432
    %v436 = vsel %vm421, %v425, %v431
    %v437 = vsel %vm421, %v427, %v433
    %438 = vrot.lane.b32.xlu0 %v411, 124
    %v439 = vpop.permute.xlu0 %438
    %440 = vrot.lane.b32.xlu0 %v412, 124
    %v441 = vpop.permute.xlu0 %440
    %v444 = vsel %vm421, %v416, %v439
    %v445 = vsel %vm421, %v418, %v441
    %vm446 = vcmask 392192
    %v448 = vsel %vm446, %v384, 0
    %v451 = vsel %vm446, %v385, 0
    %453 = vmatprep.subr.mxu0 0.0
    %454 = vmatpush1.msra.mxu0 %v422
    %455 = vmatprep.subr.mxu0 0.0
    %456 = vmatpush1.msra.mxu0 %v423
    %457 = vmatprep.subr.mxu0 0.0
    %458 = vmatpush1.msra.mxu0 %v436
    %459 = vmatprep.subr.mxu0 0.0
    %460 = vmatpush1.msra.mxu0 %v437
    %461 = vmatprep.subr.mxu0 0.0
    %462 = vmatpush1.msra.mxu0 %v444
    %463 = vmatprep.subr.mxu0 0.0
    %464 = vmatpush1.msra.mxu0 %v445
    %465 = vmatprep.subr.mxu0 0.0
    %466 = vmatpush1.msra.mxu0 0.0
    %467 = vmatprep.subr.mxu0 0.0
    %468 = vmatpush1.msra.mxu0 0.0
    %469 = vmatprep.subr.mxu0 0.0
    %470 = vmatpush1.msra.mxu0 0.0
    %471 = vmatprep.subr.mxu0 0.0
    %472 = vmatpush1.msra.mxu0 0.0
    %473 = vmatprep.subr.mxu0 0.0
    %474 = vmatpush1.msra.mxu0 0.0
    %475 = vmatprep.subr.mxu0 0.0
    %476 = vmatpush1.msra.mxu0 0.0
    %477 = vmatprep.subr.mxu0 0.0
    %478 = vmatpush1.msra.mxu0 0.0
    %479 = vmatprep.subr.mxu0 0.0
    %480 = vmatpush1.msra.mxu0 0.0
    %481 = vmatprep.subr.mxu0 0.0
    %482 = vmatpush1.msra.mxu0 0.0
    %483 = vmatprep.subr.mxu0 0.0
    %484 = vmatpush1.msra.mxu0 0.0
    %485 = vmatprep.subr.mxu0 0.0
    %486 = vmatpush1.msra.mxu0 0.0
    %487 = vmatprep.subr.mxu0 0.0
    %488 = vmatpush1.msra.mxu0 0.0
    %489 = vmatprep.subr.mxu0 0.0
    %490 = vmatpush1.msra.mxu0 0.0
    %491 = vmatprep.subr.mxu0 0.0
    %492 = vmatpush1.msra.mxu0 0.0
    %493 = vmatprep.subr.mxu0 0.0
    %494 = vmatpush1.msra.mxu0 0.0
    %495 = vmatprep.subr.mxu0 0.0
    %496 = vmatpush1.msra.mxu0 0.0
    %497 = vmatprep.subr.mxu0 0.0
    %498 = vmatpush1.msra.mxu0 0.0
    %499 = vmatprep.subr.mxu0 0.0
    %500 = vmatpush1.msra.mxu0 0.0
    %501 = vmatprep.subr.mxu0 0.0
    %502 = vmatpush1.msra.mxu0 0.0
    %503 = vmatprep.subr.mxu0 0.0
    %504 = vmatpush1.msra.mxu0 0.0
    %505 = vmatprep.subr.mxu0 0.0
    %506 = vmatpush1.msra.mxu0 0.0
    %507 = vmatprep.subr.mxu0 0.0
    %508 = vmatpush1.msra.mxu0 0.0
    %509 = vmatprep.subr.mxu0 0.0
    %510 = vmatpush1.msra.mxu0 0.0
    %511 = vmatprep.subr.mxu0 0.0
    %512 = vmatpush1.msra.mxu0 0.0
    %513 = vmatprep.subr.mxu0 0.0
    %514 = vmatpush1.msra.mxu0 0.0
    %515 = vmatprep.subr.mxu0 0.0
    %516 = vmatpush1.msra.mxu0 0.0
    %517 = vmatprep.mubr.f32.mxu0 0.0
    %518 = vmatmul.mubr.f32.gmra.mrb[0].mxu0 %v448
    %v519 = vpop.f32.mrb[0].mxu0
    %v520 = vadd.f32 0.0, %v519
    %v521 = vpop.f32.mrb[0].mxu0
    %522 = vmatprep.mubr.f32.mxu0 0.0
    %523 = vmatmul.mubr.f32.gmra.mrb[0].mxu0 %v451
    %v524 = vpop.f32.mrb[0].mxu0
    %v525 = vadd.f32 0.0, %v524
    %v526 = vpop.f32.mrb[0].mxu0
    %527 = vdwg.mxu0
    %v528 = vld [vmem:[#allocation9] sm:$0xff]
    %v529 = vld [vmem:[#allocation9 + $0x8] sm:$0xff]
    %531 = vset.pattern.permute.xlu0 0
    %532 = vperm.xlu0 %531, %v528
    %v533 = vpop.permute.xlu0 %532
    %536 = vset.pattern.permute.xlu0 0
    %537 = vperm.xlu0 %536, %v529
    %v538 = vpop.permute.xlu0 %537
    %v540 = vmul.f32 %v520, %v533
    %v541 = vmul.f32 %v525, %v538
    %v542 = vld [vmem:[#allocation10] sm:$0xff]
    %v543 = vld [vmem:[#allocation10 + $0x8] sm:$0xff]
    %545 = vset.pattern.permute.xlu0 0
    %546 = vperm.xlu0 %545, %v542
    %v547 = vpop.permute.xlu0 %546
    %550 = vset.pattern.permute.xlu0 0
    %551 = vperm.xlu0 %550, %v543
    %v552 = vpop.permute.xlu0 %551
    %v554 = vadd.f32 %v540, %v547
    %v555 = vadd.f32 %v541, %v552
    %v556 = vsel %vm272, %v117, 0
    %558 = vmatprep.subr.mxu0 0.0
    %559 = vmatpush1.msra.mxu0 %v264
    %560 = vmatprep.subr.mxu0 0.0
    %561 = vmatpush1.msra.mxu0 %v265
    %562 = vmatprep.subr.mxu0 0.0
    %563 = vmatpush1.msra.mxu0 %v266
    %564 = vmatprep.subr.mxu0 0.0
    %565 = vmatpush1.msra.mxu0 %v267
    %566 = vmatprep.subr.mxu0 0.0
    %567 = vmatpush1.msra.mxu0 %v268
    %568 = vmatprep.subr.mxu0 0.0
    %569 = vmatpush1.msra.mxu0 %v269
    %570 = vmatprep.subr.mxu0 0.0
    %571 = vmatpush1.msra.mxu0 %v270
    %572 = vmatprep.subr.mxu0 0.0
    %573 = vmatpush1.msra.mxu0 %v271
    %574 = vmatprep.subr.mxu0 0.0
    %575 = vmatpush1.msra.mxu0 0.0
    %576 = vmatprep.subr.mxu0 0.0
    %577 = vmatpush1.msra.mxu0 0.0
    %578 = vmatprep.subr.mxu0 0.0
    %579 = vmatpush1.msra.mxu0 0.0
    %580 = vmatprep.subr.mxu0 0.0
    %581 = vmatpush1.msra.mxu0 0.0
    %582 = vmatprep.subr.mxu0 0.0
    %583 = vmatpush1.msra.mxu0 0.0
    %584 = vmatprep.subr.mxu0 0.0
    %585 = vmatpush1.msra.mxu0 0.0
    %586 = vmatprep.subr.mxu0 0.0
    %587 = vmatpush1.msra.mxu0 0.0
    %588 = vmatprep.subr.mxu0 0.0
    %589 = vmatpush1.msra.mxu0 0.0
    %590 = vmatprep.subr.mxu0 0.0
    %591 = vmatpush1.msra.mxu0 0.0
    %592 = vmatprep.subr.mxu0 0.0
    %593 = vmatpush1.msra.mxu0 0.0
    %594 = vmatprep.subr.mxu0 0.0
    %595 = vmatpush1.msra.mxu0 0.0
    %596 = vmatprep.subr.mxu0 0.0
    %597 = vmatpush1.msra.mxu0 0.0
    %598 = vmatprep.subr.mxu0 0.0
    %599 = vmatpush1.msra.mxu0 0.0
    %600 = vmatprep.subr.mxu0 0.0
    %601 = vmatpush1.msra.mxu0 0.0
    %602 = vmatprep.subr.mxu0 0.0
    %603 = vmatpush1.msra.mxu0 0.0
    %604 = vmatprep.subr.mxu0 0.0
    %605 = vmatpush1.msra.mxu0 0.0
    %606 = vmatprep.subr.mxu0 0.0
    %607 = vmatpush1.msra.mxu0 0.0
    %608 = vmatprep.subr.mxu0 0.0
    %609 = vmatpush1.msra.mxu0 0.0
    %610 = vmatprep.subr.mxu0 0.0
    %611 = vmatpush1.msra.mxu0 0.0
    %612 = vmatprep.subr.mxu0 0.0
    %613 = vmatpush1.msra.mxu0 0.0
    %614 = vmatprep.subr.mxu0 0.0
    %615 = vmatpush1.msra.mxu0 0.0
    %616 = vmatprep.subr.mxu0 0.0
    %617 = vmatpush1.msra.mxu0 0.0
    %618 = vmatprep.subr.mxu0 0.0
    %619 = vmatpush1.msra.mxu0 0.0
    %620 = vmatprep.subr.mxu0 0.0
    %621 = vmatpush1.msra.mxu0 0.0
    %622 = vmatprep.mubr.f32.mxu0 0.0
    %623 = vmatmul.mubr.f32.gmra.mrb[0].mxu0 %v556
    %v624 = vpop.f32.mrb[0].mxu0
    %v625 = vadd.f32 0.0, %v624
    %v626 = vpop.f32.mrb[0].mxu0
    %627 = vdwg.mxu0
    %v628 = vld [vmem:[%s7] sm:$0xff]
    %v629 = vld [vmem:[%s7 + $0x8] sm:$0xff]
    %vm630 = vcmask 64512
    %v632 = vsel %vm630, %v628, 0
    %v635 = vsel %vm630, %v629, 0
    %637 = vmatprep.subr.mxu0 0.0
    %638 = vmatpush1.msra.mxu0 %v625
    %639 = vmatprep.subr.mxu0 0.0
    %640 = vmatpush1.msra.mxu0 0.0
    %641 = vmatprep.subr.mxu0 0.0
    %642 = vmatpush1.msra.mxu0 0.0
    %643 = vmatprep.subr.mxu0 0.0
    %644 = vmatpush1.msra.mxu0 0.0
    %645 = vmatprep.subr.mxu0 0.0
    %646 = vmatpush1.msra.mxu0 0.0
    %647 = vmatprep.subr.mxu0 0.0
    %648 = vmatpush1.msra.mxu0 0.0
    %649 = vmatprep.subr.mxu0 0.0
    %650 = vmatpush1.msra.mxu0 0.0
    %651 = vmatprep.subr.mxu0 0.0
    %652 = vmatpush1.msra.mxu0 0.0
    %653 = vmatprep.subr.mxu0 0.0
    %654 = vmatpush1.msra.mxu0 0.0
    %655 = vmatprep.subr.mxu0 0.0
    %656 = vmatpush1.msra.mxu0 0.0
    %657 = vmatprep.subr.mxu0 0.0
    %658 = vmatpush1.msra.mxu0 0.0
    %659 = vmatprep.subr.mxu0 0.0
    %660 = vmatpush1.msra.mxu0 0.0
    %661 = vmatprep.subr.mxu0 0.0
    %662 = vmatpush1.msra.mxu0 0.0
    %663 = vmatprep.subr.mxu0 0.0
    %664 = vmatpush1.msra.mxu0 0.0
    %665 = vmatprep.subr.mxu0 0.0
    %666 = vmatpush1.msra.mxu0 0.0
    %667 = vmatprep.subr.mxu0 0.0
    %668 = vmatpush1.msra.mxu0 0.0
    %669 = vmatprep.subr.mxu0 0.0
    %670 = vmatpush1.msra.mxu0 0.0
    %671 = vmatprep.subr.mxu0 0.0
    %672 = vmatpush1.msra.mxu0 0.0
    %673 = vmatprep.subr.mxu0 0.0
    %674 = vmatpush1.msra.mxu0 0.0
    %675 = vmatprep.subr.mxu0 0.0
    %676 = vmatpush1.msra.mxu0 0.0
    %677 = vmatprep.subr.mxu0 0.0
    %678 = vmatpush1.msra.mxu0 0.0
    %679 = vmatprep.subr.mxu0 0.0
    %680 = vmatpush1.msra.mxu0 0.0
    %681 = vmatprep.subr.mxu0 0.0
    %682 = vmatpush1.msra.mxu0 0.0
    %683 = vmatprep.subr.mxu0 0.0
    %684 = vmatpush1.msra.mxu0 0.0
    %685 = vmatprep.subr.mxu0 0.0
    %686 = vmatpush1.msra.mxu0 0.0
    %687 = vmatprep.subr.mxu0 0.0
    %688 = vmatpush1.msra.mxu0 0.0
    %689 = vmatprep.subr.mxu0 0.0
    %690 = vmatpush1.msra.mxu0 0.0
    %691 = vmatprep.subr.mxu0 0.0
    %692 = vmatpush1.msra.mxu0 0.0
    %693 = vmatprep.subr.mxu0 0.0
    %694 = vmatpush1.msra.mxu0 0.0
    %695 = vmatprep.subr.mxu0 0.0
    %696 = vmatpush1.msra.mxu0 0.0
    %697 = vmatprep.subr.mxu0 0.0
    %698 = vmatpush1.msra.mxu0 0.0
    %699 = vmatprep.subr.mxu0 0.0
    %700 = vmatpush1.msra.mxu0 0.0
    %701 = vmatprep.mubr.f32.mxu0 0.0
    %702 = vmatmul.mubr.f32.gmra.mrb[0].mxu0 %v632
    %v703 = vpop.f32.mrb[0].mxu0
    %v704 = vadd.f32 0.0, %v703
    %v705 = vpop.f32.mrb[0].mxu0
    %706 = vmatprep.mubr.f32.mxu0 0.0
    %707 = vmatmul.mubr.f32.gmra.mrb[0].mxu0 %v635
    %v708 = vpop.f32.mrb[0].mxu0
    %v709 = vadd.f32 0.0, %v708
    %v710 = vpop.f32.mrb[0].mxu0
    %711 = vdwg.mxu0
    %v712 = vld [vmem:[%s8] sm:$0xff]
    %v713 = vld [vmem:[%s8 + $0x8] sm:$0xff]
    %715 = vset.pattern.permute.xlu0 0
    %716 = vperm.xlu0 %715, %v712
    %v717 = vpop.permute.xlu0 %716
    %720 = vset.pattern.permute.xlu0 0
    %721 = vperm.xlu0 %720, %v713
    %v722 = vpop.permute.xlu0 %721
    %v724 = vmul.f32 %v704, %v717
    %v725 = vmul.f32 %v709, %v722
    %v726 = vld [vmem:[%s9] sm:$0xff]
    %v727 = vld [vmem:[%s9 + $0x8] sm:$0xff]
    %729 = vset.pattern.permute.xlu0 0
    %730 = vperm.xlu0 %729, %v726
    %v731 = vpop.permute.xlu0 %730
    %734 = vset.pattern.permute.xlu0 0
    %735 = vperm.xlu0 %734, %v727
    %v736 = vpop.permute.xlu0 %735
    %v738 = vadd.f32 %v724, %v731
    %v739 = vadd.f32 %v725, %v736
    %v740 = vadd.f32 %v554, %v738
    %v741 = vadd.f32 %v555, %v739
    %v742 = vmax.f32 %v740, 0.0
    %v743 = vmax.f32 %v741, 0.0
    %744 = vst.msk [vmem:[%s10] sm:$0xff] %vm141, %v742
    %745 = vst.msk [vmem:[%s10 + $0x8] sm:$0xff] %vm141, %v743
    // Predicated region
    $region66: #{run.8} parent=1 // pred_check
      _
    $region67: #{run.8} parent=1 // pred_check_branch
      %747 = sbr.rel (0) target = $region69
    $region68: #{run.8} parent=1 // pred_region
      _
    $region69: #{run.8} parent=1 // pred_fallthru
      _
    // Predicated region
    $region70: #{run.8} parent=1 // pred_check
      _
    $region71: #{run.8} parent=1 // pred_check_branch
      %749 = sbr.rel (0) target = $region73
    $region72: #{run.8} parent=1 // pred_region
      _
    $region73: #{run.8} parent=1 // pred_fallthru
      _
    %750 = vsyncpa [#allocation3], 1
    %751 = vsyncpa [#allocation5], 1
    %752 = vsyncpa [#allocation8], 1
    %753 = vsyncpa [#allocation11], 1

// kernel: run.9
$region0: #{run.9}
  #allocation0 [shape = 'u32[]', space=smem, size = 0x4, offset = 0x4, fixed_abs, tag = 'smem constant byte address 0x4 - core index']
  #allocation1 [shape = 'u32[144,128]{1,0:T(1,128)}', space=vmem, size = 0x12000, scoped, tag = 'internal scratch']
  %s0 = inlined_call_operand.vmem [shape: f32[16,32], index: 0, kind: input, shape index: {}]
  %s1 = inlined_call_operand.hbm [shape: f32[32,48], index: 1, kind: input, shape index: {}]
  %s2 = inlined_call_operand.hbm [shape: f32[32,1], index: 2, kind: input, shape index: {}]
  %s3 = inlined_call_operand.hbm [shape: f32[32,1], index: 3, kind: input, shape index: {}]
  %s4 = inlined_call_operand.hbm [shape: f32[32,96], index: 4, kind: input, shape index: {}]
  %s5 = inlined_call_operand.hbm [shape: f32[32,1], index: 5, kind: input, shape index: {}]
  %s6 = inlined_call_operand.hbm [shape: f32[32,1], index: 6, kind: input, shape index: {}]
  %s7 = inlined_call_operand.vmem [shape: f32[32,16], index: 7, kind: input, shape index: {}]
  %s8 = inlined_call_operand.vmem [shape: f32[32,1], index: 8, kind: input, shape index: {}]
  %s9 = inlined_call_operand.vmem [shape: f32[32,1], index: 9, kind: input, shape index: {}]
  %s10 = inlined_call_operand.vmem [shape: f32[32,16], index: 10, kind: output, shape index: {}]
  %s11 = sld [smem:[#allocation0]]
  $region74: #{run.9} parent=0
    _
  %s13 = ssub.s32 1, %s11
  %s14 = scalar_select 0, %s13, %s11
  $region1: #{run.9} parent=0
    #allocation2 [shape = 'u8[16384]{0}', space=vmem, size = 0x4000, scoped, tag = 'input window, operand 1, single buffered']
    #allocation3 [shape = 's32[1]{0}', space=sflag, size = 0x4, scoped, tag = 'scoped memory for run.9']
    #allocation4 [shape = 'u8[16384]{0}', space=vmem, size = 0x4000, scoped, tag = 'input window, operand 2, single buffered']
    #allocation5 [shape = 's32[1]{0}', space=sflag, size = 0x4, scoped, tag = 'scoped memory for run.9']
    #allocation6 [shape = 'u8[16384]{0}', space=vmem, size = 0x4000, scoped, tag = 'input window, operand 3, single buffered']
    #allocation7 [shape = 'u8[16384]{0}', space=vmem, size = 0x4000, scoped, tag = 'input window, operand 4, single buffered']
    #allocation8 [shape = 's32[1]{0}', space=sflag, size = 0x4, scoped, tag = 'scoped memory for run.9']
    #allocation9 [shape = 'u8[16384]{0}', space=vmem, size = 0x4000, scoped, tag = 'input window, operand 5, single buffered']
    #allocation10 [shape = 'u8[16384]{0}', space=vmem, size = 0x4000, scoped, tag = 'input window, operand 6, single buffered']
    #allocation11 [shape = 's32[1]{0}', space=sflag, size = 0x4, scoped, tag = 'scoped memory for run.9']
    %15 = vsyncpa [#allocation3], 0
    %16 = vsyncpa [#allocation5], 0
    %17 = vsyncpa [#allocation8], 0
    %18 = vsyncpa [#allocation11], 0
    // Predicated region
    $region2: #{run.9} parent=1 // pred_check
      _
    $region3: #{run.9} parent=1 // pred_check_branch
      %20 = sbr.rel (0) target = $region5
    $region4: #{run.9} parent=1 // pred_region
      _
    $region5: #{run.9} parent=1 // pred_fallthru
      _
    // Predicated region
    $region6: #{run.9} parent=1 // pred_check
      _
    $region7: #{run.9} parent=1 // pred_check_branch
      %22 = sbr.rel (0) target = $region9
    $region8: #{run.9} parent=1 // pred_region
      %s24 = ssub.s32 512, 512
      %25 = vsyncadd [#allocation3], %s24
      %s26 = sshll.u32 [#allocation2], 4
      %s27 = int_to_ptr.vmem [resolvable:$true] %s26
      %32 = dma.hbm_to_vmem [thread:$0]  %s1, 512, %s27, [#allocation3], 128, 128, 8
    $region9: #{run.9} parent=1 // pred_fallthru
      _
    // Predicated region
    $region10: #{run.9} parent=1 // pred_check
      _
    $region11: #{run.9} parent=1 // pred_check_branch
      %34 = sbr.rel (0) target = $region13
    $region12: #{run.9} parent=1 // pred_region
      %s36 = ssub.s32 512, 512
      %37 = vsyncadd [#allocation5], %s36
      %s38 = sshll.u32 [#allocation4], 4
      %s39 = int_to_ptr.vmem [resolvable:$true] %s38
      %44 = dma.hbm_to_vmem [thread:$0]  %s2, 512, %s39, [#allocation5], 128, 128, 8
    $region13: #{run.9} parent=1 // pred_fallthru
      _
    // Predicated region
    $region14: #{run.9} parent=1 // pred_check
      _
    $region15: #{run.9} parent=1 // pred_check_branch
      %46 = sbr.rel (0) target = $region17
    $region16: #{run.9} parent=1 // pred_region
      %s48 = ssub.s32 512, 512
      %49 = vsyncadd [#allocation5], %s48
      %s50 = sshll.u32 [#allocation6], 4
      %s51 = int_to_ptr.vmem [resolvable:$true] %s50
      %56 = dma.hbm_to_vmem [thread:$0]  %s3, 512, %s51, [#allocation5], 128, 128, 8
    $region17: #{run.9} parent=1 // pred_fallthru
      _
    // Predicated region
    $region18: #{run.9} parent=1 // pred_check
      _
    $region19: #{run.9} parent=1 // pred_check_branch
      %58 = sbr.rel (0) target = $region21
    $region20: #{run.9} parent=1 // pred_region
      %s60 = ssub.s32 512, 512
      %61 = vsyncadd [#allocation8], %s60
      %s62 = sshll.u32 [#allocation7], 4
      %s63 = int_to_ptr.vmem [resolvable:$true] %s62
      %68 = dma.hbm_to_vmem [thread:$0]  %s4, 512, %s63, [#allocation8], 128, 128, 8
    $region21: #{run.9} parent=1 // pred_fallthru
      _
    // Predicated region
    $region22: #{run.9} parent=1 // pred_check
      _
    $region23: #{run.9} parent=1 // pred_check_branch
      %70 = sbr.rel (0) target = $region25
    $region24: #{run.9} parent=1 // pred_region
      %s72 = ssub.s32 512, 512
      %73 = vsyncadd [#allocation8], %s72
      %s74 = sshll.u32 [#allocation9], 4
      %s75 = int_to_ptr.vmem [resolvable:$true] %s74
      %80 = dma.hbm_to_vmem [thread:$0]  %s5, 512, %s75, [#allocation8], 128, 128, 8
    $region25: #{run.9} parent=1 // pred_fallthru
      _
    // Predicated region
    $region26: #{run.9} parent=1 // pred_check
      _
    $region27: #{run.9} parent=1 // pred_check_branch
      %82 = sbr.rel (0) target = $region29
    $region28: #{run.9} parent=1 // pred_region
      %s84 = ssub.s32 512, 512
      %85 = vsyncadd [#allocation11], %s84
      %s86 = sshll.u32 [#allocation10], 4
      %s87 = int_to_ptr.vmem [resolvable:$true] %s86
      %92 = dma.hbm_to_vmem [thread:$0]  %s6, 512, %s87, [#allocation11], 128, 128, 8
    $region29: #{run.9} parent=1 // pred_fallthru
      _
    // Predicated region
    $region30: #{run.9} parent=1 // pred_check
      _
    $region31: #{run.9} parent=1 // pred_check_branch
      %94 = sbr.rel (0) target = $region33
    $region32: #{run.9} parent=1 // pred_region
      _
    $region33: #{run.9} parent=1 // pred_fallthru
      _
    // Predicated region
    $region34: #{run.9} parent=1 // pred_check
      _
    $region35: #{run.9} parent=1 // pred_check_branch
      %96 = sbr.rel (0) target = $region37
    $region36: #{run.9} parent=1 // pred_region
      _
    $region37: #{run.9} parent=1 // pred_fallthru
      _
    // Predicated region
    $region38: #{run.9} parent=1 // pred_check
      _
    $region39: #{run.9} parent=1 // pred_check_branch
      %98 = sbr.rel (0) target = $region41
    $region40: #{run.9} parent=1 // pred_region
      _
    $region41: #{run.9} parent=1 // pred_fallthru
      _
    // Predicated region
    $region42: #{run.9} parent=1 // pred_check
      _
    $region43: #{run.9} parent=1 // pred_check_branch
      %100 = sbr.rel (0) target = $region45
    $region44: #{run.9} parent=1 // pred_region
      %101 = dma.done [#allocation3], 512
    $region45: #{run.9} parent=1 // pred_fallthru
      _
    // Predicated region
    $region46: #{run.9} parent=1 // pred_check
      _
    $region47: #{run.9} parent=1 // pred_check_branch
      %103 = sbr.rel (0) target = $region49
    $region48: #{run.9} parent=1 // pred_region
      %104 = dma.done [#allocation5], 512
    $region49: #{run.9} parent=1 // pred_fallthru
      _
    // Predicated region
    $region50: #{run.9} parent=1 // pred_check
      _
    $region51: #{run.9} parent=1 // pred_check_branch
      %106 = sbr.rel (0) target = $region53
    $region52: #{run.9} parent=1 // pred_region
      %107 = dma.done [#allocation5], 512
    $region53: #{run.9} parent=1 // pred_fallthru
      _
    // Predicated region
    $region54: #{run.9} parent=1 // pred_check
      _
    $region55: #{run.9} parent=1 // pred_check_branch
      %109 = sbr.rel (0) target = $region57
    $region56: #{run.9} parent=1 // pred_region
      %110 = dma.done [#allocation8], 512
    $region57: #{run.9} parent=1 // pred_fallthru
      _
    // Predicated region
    $region58: #{run.9} parent=1 // pred_check
      _
    $region59: #{run.9} parent=1 // pred_check_branch
      %112 = sbr.rel (0) target = $region61
    $region60: #{run.9} parent=1 // pred_region
      %113 = dma.done [#allocation8], 512
    $region61: #{run.9} parent=1 // pred_fallthru
      _
    // Predicated region
    $region62: #{run.9} parent=1 // pred_check
      _
    $region63: #{run.9} parent=1 // pred_check_branch
      %115 = sbr.rel (0) target = $region65
    $region64: #{run.9} parent=1 // pred_region
      %116 = dma.done [#allocation11], 512
    $region65: #{run.9} parent=1 // pred_fallthru
      _
    %v117 = vld [vmem:[%s0] sm:$0xff]
    %v118 = vld [vmem:[%s0 + $0x8] sm:$0xff]
    %v119 = vld [vmem:[#allocation2] sm:$0xff]
    %v120 = vld [vmem:[#allocation2 + $0x8] sm:$0xff]
    %v121 = vld [vmem:[#allocation2 + $0x10] sm:$0xff]
    %v122 = vld [vmem:[#allocation2 + $0x18] sm:$0xff]
    %125 = vrot.lane.b32.xlu0 %v117, 1
    %v126 = vpop.permute.xlu0 %125
    %127 = vrot.lane.b32.xlu0 %v118, 1
    %v128 = vpop.permute.xlu0 %127
    %131 = vrot.lane.b32.xlu0 %v117, 3
    %v132 = vpop.permute.xlu0 %131
    %133 = vrot.lane.b32.xlu0 %v118, 3
    %v134 = vpop.permute.xlu0 %133
    %vm137 = vcmask 7168
    %v138 = vsel %vm137, 0.0, %v126
    %v139 = vsel %vm137, 0.0, %v128
    %vm140 = vcmask 138240
    %v141 = vsel %vm140, %v138, 0.0
    %v142 = vsel %vm140, %v139, 0.0
    %vm143 = vcmask 146432
    %v144 = vsel %vm143, %v141, 0.0
    %v145 = vsel %vm143, %v142, 0.0
    %vm146 = vcmask 154624
    %v147 = vsel %vm146, %v144, %v132
    %v148 = vsel %vm146, %v145, %v134
    %vm149 = vcmask 285696
    %v150 = vsel %vm149, %v147, 0.0
    %v151 = vsel %vm149, %v148, 0.0
    %154 = vrot.lane.b32.xlu0 %v150, 126
    %v155 = vpop.permute.xlu0 %154
    %156 = vrot.lane.b32.xlu0 %v151, 126
    %v157 = vpop.permute.xlu0 %156
    %vm160 = vcmask 130048
    %v161 = vsel %vm160, %v150, %v155
    %v162 = vsel %vm160, %v151, %v157
    %163 = vrot.lane.b32.xlu0 %v150, 127
    %v164 = vpop.permute.xlu0 %163
    %165 = vrot.lane.b32.xlu0 %v151, 127
    %v166 = vpop.permute.xlu0 %165
    %169 = vrot.lane.b32.xlu0 %v150, 125
    %v170 = vpop.permute.xlu0 %169
    %171 = vrot.lane.b32.xlu0 %v151, 125
    %v172 = vpop.permute.xlu0 %171
    %v175 = vsel %vm160, %v164, %v170
    %v176 = vsel %vm160, %v166, %v172
    %177 = vrot.lane.b32.xlu0 %v150, 124
    %v178 = vpop.permute.xlu0 %177
    %179 = vrot.lane.b32.xlu0 %v151, 124
    %v180 = vpop.permute.xlu0 %179
    %v183 = vsel %vm160, %v155, %v178
    %v184 = vsel %vm160, %v157, %v180
    %vm185 = vcmask 392192
    %v187 = vsel %vm185, %v119, 0
    %v190 = vsel %vm185, %v120, 0
    %v193 = vsel %vm185, %v121, 0
    %v196 = vsel %vm185, %v122, 0
    %198 = vmatprep.subr.mxu0 0.0
    %199 = vmatpush1.msra.mxu0 %v161
    %200 = vmatprep.subr.mxu0 0.0
    %201 = vmatpush1.msra.mxu0 %v162
    %202 = vmatprep.subr.mxu0 0.0
    %203 = vmatpush1.msra.mxu0 %v175
    %204 = vmatprep.subr.mxu0 0.0
    %205 = vmatpush1.msra.mxu0 %v176
    %206 = vmatprep.subr.mxu0 0.0
    %207 = vmatpush1.msra.mxu0 %v183
    %208 = vmatprep.subr.mxu0 0.0
    %209 = vmatpush1.msra.mxu0 %v184
    %210 = vmatprep.subr.mxu0 0.0
    %211 = vmatpush1.msra.mxu0 0.0
    %212 = vmatprep.subr.mxu0 0.0
    %213 = vmatpush1.msra.mxu0 0.0
    %214 = vmatprep.subr.mxu0 0.0
    %215 = vmatpush1.msra.mxu0 0.0
    %216 = vmatprep.subr.mxu0 0.0
    %217 = vmatpush1.msra.mxu0 0.0
    %218 = vmatprep.subr.mxu0 0.0
    %219 = vmatpush1.msra.mxu0 0.0
    %220 = vmatprep.subr.mxu0 0.0
    %221 = vmatpush1.msra.mxu0 0.0
    %222 = vmatprep.subr.mxu0 0.0
    %223 = vmatpush1.msra.mxu0 0.0
    %224 = vmatprep.subr.mxu0 0.0
    %225 = vmatpush1.msra.mxu0 0.0
    %226 = vmatprep.subr.mxu0 0.0
    %227 = vmatpush1.msra.mxu0 0.0
    %228 = vmatprep.subr.mxu0 0.0
    %229 = vmatpush1.msra.mxu0 0.0
    %230 = vmatprep.subr.mxu0 0.0
    %231 = vmatpush1.msra.mxu0 0.0
    %232 = vmatprep.subr.mxu0 0.0
    %233 = vmatpush1.msra.mxu0 0.0
    %234 = vmatprep.subr.mxu0 0.0
    %235 = vmatpush1.msra.mxu0 0.0
    %236 = vmatprep.subr.mxu0 0.0
    %237 = vmatpush1.msra.mxu0 0.0
    %238 = vmatprep.subr.mxu0 0.0
    %239 = vmatpush1.msra.mxu0 0.0
    %240 = vmatprep.subr.mxu0 0.0
    %241 = vmatpush1.msra.mxu0 0.0
    %242 = vmatprep.subr.mxu0 0.0
    %243 = vmatpush1.msra.mxu0 0.0
    %244 = vmatprep.subr.mxu0 0.0
    %245 = vmatpush1.msra.mxu0 0.0
    %246 = vmatprep.subr.mxu0 0.0
    %247 = vmatpush1.msra.mxu0 0.0
    %248 = vmatprep.subr.mxu0 0.0
    %249 = vmatpush1.msra.mxu0 0.0
    %250 = vmatprep.subr.mxu0 0.0
    %251 = vmatpush1.msra.mxu0 0.0
    %252 = vmatprep.subr.mxu0 0.0
    %253 = vmatpush1.msra.mxu0 0.0
    %254 = vmatprep.subr.mxu0 0.0
    %255 = vmatpush1.msra.mxu0 0.0
    %256 = vmatprep.subr.mxu0 0.0
    %257 = vmatpush1.msra.mxu0 0.0
    %258 = vmatprep.subr.mxu0 0.0
    %259 = vmatpush1.msra.mxu0 0.0
    %260 = vmatprep.subr.mxu0 0.0
    %261 = vmatpush1.msra.mxu0 0.0
    %262 = vmatprep.mubr.f32.mxu0 0.0
    %263 = vmatmul.mubr.f32.gmra.mrb[0].mxu0 %v187
    %v264 = vpop.f32.mrb[0].mxu0
    %v265 = vadd.f32 0.0, %v264
    %v266 = vpop.f32.mrb[0].mxu0
    %267 = vmatprep.mubr.f32.mxu0 0.0
    %268 = vmatmul.mubr.f32.gmra.mrb[0].mxu0 %v190
    %v269 = vpop.f32.mrb[0].mxu0
    %v270 = vadd.f32 0.0, %v269
    %v271 = vpop.f32.mrb[0].mxu0
    %272 = vmatprep.mubr.f32.mxu0 0.0
    %273 = vmatmul.mubr.f32.gmra.mrb[0].mxu0 %v193
    %v274 = vpop.f32.mrb[0].mxu0
    %v275 = vadd.f32 0.0, %v274
    %v276 = vpop.f32.mrb[0].mxu0
    %277 = vmatprep.mubr.f32.mxu0 0.0
    %278 = vmatmul.mubr.f32.gmra.mrb[0].mxu0 %v196
    %v279 = vpop.f32.mrb[0].mxu0
    %v280 = vadd.f32 0.0, %v279
    %v281 = vpop.f32.mrb[0].mxu0
    %282 = vdwg.mxu0
    %v283 = vlaneseq
    %v284 = vshrl.u32 %v283, 7
    %v285 = vadd.s32 %v284, 8
    %v286 = vadd.s32 %v284, 16
    %v287 = vadd.s32 %v284, 24
    %v288 = vlaneseq
    %v289 = vand.u32 %v288, 127
    %v290 = vmul.u32 %v289, 2
    %vm291 = vcmp.eq.s32.totalorder %v284, %v290
    %vm292 = vcmp.eq.s32.totalorder %v285, %v290
    %vm293 = vcmp.eq.s32.totalorder %v286, %v290
    %vm294 = vcmp.eq.s32.totalorder %v287, %v290
    %v295 = vsel %vm291, 1, 0
    %v296 = vsel %vm292, 1, 0
    %v297 = vsel %vm293, 1, 0
    %v298 = vsel %vm294, 1, 0
    %v299 = vcvt.s32.f32 %v295
    %v300 = vcvt.s32.f32 %v296
    %v301 = vcvt.s32.f32 %v297
    %v302 = vcvt.s32.f32 %v298
    %vm303 = vcmask 261120
    %v305 = vsel %vm303, %v265, 0
    %v308 = vsel %vm303, %v270, 0
    %v311 = vsel %vm303, %v275, 0
    %v314 = vsel %vm303, %v280, 0
    %316 = vmatprep.subr.mxu0 0.0
    %317 = vmatpush1.msra.mxu0 %v299
    %318 = vmatprep.subr.mxu0 0.0
    %319 = vmatpush1.msra.mxu0 %v300
    %320 = vmatprep.subr.mxu0 0.0
    %321 = vmatpush1.msra.mxu0 %v301
    %322 = vmatprep.subr.mxu0 0.0
    %323 = vmatpush1.msra.mxu0 %v302
    %324 = vmatprep.subr.mxu0 0.0
    %325 = vmatpush1.msra.mxu0 0.0
    %326 = vmatprep.subr.mxu0 0.0
    %327 = vmatpush1.msra.mxu0 0.0
    %328 = vmatprep.subr.mxu0 0.0
    %329 = vmatpush1.msra.mxu0 0.0
    %330 = vmatprep.subr.mxu0 0.0
    %331 = vmatpush1.msra.mxu0 0.0
    %332 = vmatprep.subr.mxu0 0.0
    %333 = vmatpush1.msra.mxu0 0.0
    %334 = vmatprep.subr.mxu0 0.0
    %335 = vmatpush1.msra.mxu0 0.0
    %336 = vmatprep.subr.mxu0 0.0
    %337 = vmatpush1.msra.mxu0 0.0
    %338 = vmatprep.subr.mxu0 0.0
    %339 = vmatpush1.msra.mxu0 0.0
    %340 = vmatprep.subr.mxu0 0.0
    %341 = vmatpush1.msra.mxu0 0.0
    %342 = vmatprep.subr.mxu0 0.0
    %343 = vmatpush1.msra.mxu0 0.0
    %344 = vmatprep.subr.mxu0 0.0
    %345 = vmatpush1.msra.mxu0 0.0
    %346 = vmatprep.subr.mxu0 0.0
    %347 = vmatpush1.msra.mxu0 0.0
    %348 = vmatprep.subr.mxu0 0.0
    %349 = vmatpush1.msra.mxu0 0.0
    %350 = vmatprep.subr.mxu0 0.0
    %351 = vmatpush1.msra.mxu0 0.0
    %352 = vmatprep.subr.mxu0 0.0
    %353 = vmatpush1.msra.mxu0 0.0
    %354 = vmatprep.subr.mxu0 0.0
    %355 = vmatpush1.msra.mxu0 0.0
    %356 = vmatprep.subr.mxu0 0.0
    %357 = vmatpush1.msra.mxu0 0.0
    %358 = vmatprep.subr.mxu0 0.0
    %359 = vmatpush1.msra.mxu0 0.0
    %360 = vmatprep.subr.mxu0 0.0
    %361 = vmatpush1.msra.mxu0 0.0
    %362 = vmatprep.subr.mxu0 0.0
    %363 = vmatpush1.msra.mxu0 0.0
    %364 = vmatprep.subr.mxu0 0.0
    %365 = vmatpush1.msra.mxu0 0.0
    %366 = vmatprep.subr.mxu0 0.0
    %367 = vmatpush1.msra.mxu0 0.0
    %368 = vmatprep.subr.mxu0 0.0
    %369 = vmatpush1.msra.mxu0 0.0
    %370 = vmatprep.subr.mxu0 0.0
    %371 = vmatpush1.msra.mxu0 0.0
    %372 = vmatprep.subr.mxu0 0.0
    %373 = vmatpush1.msra.mxu0 0.0
    %374 = vmatprep.subr.mxu0 0.0
    %375 = vmatpush1.msra.mxu0 0.0
    %376 = vmatprep.subr.mxu0 0.0
    %377 = vmatpush1.msra.mxu0 0.0
    %378 = vmatprep.subr.mxu0 0.0
    %379 = vmatpush1.msra.mxu0 0.0
    %380 = vmatprep.mubr.f32.mxu0 0.0
    %381 = vmatmul.mubr.f32.gmra.mrb[0].mxu0 %v305
    %v382 = vpop.f32.mrb[0].mxu0
    %v383 = vadd.f32 0.0, %v382
    %v384 = vpop.f32.mrb[0].mxu0
    %385 = vmatprep.mubr.f32.mxu0 0.0
    %386 = vmatmul.mubr.f32.gmra.mrb[0].mxu0 %v308
    %v387 = vpop.f32.mrb[0].mxu0
    %v388 = vadd.f32 0.0, %v387
    %v389 = vpop.f32.mrb[0].mxu0
    %390 = vmatprep.mubr.f32.mxu0 0.0
    %391 = vmatmul.mubr.f32.gmra.mrb[0].mxu0 %v311
    %v392 = vpop.f32.mrb[0].mxu0
    %v393 = vadd.f32 0.0, %v392
    %v394 = vpop.f32.mrb[0].mxu0
    %395 = vmatprep.mubr.f32.mxu0 0.0
    %396 = vmatmul.mubr.f32.gmra.mrb[0].mxu0 %v314
    %v397 = vpop.f32.mrb[0].mxu0
    %v398 = vadd.f32 0.0, %v397
    %v399 = vpop.f32.mrb[0].mxu0
    %400 = vdwg.mxu0
    %v401 = vld [vmem:[#allocation4] sm:$0xff]
    %v402 = vld [vmem:[#allocation4 + $0x8] sm:$0xff]
    %v403 = vld [vmem:[#allocation4 + $0x10] sm:$0xff]
    %v404 = vld [vmem:[#allocation4 + $0x18] sm:$0xff]
    %406 = vset.pattern.permute.xlu0 0
    %407 = vperm.xlu0 %406, %v401
    %v408 = vpop.permute.xlu0 %407
    %411 = vset.pattern.permute.xlu0 0
    %412 = vperm.xlu0 %411, %v402
    %v413 = vpop.permute.xlu0 %412
    %416 = vset.pattern.permute.xlu0 0
    %417 = vperm.xlu0 %416, %v403
    %v418 = vpop.permute.xlu0 %417
    %421 = vset.pattern.permute.xlu0 0
    %422 = vperm.xlu0 %421, %v404
    %v423 = vpop.permute.xlu0 %422
    %v425 = vmul.f32 %v383, %v408
    %v426 = vmul.f32 %v388, %v413
    %v427 = vmul.f32 %v393, %v418
    %v428 = vmul.f32 %v398, %v423
    %v429 = vld [vmem:[#allocation6] sm:$0xff]
    %v430 = vld [vmem:[#allocation6 + $0x8] sm:$0xff]
    %v431 = vld [vmem:[#allocation6 + $0x10] sm:$0xff]
    %v432 = vld [vmem:[#allocation6 + $0x18] sm:$0xff]
    %434 = vset.pattern.permute.xlu0 0
    %435 = vperm.xlu0 %434, %v429
    %v436 = vpop.permute.xlu0 %435
    %439 = vset.pattern.permute.xlu0 0
    %440 = vperm.xlu0 %439, %v430
    %v441 = vpop.permute.xlu0 %440
    %444 = vset.pattern.permute.xlu0 0
    %445 = vperm.xlu0 %444, %v431
    %v446 = vpop.permute.xlu0 %445
    %449 = vset.pattern.permute.xlu0 0
    %450 = vperm.xlu0 %449, %v432
    %v451 = vpop.permute.xlu0 %450
    %v453 = vadd.f32 %v425, %v436
    %v454 = vadd.f32 %v426, %v441
    %v455 = vadd.f32 %v427, %v446
    %v456 = vadd.f32 %v428, %v451
    %v457 = vmax.f32 %v453, 0.0
    %v458 = vmax.f32 %v454, 0.0
    %v459 = vmax.f32 %v455, 0.0
    %v460 = vmax.f32 %v456, 0.0
    %v461 = vld [vmem:[#allocation7] sm:$0xff]
    %v462 = vld [vmem:[#allocation7 + $0x8] sm:$0xff]
    %v463 = vld [vmem:[#allocation7 + $0x10] sm:$0xff]
    %v464 = vld [vmem:[#allocation7 + $0x18] sm:$0xff]
    %469 = vrot.lane.b32.xlu0 %v457, 1
    %v470 = vpop.permute.xlu0 %469
    %471 = vrot.lane.b32.xlu0 %v458, 1
    %v472 = vpop.permute.xlu0 %471
    %473 = vrot.lane.b32.xlu0 %v459, 1
    %v474 = vpop.permute.xlu0 %473
    %475 = vrot.lane.b32.xlu0 %v460, 1
    %v476 = vpop.permute.xlu0 %475
    %481 = vrot.lane.b32.xlu0 %v457, 3
    %v482 = vpop.permute.xlu0 %481
    %483 = vrot.lane.b32.xlu0 %v458, 3
    %v484 = vpop.permute.xlu0 %483
    %485 = vrot.lane.b32.xlu0 %v459, 3
    %v486 = vpop.permute.xlu0 %485
    %487 = vrot.lane.b32.xlu0 %v460, 3
    %v488 = vpop.permute.xlu0 %487
    %v493 = vsel %vm137, 0.0, %v470
    %v494 = vsel %vm137, 0.0, %v472
    %v495 = vsel %vm137, 0.0, %v474
    %v496 = vsel %vm137, 0.0, %v476
    %vm497 = vcmask 72704
    %v498 = vsel %vm497, %v493, 0.0
    %v499 = vsel %vm497, %v494, 0.0
    %v500 = vsel %vm497, %v495, 0.0
    %v501 = vsel %vm497, %v496, 0.0
    %vm502 = vcmask 80896
    %v503 = vsel %vm502, %v498, 0.0
    %v504 = vsel %vm502, %v499, 0.0
    %v505 = vsel %vm502, %v500, 0.0
    %v506 = vsel %vm502, %v501, 0.0
    %vm507 = vcmask 89088
    %v508 = vsel %vm507, %v503, %v482
    %v509 = vsel %vm507, %v504, %v484
    %v510 = vsel %vm507, %v505, %v486
    %v511 = vsel %vm507, %v506, %v488
    %v512 = vsel %vm146, %v508, 0.0
    %v513 = vsel %vm146, %v509, 0.0
    %v514 = vsel %vm146, %v510, 0.0
    %v515 = vsel %vm146, %v511, 0.0
    %520 = vrot.lane.b32.xlu0 %v512, 126
    %v521 = vpop.permute.xlu0 %520
    %522 = vrot.lane.b32.xlu0 %v513, 126
    %v523 = vpop.permute.xlu0 %522
    %524 = vrot.lane.b32.xlu0 %v514, 126
    %v525 = vpop.permute.xlu0 %524
    %526 = vrot.lane.b32.xlu0 %v515, 126
    %v527 = vpop.permute.xlu0 %526
    %vm532 = vcmask 64512
    %v533 = vsel %vm532, %v512, %v521
    %v534 = vsel %vm532, %v513, %v523
    %v535 = vsel %vm532, %v514, %v525
    %v536 = vsel %vm532, %v515, %v527
    %537 = vrot.lane.b32.xlu0 %v512, 127
    %v538 = vpop.permute.xlu0 %537
    %539 = vrot.lane.b32.xlu0 %v513, 127
    %v540 = vpop.permute.xlu0 %539
    %541 = vrot.lane.b32.xlu0 %v514, 127
    %v542 = vpop.permute.xlu0 %541
    %543 = vrot.lane.b32.xlu0 %v515, 127
    %v544 = vpop.permute.xlu0 %543
    %549 = vrot.lane.b32.xlu0 %v512, 125
    %v550 = vpop.permute.xlu0 %549
    %551 = vrot.lane.b32.xlu0 %v513, 125
    %v552 = vpop.permute.xlu0 %551
    %553 = vrot.lane.b32.xlu0 %v514, 125
    %v554 = vpop.permute.xlu0 %553
    %555 = vrot.lane.b32.xlu0 %v515, 125
    %v556 = vpop.permute.xlu0 %555
    %v561 = vsel %vm532, %v538, %v550
    %v562 = vsel %vm532, %v540, %v552
    %v563 = vsel %vm532, %v542, %v554
    %v564 = vsel %vm532, %v544, %v556
    %565 = vrot.lane.b32.xlu0 %v512, 124
    %v566 = vpop.permute.xlu0 %565
    %567 = vrot.lane.b32.xlu0 %v513, 124
    %v568 = vpop.permute.xlu0 %567
    %569 = vrot.lane.b32.xlu0 %v514, 124
    %v570 = vpop.permute.xlu0 %569
    %571 = vrot.lane.b32.xlu0 %v515, 124
    %v572 = vpop.permute.xlu0 %571
    %v577 = vsel %vm532, %v521, %v566
    %v578 = vsel %vm532, %v523, %v568
    %v579 = vsel %vm532, %v525, %v570
    %v580 = vsel %vm532, %v527, %v572
    %vm581 = vcmask 785408
    %v583 = vsel %vm581, %v461, 0
    %v586 = vsel %vm581, %v462, 0
    %v589 = vsel %vm581, %v463, 0
    %v592 = vsel %vm581, %v464, 0
    %594 = vmatprep.subr.mxu0 0.0
    %595 = vmatpush1.msra.mxu0 %v533
    %596 = vmatprep.subr.mxu0 0.0
    %597 = vmatpush1.msra.mxu0 %v534
    %598 = vmatprep.subr.mxu0 0.0
    %599 = vmatpush1.msra.mxu0 %v535
    %600 = vmatprep.subr.mxu0 0.0
    %601 = vmatpush1.msra.mxu0 %v536
    %602 = vmatprep.subr.mxu0 0.0
    %603 = vmatpush1.msra.mxu0 %v561
    %604 = vmatprep.subr.mxu0 0.0
    %605 = vmatpush1.msra.mxu0 %v562
    %606 = vmatprep.subr.mxu0 0.0
    %607 = vmatpush1.msra.mxu0 %v563
    %608 = vmatprep.subr.mxu0 0.0
    %609 = vmatpush1.msra.mxu0 %v564
    %610 = vmatprep.subr.mxu0 0.0
    %611 = vmatpush1.msra.mxu0 %v577
    %612 = vmatprep.subr.mxu0 0.0
    %613 = vmatpush1.msra.mxu0 %v578
    %614 = vmatprep.subr.mxu0 0.0
    %615 = vmatpush1.msra.mxu0 %v579
    %616 = vmatprep.subr.mxu0 0.0
    %617 = vmatpush1.msra.mxu0 %v580
    %618 = vmatprep.subr.mxu0 0.0
    %619 = vmatpush1.msra.mxu0 0.0
    %620 = vmatprep.subr.mxu0 0.0
    %621 = vmatpush1.msra.mxu0 0.0
    %622 = vmatprep.subr.mxu0 0.0
    %623 = vmatpush1.msra.mxu0 0.0
    %624 = vmatprep.subr.mxu0 0.0
    %625 = vmatpush1.msra.mxu0 0.0
    %626 = vmatprep.subr.mxu0 0.0
    %627 = vmatpush1.msra.mxu0 0.0
    %628 = vmatprep.subr.mxu0 0.0
    %629 = vmatpush1.msra.mxu0 0.0
    %630 = vmatprep.subr.mxu0 0.0
    %631 = vmatpush1.msra.mxu0 0.0
    %632 = vmatprep.subr.mxu0 0.0
    %633 = vmatpush1.msra.mxu0 0.0
    %634 = vmatprep.subr.mxu0 0.0
    %635 = vmatpush1.msra.mxu0 0.0
    %636 = vmatprep.subr.mxu0 0.0
    %637 = vmatpush1.msra.mxu0 0.0
    %638 = vmatprep.subr.mxu0 0.0
    %639 = vmatpush1.msra.mxu0 0.0
    %640 = vmatprep.subr.mxu0 0.0
    %641 = vmatpush1.msra.mxu0 0.0
    %642 = vmatprep.subr.mxu0 0.0
    %643 = vmatpush1.msra.mxu0 0.0
    %644 = vmatprep.subr.mxu0 0.0
    %645 = vmatpush1.msra.mxu0 0.0
    %646 = vmatprep.subr.mxu0 0.0
    %647 = vmatpush1.msra.mxu0 0.0
    %648 = vmatprep.subr.mxu0 0.0
    %649 = vmatpush1.msra.mxu0 0.0
    %650 = vmatprep.subr.mxu0 0.0
    %651 = vmatpush1.msra.mxu0 0.0
    %652 = vmatprep.subr.mxu0 0.0
    %653 = vmatpush1.msra.mxu0 0.0
    %654 = vmatprep.subr.mxu0 0.0
    %655 = vmatpush1.msra.mxu0 0.0
    %656 = vmatprep.subr.mxu0 0.0
    %657 = vmatpush1.msra.mxu0 0.0
    %658 = vmatprep.mubr.f32.mxu0 0.0
    %659 = vmatmul.mubr.f32.gmra.mrb[0].mxu0 %v583
    %v660 = vpop.f32.mrb[0].mxu0
    %v661 = vadd.f32 0.0, %v660
    %v662 = vpop.f32.mrb[0].mxu0
    %663 = vmatprep.mubr.f32.mxu0 0.0
    %664 = vmatmul.mubr.f32.gmra.mrb[0].mxu0 %v586
    %v665 = vpop.f32.mrb[0].mxu0
    %v666 = vadd.f32 0.0, %v665
    %v667 = vpop.f32.mrb[0].mxu0
    %668 = vmatprep.mubr.f32.mxu0 0.0
    %669 = vmatmul.mubr.f32.gmra.mrb[0].mxu0 %v589
    %v670 = vpop.f32.mrb[0].mxu0
    %v671 = vadd.f32 0.0, %v670
    %v672 = vpop.f32.mrb[0].mxu0
    %673 = vmatprep.mubr.f32.mxu0 0.0
    %674 = vmatmul.mubr.f32.gmra.mrb[0].mxu0 %v592
    %v675 = vpop.f32.mrb[0].mxu0
    %v676 = vadd.f32 0.0, %v675
    %v677 = vpop.f32.mrb[0].mxu0
    %678 = vdwg.mxu0
    %v679 = vld [vmem:[#allocation9] sm:$0xff]
    %v680 = vld [vmem:[#allocation9 + $0x8] sm:$0xff]
    %v681 = vld [vmem:[#allocation9 + $0x10] sm:$0xff]
    %v682 = vld [vmem:[#allocation9 + $0x18] sm:$0xff]
    %684 = vset.pattern.permute.xlu0 0
    %685 = vperm.xlu0 %684, %v679
    %v686 = vpop.permute.xlu0 %685
    %689 = vset.pattern.permute.xlu0 0
    %690 = vperm.xlu0 %689, %v680
    %v691 = vpop.permute.xlu0 %690
    %694 = vset.pattern.permute.xlu0 0
    %695 = vperm.xlu0 %694, %v681
    %v696 = vpop.permute.xlu0 %695
    %699 = vset.pattern.permute.xlu0 0
    %700 = vperm.xlu0 %699, %v682
    %v701 = vpop.permute.xlu0 %700
    %v703 = vmul.f32 %v661, %v686
    %v704 = vmul.f32 %v666, %v691
    %v705 = vmul.f32 %v671, %v696
    %v706 = vmul.f32 %v676, %v701
    %v707 = vld [vmem:[#allocation10] sm:$0xff]
    %v708 = vld [vmem:[#allocation10 + $0x8] sm:$0xff]
    %v709 = vld [vmem:[#allocation10 + $0x10] sm:$0xff]
    %v710 = vld [vmem:[#allocation10 + $0x18] sm:$0xff]
    %712 = vset.pattern.permute.xlu0 0
    %713 = vperm.xlu0 %712, %v707
    %v714 = vpop.permute.xlu0 %713
    %717 = vset.pattern.permute.xlu0 0
    %718 = vperm.xlu0 %717, %v708
    %v719 = vpop.permute.xlu0 %718
    %722 = vset.pattern.permute.xlu0 0
    %723 = vperm.xlu0 %722, %v709
    %v724 = vpop.permute.xlu0 %723
    %727 = vset.pattern.permute.xlu0 0
    %728 = vperm.xlu0 %727, %v710
    %v729 = vpop.permute.xlu0 %728
    %v731 = vadd.f32 %v703, %v714
    %v732 = vadd.f32 %v704, %v719
    %v733 = vadd.f32 %v705, %v724
    %v734 = vadd.f32 %v706, %v729
    %v735 = vsel %vm303, %v117, 0
    %v737 = vsel %vm303, %v118, 0
    %739 = vmatprep.subr.mxu0 0.0
    %740 = vmatpush1.msra.mxu0 %v299
    %741 = vmatprep.subr.mxu0 0.0
    %742 = vmatpush1.msra.mxu0 %v300
    %743 = vmatprep.subr.mxu0 0.0
    %744 = vmatpush1.msra.mxu0 %v301
    %745 = vmatprep.subr.mxu0 0.0
    %746 = vmatpush1.msra.mxu0 %v302
    %747 = vmatprep.subr.mxu0 0.0
    %748 = vmatpush1.msra.mxu0 0.0
    %749 = vmatprep.subr.mxu0 0.0
    %750 = vmatpush1.msra.mxu0 0.0
    %751 = vmatprep.subr.mxu0 0.0
    %752 = vmatpush1.msra.mxu0 0.0
    %753 = vmatprep.subr.mxu0 0.0
    %754 = vmatpush1.msra.mxu0 0.0
    %755 = vmatprep.subr.mxu0 0.0
    %756 = vmatpush1.msra.mxu0 0.0
    %757 = vmatprep.subr.mxu0 0.0
    %758 = vmatpush1.msra.mxu0 0.0
    %759 = vmatprep.subr.mxu0 0.0
    %760 = vmatpush1.msra.mxu0 0.0
    %761 = vmatprep.subr.mxu0 0.0
    %762 = vmatpush1.msra.mxu0 0.0
    %763 = vmatprep.subr.mxu0 0.0
    %764 = vmatpush1.msra.mxu0 0.0
    %765 = vmatprep.subr.mxu0 0.0
    %766 = vmatpush1.msra.mxu0 0.0
    %767 = vmatprep.subr.mxu0 0.0
    %768 = vmatpush1.msra.mxu0 0.0
    %769 = vmatprep.subr.mxu0 0.0
    %770 = vmatpush1.msra.mxu0 0.0
    %771 = vmatprep.subr.mxu0 0.0
    %772 = vmatpush1.msra.mxu0 0.0
    %773 = vmatprep.subr.mxu0 0.0
    %774 = vmatpush1.msra.mxu0 0.0
    %775 = vmatprep.subr.mxu0 0.0
    %776 = vmatpush1.msra.mxu0 0.0
    %777 = vmatprep.subr.mxu0 0.0
    %778 = vmatpush1.msra.mxu0 0.0
    %779 = vmatprep.subr.mxu0 0.0
    %780 = vmatpush1.msra.mxu0 0.0
    %781 = vmatprep.subr.mxu0 0.0
    %782 = vmatpush1.msra.mxu0 0.0
    %783 = vmatprep.subr.mxu0 0.0
    %784 = vmatpush1.msra.mxu0 0.0
    %785 = vmatprep.subr.mxu0 0.0
    %786 = vmatpush1.msra.mxu0 0.0
    %787 = vmatprep.subr.mxu0 0.0
    %788 = vmatpush1.msra.mxu0 0.0
    %789 = vmatprep.subr.mxu0 0.0
    %790 = vmatpush1.msra.mxu0 0.0
    %791 = vmatprep.subr.mxu0 0.0
    %792 = vmatpush1.msra.mxu0 0.0
    %793 = vmatprep.subr.mxu0 0.0
    %794 = vmatpush1.msra.mxu0 0.0
    %795 = vmatprep.subr.mxu0 0.0
    %796 = vmatpush1.msra.mxu0 0.0
    %797 = vmatprep.subr.mxu0 0.0
    %798 = vmatpush1.msra.mxu0 0.0
    %799 = vmatprep.subr.mxu0 0.0
    %800 = vmatpush1.msra.mxu0 0.0
    %801 = vmatprep.subr.mxu0 0.0
    %802 = vmatpush1.msra.mxu0 0.0
    %803 = vmatprep.mubr.f32.mxu0 0.0
    %804 = vmatmul.mubr.f32.gmra.mrb[0].mxu0 %v735
    %v805 = vpop.f32.mrb[0].mxu0
    %v806 = vadd.f32 0.0, %v805
    %v807 = vpop.f32.mrb[0].mxu0
    %808 = vmatprep.mubr.f32.mxu0 0.0
    %809 = vmatmul.mubr.f32.gmra.mrb[0].mxu0 %v737
    %v810 = vpop.f32.mrb[0].mxu0
    %v811 = vadd.f32 0.0, %v810
    %v812 = vpop.f32.mrb[0].mxu0
    %813 = vdwg.mxu0
    %v814 = vld [vmem:[%s7] sm:$0xff]
    %v815 = vld [vmem:[%s7 + $0x8] sm:$0xff]
    %v816 = vld [vmem:[%s7 + $0x10] sm:$0xff]
    %v817 = vld [vmem:[%s7 + $0x18] sm:$0xff]
    %v819 = vsel %vm160, %v814, 0
    %v822 = vsel %vm160, %v815, 0
    %v825 = vsel %vm160, %v816, 0
    %v828 = vsel %vm160, %v817, 0
    %830 = vmatprep.subr.mxu0 0.0
    %831 = vmatpush1.msra.mxu0 %v806
    %832 = vmatprep.subr.mxu0 0.0
    %833 = vmatpush1.msra.mxu0 %v811
    %834 = vmatprep.subr.mxu0 0.0
    %835 = vmatpush1.msra.mxu0 0.0
    %836 = vmatprep.subr.mxu0 0.0
    %837 = vmatpush1.msra.mxu0 0.0
    %838 = vmatprep.subr.mxu0 0.0
    %839 = vmatpush1.msra.mxu0 0.0
    %840 = vmatprep.subr.mxu0 0.0
    %841 = vmatpush1.msra.mxu0 0.0
    %842 = vmatprep.subr.mxu0 0.0
    %843 = vmatpush1.msra.mxu0 0.0
    %844 = vmatprep.subr.mxu0 0.0
    %845 = vmatpush1.msra.mxu0 0.0
    %846 = vmatprep.subr.mxu0 0.0
    %847 = vmatpush1.msra.mxu0 0.0
    %848 = vmatprep.subr.mxu0 0.0
    %849 = vmatpush1.msra.mxu0 0.0
    %850 = vmatprep.subr.mxu0 0.0
    %851 = vmatpush1.msra.mxu0 0.0
    %852 = vmatprep.subr.mxu0 0.0
    %853 = vmatpush1.msra.mxu0 0.0
    %854 = vmatprep.subr.mxu0 0.0
    %855 = vmatpush1.msra.mxu0 0.0
    %856 = vmatprep.subr.mxu0 0.0
    %857 = vmatpush1.msra.mxu0 0.0
    %858 = vmatprep.subr.mxu0 0.0
    %859 = vmatpush1.msra.mxu0 0.0
    %860 = vmatprep.subr.mxu0 0.0
    %861 = vmatpush1.msra.mxu0 0.0
    %862 = vmatprep.subr.mxu0 0.0
    %863 = vmatpush1.msra.mxu0 0.0
    %864 = vmatprep.subr.mxu0 0.0
    %865 = vmatpush1.msra.mxu0 0.0
    %866 = vmatprep.subr.mxu0 0.0
    %867 = vmatpush1.msra.mxu0 0.0
    %868 = vmatprep.subr.mxu0 0.0
    %869 = vmatpush1.msra.mxu0 0.0
    %870 = vmatprep.subr.mxu0 0.0
    %871 = vmatpush1.msra.mxu0 0.0
    %872 = vmatprep.subr.mxu0 0.0
    %873 = vmatpush1.msra.mxu0 0.0
    %874 = vmatprep.subr.mxu0 0.0
    %875 = vmatpush1.msra.mxu0 0.0
    %876 = vmatprep.subr.mxu0 0.0
    %877 = vmatpush1.msra.mxu0 0.0
    %878 = vmatprep.subr.mxu0 0.0
    %879 = vmatpush1.msra.mxu0 0.0
    %880 = vmatprep.subr.mxu0 0.0
    %881 = vmatpush1.msra.mxu0 0.0
    %882 = vmatprep.subr.mxu0 0.0
    %883 = vmatpush1.msra.mxu0 0.0
    %884 = vmatprep.subr.mxu0 0.0
    %885 = vmatpush1.msra.mxu0 0.0
    %886 = vmatprep.subr.mxu0 0.0
    %887 = vmatpush1.msra.mxu0 0.0
    %888 = vmatprep.subr.mxu0 0.0
    %889 = vmatpush1.msra.mxu0 0.0
    %890 = vmatprep.subr.mxu0 0.0
    %891 = vmatpush1.msra.mxu0 0.0
    %892 = vmatprep.subr.mxu0 0.0
    %893 = vmatpush1.msra.mxu0 0.0
    %894 = vmatprep.mubr.f32.mxu0 0.0
    %895 = vmatmul.mubr.f32.gmra.mrb[0].mxu0 %v819
    %v896 = vpop.f32.mrb[0].mxu0
    %v897 = vadd.f32 0.0, %v896
    %v898 = vpop.f32.mrb[0].mxu0
    %899 = vmatprep.mubr.f32.mxu0 0.0
    %900 = vmatmul.mubr.f32.gmra.mrb[0].mxu0 %v822
    %v901 = vpop.f32.mrb[0].mxu0
    %v902 = vadd.f32 0.0, %v901
    %v903 = vpop.f32.mrb[0].mxu0
    %904 = vmatprep.mubr.f32.mxu0 0.0
    %905 = vmatmul.mubr.f32.gmra.mrb[0].mxu0 %v825
    %v906 = vpop.f32.mrb[0].mxu0
    %v907 = vadd.f32 0.0, %v906
    %v908 = vpop.f32.mrb[0].mxu0
    %909 = vmatprep.mubr.f32.mxu0 0.0
    %910 = vmatmul.mubr.f32.gmra.mrb[0].mxu0 %v828
    %v911 = vpop.f32.mrb[0].mxu0
    %v912 = vadd.f32 0.0, %v911
    %v913 = vpop.f32.mrb[0].mxu0
    %914 = vdwg.mxu0
    %v915 = vld [vmem:[%s8] sm:$0xff]
    %v916 = vld [vmem:[%s8 + $0x8] sm:$0xff]
    %v917 = vld [vmem:[%s8 + $0x10] sm:$0xff]
    %v918 = vld [vmem:[%s8 + $0x18] sm:$0xff]
    %920 = vset.pattern.permute.xlu0 0
    %921 = vperm.xlu0 %920, %v915
    %v922 = vpop.permute.xlu0 %921
    %925 = vset.pattern.permute.xlu0 0
    %926 = vperm.xlu0 %925, %v916
    %v927 = vpop.permute.xlu0 %926
    %930 = vset.pattern.permute.xlu0 0
    %931 = vperm.xlu0 %930, %v917
    %v932 = vpop.permute.xlu0 %931
    %935 = vset.pattern.permute.xlu0 0
    %936 = vperm.xlu0 %935, %v918
    %v937 = vpop.permute.xlu0 %936
    %v939 = vmul.f32 %v897, %v922
    %v940 = vmul.f32 %v902, %v927
    %v941 = vmul.f32 %v907, %v932
    %v942 = vmul.f32 %v912, %v937
    %v943 = vld [vmem:[%s9] sm:$0xff]
    %v944 = vld [vmem:[%s9 + $0x8] sm:$0xff]
    %v945 = vld [vmem:[%s9 + $0x10] sm:$0xff]
    %v946 = vld [vmem:[%s9 + $0x18] sm:$0xff]
    %948 = vset.pattern.permute.xlu0 0
    %949 = vperm.xlu0 %948, %v943
    %v950 = vpop.permute.xlu0 %949
    %953 = vset.pattern.permute.xlu0 0
    %954 = vperm.xlu0 %953, %v944
    %v955 = vpop.permute.xlu0 %954
    %958 = vset.pattern.permute.xlu0 0
    %959 = vperm.xlu0 %958, %v945
    %v960 = vpop.permute.xlu0 %959
    %963 = vset.pattern.permute.xlu0 0
    %964 = vperm.xlu0 %963, %v946
    %v965 = vpop.permute.xlu0 %964
    %v967 = vadd.f32 %v939, %v950
    %v968 = vadd.f32 %v940, %v955
    %v969 = vadd.f32 %v941, %v960
    %v970 = vadd.f32 %v942, %v965
    %v971 = vadd.f32 %v731, %v967
    %v972 = vadd.f32 %v732, %v968
    %v973 = vadd.f32 %v733, %v969
    %v974 = vadd.f32 %v734, %v970
    %v975 = vmax.f32 %v971, 0.0
    %v976 = vmax.f32 %v972, 0.0
    %v977 = vmax.f32 %v973, 0.0
    %v978 = vmax.f32 %v974, 0.0
    %979 = vst.msk [vmem:[%s10] sm:$0xff] %vm160, %v975
    %980 = vst.msk [vmem:[%s10 + $0x8] sm:$0xff] %vm160, %v976
    %981 = vst.msk [vmem:[%s10 + $0x10] sm:$0xff] %vm160, %v977
    %982 = vst.msk [vmem:[%s10 + $0x18] sm:$0xff] %vm160, %v978
    // Predicated region
    $region66: #{run.9} parent=1 // pred_check
      _
    $region67: #{run.9} parent=1 // pred_check_branch
      %984 = sbr.rel (0) target = $region69
    $region68: #{run.9} parent=1 // pred_region
      _
    $region69: #{run.9} parent=1 // pred_fallthru
      _
    // Predicated region
    $region70: #{run.9} parent=1 // pred_check
      _
    $region71: #{run.9} parent=1 // pred_check_branch
      %986 = sbr.rel (0) target = $region73
    $region72: #{run.9} parent=1 // pred_region
      _
    $region73: #{run.9} parent=1 // pred_fallthru
      _
    %987 = vsyncpa [#allocation3], 1
    %988 = vsyncpa [#allocation5], 1
    %989 = vsyncpa [#allocation8], 1
    %990 = vsyncpa [#allocation11], 1

// kernel: run.10
$region0: #{run.10}
  #allocation0 [shape = 'u32[]', space=smem, size = 0x4, offset = 0x4, fixed_abs, tag = 'smem constant byte address 0x4 - core index']
  #allocation1 [shape = 'u32[144,128]{1,0:T(1,128)}', space=vmem, size = 0x12000, scoped, tag = 'internal scratch']
  %s0 = inlined_call_operand.vmem [shape: f32[32,16], index: 0, kind: input, shape index: {}]
  %s1 = inlined_call_operand.hbm [shape: f32[64,96], index: 1, kind: input, shape index: {}]
  %s2 = inlined_call_operand.hbm [shape: f32[64,1], index: 2, kind: input, shape index: {}]
  %s3 = inlined_call_operand.vmem [shape: f32[64,1], index: 3, kind: input, shape index: {}]
  %s4 = inlined_call_operand.vmem [shape: f32[64,192], index: 4, kind: input, shape index: {}]
  %s5 = inlined_call_operand.vmem [shape: f32[64,1], index: 5, kind: input, shape index: {}]
  %s6 = inlined_call_operand.vmem [shape: f32[64,1], index: 6, kind: input, shape index: {}]
  %s7 = inlined_call_operand.vmem [shape: f32[64,32], index: 7, kind: input, shape index: {}]
  %s8 = inlined_call_operand.vmem [shape: f32[64,1], index: 8, kind: input, shape index: {}]
  %s9 = inlined_call_operand.vmem [shape: f32[64,1], index: 9, kind: input, shape index: {}]
  %s10 = inlined_call_operand.vmem [shape: f32[64,8], index: 10, kind: output, shape index: {}]
  %s11 = sld [smem:[#allocation0]]
  $region58: #{run.10} parent=0
    _
  %s13 = ssub.s32 1, %s11
  %s14 = scalar_select 0, %s13, %s11
  $region1: #{run.10} parent=0
    #allocation2 [shape = 'u8[32768]{0}', space=vmem, size = 0x8000, scoped, tag = 'input window, operand 1, single buffered']
    #allocation3 [shape = 's32[1]{0}', space=sflag, size = 0x4, scoped, tag = 'scoped memory for run.10']
    #allocation4 [shape = 'u8[32768]{0}', space=vmem, size = 0x8000, scoped, tag = 'input window, operand 2, single buffered']
    #allocation5 [shape = 's32[1]{0}', space=sflag, size = 0x4, scoped, tag = 'scoped memory for run.10']
    %15 = vsyncpa [#allocation3], 0
    %16 = vsyncpa [#allocation5], 0
    // Predicated region
    $region2: #{run.10} parent=1 // pred_check
      _
    $region3: #{run.10} parent=1 // pred_check_branch
      %18 = sbr.rel (0) target = $region5
    $region4: #{run.10} parent=1 // pred_region
      _
    $region5: #{run.10} parent=1 // pred_fallthru
      _
    // Predicated region
    $region6: #{run.10} parent=1 // pred_check
      _
    $region7: #{run.10} parent=1 // pred_check_branch
      %20 = sbr.rel (0) target = $region9
    $region8: #{run.10} parent=1 // pred_region
      %s22 = ssub.s32 1024, 1024
      %23 = vsyncadd [#allocation3], %s22
      %s24 = sshll.u32 [#allocation2], 4
      %s25 = int_to_ptr.vmem [resolvable:$true] %s24
      %30 = dma.hbm_to_vmem [thread:$0]  %s1, 1024, %s25, [#allocation3], 128, 128, 8
    $region9: #{run.10} parent=1 // pred_fallthru
      _
    // Predicated region
    $region10: #{run.10} parent=1 // pred_check
      _
    $region11: #{run.10} parent=1 // pred_check_branch
      %32 = sbr.rel (0) target = $region13
    $region12: #{run.10} parent=1 // pred_region
      %s34 = ssub.s32 1024, 1024
      %35 = vsyncadd [#allocation5], %s34
      %s36 = sshll.u32 [#allocation4], 4
      %s37 = int_to_ptr.vmem [resolvable:$true] %s36
      %42 = dma.hbm_to_vmem [thread:$0]  %s2, 1024, %s37, [#allocation5], 128, 128, 8
    $region13: #{run.10} parent=1 // pred_fallthru
      _
    // Predicated region
    $region14: #{run.10} parent=1 // pred_check
      _
    $region15: #{run.10} parent=1 // pred_check_branch
      %44 = sbr.rel (0) target = $region17
    $region16: #{run.10} parent=1 // pred_region
      _
    $region17: #{run.10} parent=1 // pred_fallthru
      _
    // Predicated region
    $region18: #{run.10} parent=1 // pred_check
      _
    $region19: #{run.10} parent=1 // pred_check_branch
      %46 = sbr.rel (0) target = $region21
    $region20: #{run.10} parent=1 // pred_region
      _
    $region21: #{run.10} parent=1 // pred_fallthru
      _
    // Predicated region
    $region22: #{run.10} parent=1 // pred_check
      _
    $region23: #{run.10} parent=1 // pred_check_branch
      %48 = sbr.rel (0) target = $region25
    $region24: #{run.10} parent=1 // pred_region
      _
    $region25: #{run.10} parent=1 // pred_fallthru
      _
    // Predicated region
    $region26: #{run.10} parent=1 // pred_check
      _
    $region27: #{run.10} parent=1 // pred_check_branch
      %50 = sbr.rel (0) target = $region29
    $region28: #{run.10} parent=1 // pred_region
      _
    $region29: #{run.10} parent=1 // pred_fallthru
      _
    // Predicated region
    $region30: #{run.10} parent=1 // pred_check
      _
    $region31: #{run.10} parent=1 // pred_check_branch
      %52 = sbr.rel (0) target = $region33
    $region32: #{run.10} parent=1 // pred_region
      _
    $region33: #{run.10} parent=1 // pred_fallthru
      _
    // Predicated region
    $region34: #{run.10} parent=1 // pred_check
      _
    $region35: #{run.10} parent=1 // pred_check_branch
      %54 = sbr.rel (0) target = $region37
    $region36: #{run.10} parent=1 // pred_region
      _
    $region37: #{run.10} parent=1 // pred_fallthru
      _
    // Predicated region
    $region38: #{run.10} parent=1 // pred_check
      _
    $region39: #{run.10} parent=1 // pred_check_branch
      %56 = sbr.rel (0) target = $region41
    $region40: #{run.10} parent=1 // pred_region
      _
    $region41: #{run.10} parent=1 // pred_fallthru
      _
    // Predicated region
    $region42: #{run.10} parent=1 // pred_check
      _
    $region43: #{run.10} parent=1 // pred_check_branch
      %58 = sbr.rel (0) target = $region45
    $region44: #{run.10} parent=1 // pred_region
      %59 = dma.done [#allocation3], 1024
    $region45: #{run.10} parent=1 // pred_fallthru
      _
    // Predicated region
    $region46: #{run.10} parent=1 // pred_check
      _
    $region47: #{run.10} parent=1 // pred_check_branch
      %61 = sbr.rel (0) target = $region49
    $region48: #{run.10} parent=1 // pred_region
      %62 = dma.done [#allocation5], 1024
    $region49: #{run.10} parent=1 // pred_fallthru
      _
    %v63 = vld [vmem:[%s0] sm:$0xff]
    %v64 = vld [vmem:[%s0 + $0x8] sm:$0xff]
    %v65 = vld [vmem:[%s0 + $0x10] sm:$0xff]
    %v66 = vld [vmem:[%s0 + $0x18] sm:$0xff]
    %v67 = vld [vmem:[#allocation2] sm:$0xff]
    %v68 = vld [vmem:[#allocation2 + $0x8] sm:$0xff]
    %v69 = vld [vmem:[#allocation2 + $0x10] sm:$0xff]
    %v70 = vld [vmem:[#allocation2 + $0x18] sm:$0xff]
    %v71 = vld [vmem:[#allocation2 + $0x20] sm:$0xff]
    %v72 = vld [vmem:[#allocation2 + $0x28] sm:$0xff]
    %v73 = vld [vmem:[#allocation2 + $0x30] sm:$0xff]
    %v74 = vld [vmem:[#allocation2 + $0x38] sm:$0xff]
    %79 = vrot.lane.b32.xlu0 %v63, 1
    %v80 = vpop.permute.xlu0 %79
    %81 = vrot.lane.b32.xlu0 %v64, 1
    %v82 = vpop.permute.xlu0 %81
    %83 = vrot.lane.b32.xlu0 %v65, 1
    %v84 = vpop.permute.xlu0 %83
    %85 = vrot.lane.b32.xlu0 %v66, 1
    %v86 = vpop.permute.xlu0 %85
    %91 = vrot.lane.b32.xlu0 %v63, 3
    %v92 = vpop.permute.xlu0 %91
    %93 = vrot.lane.b32.xlu0 %v64, 3
    %v94 = vpop.permute.xlu0 %93
    %95 = vrot.lane.b32.xlu0 %v65, 3
    %v96 = vpop.permute.xlu0 %95
    %97 = vrot.lane.b32.xlu0 %v66, 3
    %v98 = vpop.permute.xlu0 %97
    %vm103 = vcmask 7168
    %v104 = vsel %vm103, 0.0, %v80
    %v105 = vsel %vm103, 0.0, %v82
    %v106 = vsel %vm103, 0.0, %v84
    %v107 = vsel %vm103, 0.0, %v86
    %vm108 = vcmask 72704
    %v109 = vsel %vm108, %v104, 0.0
    %v110 = vsel %vm108, %v105, 0.0
    %v111 = vsel %vm108, %v106, 0.0
    %v112 = vsel %vm108, %v107, 0.0
    %vm113 = vcmask 80896
    %v114 = vsel %vm113, %v109, 0.0
    %v115 = vsel %vm113, %v110, 0.0
    %v116 = vsel %vm113, %v111, 0.0
    %v117 = vsel %vm113, %v112, 0.0
    %vm118 = vcmask 89088
    %v119 = vsel %vm118, %v114, %v92
    %v120 = vsel %vm118, %v115, %v94
    %v121 = vsel %vm118, %v116, %v96
    %v122 = vsel %vm118, %v117, %v98
    %vm123 = vcmask 154624
    %v124 = vsel %vm123, %v119, 0.0
    %v125 = vsel %vm123, %v120, 0.0
    %v126 = vsel %vm123, %v121, 0.0
    %v127 = vsel %vm123, %v122, 0.0
    %132 = vrot.lane.b32.xlu0 %v124, 126
    %v133 = vpop.permute.xlu0 %132
    %134 = vrot.lane.b32.xlu0 %v125, 126
    %v135 = vpop.permute.xlu0 %134
    %136 = vrot.lane.b32.xlu0 %v126, 126
    %v137 = vpop.permute.xlu0 %136
    %138 = vrot.lane.b32.xlu0 %v127, 126
    %v139 = vpop.permute.xlu0 %138
    %vm144 = vcmask 64512
    %v145 = vsel %vm144, %v124, %v133
    %v146 = vsel %vm144, %v125, %v135
    %v147 = vsel %vm144, %v126, %v137
    %v148 = vsel %vm144, %v127, %v139
    %149 = vrot.lane.b32.xlu0 %v124, 127
    %v150 = vpop.permute.xlu0 %149
    %151 = vrot.lane.b32.xlu0 %v125, 127
    %v152 = vpop.permute.xlu0 %151
    %153 = vrot.lane.b32.xlu0 %v126, 127
    %v154 = vpop.permute.xlu0 %153
    %155 = vrot.lane.b32.xlu0 %v127, 127
    %v156 = vpop.permute.xlu0 %155
    %161 = vrot.lane.b32.xlu0 %v124, 125
    %v162 = vpop.permute.xlu0 %161
    %163 = vrot.lane.b32.xlu0 %v125, 125
    %v164 = vpop.permute.xlu0 %163
    %165 = vrot.lane.b32.xlu0 %v126, 125
    %v166 = vpop.permute.xlu0 %165
    %167 = vrot.lane.b32.xlu0 %v127, 125
    %v168 = vpop.permute.xlu0 %167
    %v173 = vsel %vm144, %v150, %v162
    %v174 = vsel %vm144, %v152, %v164
    %v175 = vsel %vm144, %v154, %v166
    %v176 = vsel %vm144, %v156, %v168
    %177 = vrot.lane.b32.xlu0 %v124, 124
    %v178 = vpop.permute.xlu0 %177
    %179 = vrot.lane.b32.xlu0 %v125, 124
    %v180 = vpop.permute.xlu0 %179
    %181 = vrot.lane.b32.xlu0 %v126, 124
    %v182 = vpop.permute.xlu0 %181
    %183 = vrot.lane.b32.xlu0 %v127, 124
    %v184 = vpop.permute.xlu0 %183
    %v189 = vsel %vm144, %v133, %v178
    %v190 = vsel %vm144, %v135, %v180
    %v191 = vsel %vm144, %v137, %v182
    %v192 = vsel %vm144, %v139, %v184
    %vm193 = vcmask 785408
    %v195 = vsel %vm193, %v67, 0
    %v198 = vsel %vm193, %v68, 0
    %v201 = vsel %vm193, %v69, 0
    %v204 = vsel %vm193, %v70, 0
    %v207 = vsel %vm193, %v71, 0
    %v210 = vsel %vm193, %v72, 0
    %v213 = vsel %vm193, %v73, 0
    %v216 = vsel %vm193, %v74, 0
    %218 = vmatprep.subr.mxu0 0.0
    %219 = vmatpush1.msra.mxu0 %v145
    %220 = vmatprep.subr.mxu0 0.0
    %221 = vmatpush1.msra.mxu0 %v146
    %222 = vmatprep.subr.mxu0 0.0
    %223 = vmatpush1.msra.mxu0 %v147
    %224 = vmatprep.subr.mxu0 0.0
    %225 = vmatpush1.msra.mxu0 %v148
    %226 = vmatprep.subr.mxu0 0.0
    %227 = vmatpush1.msra.mxu0 %v173
    %228 = vmatprep.subr.mxu0 0.0
    %229 = vmatpush1.msra.mxu0 %v174
    %230 = vmatprep.subr.mxu0 0.0
    %231 = vmatpush1.msra.mxu0 %v175
    %232 = vmatprep.subr.mxu0 0.0
    %233 = vmatpush1.msra.mxu0 %v176
    %234 = vmatprep.subr.mxu0 0.0
    %235 = vmatpush1.msra.mxu0 %v189
    %236 = vmatprep.subr.mxu0 0.0
    %237 = vmatpush1.msra.mxu0 %v190
    %238 = vmatprep.subr.mxu0 0.0
    %239 = vmatpush1.msra.mxu0 %v191
    %240 = vmatprep.subr.mxu0 0.0
    %241 = vmatpush1.msra.mxu0 %v192
    %242 = vmatprep.subr.mxu0 0.0
    %243 = vmatpush1.msra.mxu0 0.0
    %244 = vmatprep.subr.mxu0 0.0
    %245 = vmatpush1.msra.mxu0 0.0
    %246 = vmatprep.subr.mxu0 0.0
    %247 = vmatpush1.msra.mxu0 0.0
    %248 = vmatprep.subr.mxu0 0.0
    %249 = vmatpush1.msra.mxu0 0.0
    %250 = vmatprep.subr.mxu0 0.0
    %251 = vmatpush1.msra.mxu0 0.0
    %252 = vmatprep.subr.mxu0 0.0
    %253 = vmatpush1.msra.mxu0 0.0
    %254 = vmatprep.subr.mxu0 0.0
    %255 = vmatpush1.msra.mxu0 0.0
    %256 = vmatprep.subr.mxu0 0.0
    %257 = vmatpush1.msra.mxu0 0.0
    %258 = vmatprep.subr.mxu0 0.0
    %259 = vmatpush1.msra.mxu0 0.0
    %260 = vmatprep.subr.mxu0 0.0
    %261 = vmatpush1.msra.mxu0 0.0
    %262 = vmatprep.subr.mxu0 0.0
    %263 = vmatpush1.msra.mxu0 0.0
    %264 = vmatprep.subr.mxu0 0.0
    %265 = vmatpush1.msra.mxu0 0.0
    %266 = vmatprep.subr.mxu0 0.0
    %267 = vmatpush1.msra.mxu0 0.0
    %268 = vmatprep.subr.mxu0 0.0
    %269 = vmatpush1.msra.mxu0 0.0
    %270 = vmatprep.subr.mxu0 0.0
    %271 = vmatpush1.msra.mxu0 0.0
    %272 = vmatprep.subr.mxu0 0.0
    %273 = vmatpush1.msra.mxu0 0.0
    %274 = vmatprep.subr.mxu0 0.0
    %275 = vmatpush1.msra.mxu0 0.0
    %276 = vmatprep.subr.mxu0 0.0
    %277 = vmatpush1.msra.mxu0 0.0
    %278 = vmatprep.subr.mxu0 0.0
    %279 = vmatpush1.msra.mxu0 0.0
    %280 = vmatprep.subr.mxu0 0.0
    %281 = vmatpush1.msra.mxu0 0.0
    %282 = vmatprep.mubr.f32.mxu0 0.0
    %283 = vmatmul.mubr.f32.gmra.mrb[0].mxu0 %v195
    %v284 = vpop.f32.mrb[0].mxu0
    %v285 = vadd.f32 0.0, %v284
    %v286 = vpop.f32.mrb[0].mxu0
    %287 = vmatprep.mubr.f32.mxu0 0.0
    %288 = vmatmul.mubr.f32.gmra.mrb[0].mxu0 %v198
    %v289 = vpop.f32.mrb[0].mxu0
    %v290 = vadd.f32 0.0, %v289
    %v291 = vpop.f32.mrb[0].mxu0
    %292 = vmatprep.mubr.f32.mxu0 0.0
    %293 = vmatmul.mubr.f32.gmra.mrb[0].mxu0 %v201
    %v294 = vpop.f32.mrb[0].mxu0
    %v295 = vadd.f32 0.0, %v294
    %v296 = vpop.f32.mrb[0].mxu0
    %297 = vmatprep.mubr.f32.mxu0 0.0
    %298 = vmatmul.mubr.f32.gmra.mrb[0].mxu0 %v204
    %v299 = vpop.f32.mrb[0].mxu0
    %v300 = vadd.f32 0.0, %v299
    %v301 = vpop.f32.mrb[0].mxu0
    %302 = vmatprep.mubr.f32.mxu0 0.0
    %303 = vmatmul.mubr.f32.gmra.mrb[0].mxu0 %v207
    %v304 = vpop.f32.mrb[0].mxu0
    %v305 = vadd.f32 0.0, %v304
    %v306 = vpop.f32.mrb[0].mxu0
    %307 = vmatprep.mubr.f32.mxu0 0.0
    %308 = vmatmul.mubr.f32.gmra.mrb[0].mxu0 %v210
    %v309 = vpop.f32.mrb[0].mxu0
    %v310 = vadd.f32 0.0, %v309
    %v311 = vpop.f32.mrb[0].mxu0
    %312 = vmatprep.mubr.f32.mxu0 0.0
    %313 = vmatmul.mubr.f32.gmra.mrb[0].mxu0 %v213
    %v314 = vpop.f32.mrb[0].mxu0
    %v315 = vadd.f32 0.0, %v314
    %v316 = vpop.f32.mrb[0].mxu0
    %317 = vmatprep.mubr.f32.mxu0 0.0
    %318 = vmatmul.mubr.f32.gmra.mrb[0].mxu0 %v216
    %v319 = vpop.f32.mrb[0].mxu0
    %v320 = vadd.f32 0.0, %v319
    %v321 = vpop.f32.mrb[0].mxu0
    %322 = vdwg.mxu0
    %v323 = vlaneseq
    %v324 = vshrl.u32 %v323, 7
    %v325 = vadd.s32 %v324, 8
    %v326 = vlaneseq
    %v327 = vand.u32 %v326, 127
    %v328 = vmul.u32 %v327, 2
    %vm329 = vcmp.eq.s32.totalorder %v324, %v328
    %vm330 = vcmp.eq.s32.totalorder %v325, %v328
    %v331 = vsel %vm329, 1, 0
    %v332 = vsel %vm330, 1, 0
    %v333 = vcvt.s32.f32 %v331
    %v334 = vcvt.s32.f32 %v332
    %vm335 = vcmask 130048
    %v337 = vsel %vm335, %v285, 0
    %v340 = vsel %vm335, %v290, 0
    %v343 = vsel %vm335, %v295, 0
    %v346 = vsel %vm335, %v300, 0
    %v349 = vsel %vm335, %v305, 0
    %v352 = vsel %vm335, %v310, 0
    %v355 = vsel %vm335, %v315, 0
    %v358 = vsel %vm335, %v320, 0
    %360 = vmatprep.subr.mxu0 0.0
    %361 = vmatpush1.msra.mxu0 %v333
    %362 = vmatprep.subr.mxu0 0.0
    %363 = vmatpush1.msra.mxu0 %v334
    %364 = vmatprep.subr.mxu0 0.0
    %365 = vmatpush1.msra.mxu0 0.0
    %366 = vmatprep.subr.mxu0 0.0
    %367 = vmatpush1.msra.mxu0 0.0
    %368 = vmatprep.subr.mxu0 0.0
    %369 = vmatpush1.msra.mxu0 0.0
    %370 = vmatprep.subr.mxu0 0.0
    %371 = vmatpush1.msra.mxu0 0.0
    %372 = vmatprep.subr.mxu0 0.0
    %373 = vmatpush1.msra.mxu0 0.0
    %374 = vmatprep.subr.mxu0 0.0
    %375 = vmatpush1.msra.mxu0 0.0
    %376 = vmatprep.subr.mxu0 0.0
    %377 = vmatpush1.msra.mxu0 0.0
    %378 = vmatprep.subr.mxu0 0.0
    %379 = vmatpush1.msra.mxu0 0.0
    %380 = vmatprep.subr.mxu0 0.0
    %381 = vmatpush1.msra.mxu0 0.0
    %382 = vmatprep.subr.mxu0 0.0
    %383 = vmatpush1.msra.mxu0 0.0
    %384 = vmatprep.subr.mxu0 0.0
    %385 = vmatpush1.msra.mxu0 0.0
    %386 = vmatprep.subr.mxu0 0.0
    %387 = vmatpush1.msra.mxu0 0.0
    %388 = vmatprep.subr.mxu0 0.0
    %389 = vmatpush1.msra.mxu0 0.0
    %390 = vmatprep.subr.mxu0 0.0
    %391 = vmatpush1.msra.mxu0 0.0
    %392 = vmatprep.subr.mxu0 0.0
    %393 = vmatpush1.msra.mxu0 0.0
    %394 = vmatprep.subr.mxu0 0.0
    %395 = vmatpush1.msra.mxu0 0.0
    %396 = vmatprep.subr.mxu0 0.0
    %397 = vmatpush1.msra.mxu0 0.0
    %398 = vmatprep.subr.mxu0 0.0
    %399 = vmatpush1.msra.mxu0 0.0
    %400 = vmatprep.subr.mxu0 0.0
    %401 = vmatpush1.msra.mxu0 0.0
    %402 = vmatprep.subr.mxu0 0.0
    %403 = vmatpush1.msra.mxu0 0.0
    %404 = vmatprep.subr.mxu0 0.0
    %405 = vmatpush1.msra.mxu0 0.0
    %406 = vmatprep.subr.mxu0 0.0
    %407 = vmatpush1.msra.mxu0 0.0
    %408 = vmatprep.subr.mxu0 0.0
    %409 = vmatpush1.msra.mxu0 0.0
    %410 = vmatprep.subr.mxu0 0.0
    %411 = vmatpush1.msra.mxu0 0.0
    %412 = vmatprep.subr.mxu0 0.0
    %413 = vmatpush1.msra.mxu0 0.0
    %414 = vmatprep.subr.mxu0 0.0
    %415 = vmatpush1.msra.mxu0 0.0
    %416 = vmatprep.subr.mxu0 0.0
    %417 = vmatpush1.msra.mxu0 0.0
    %418 = vmatprep.subr.mxu0 0.0
    %419 = vmatpush1.msra.mxu0 0.0
    %420 = vmatprep.subr.mxu0 0.0
    %421 = vmatpush1.msra.mxu0 0.0
    %422 = vmatprep.subr.mxu0 0.0
    %423 = vmatpush1.msra.mxu0 0.0
    %424 = vmatprep.mubr.f32.mxu0 0.0
    %425 = vmatmul.mubr.f32.gmra.mrb[0].mxu0 %v337
    %v426 = vpop.f32.mrb[0].mxu0
    %v427 = vadd.f32 0.0, %v426
    %v428 = vpop.f32.mrb[0].mxu0
    %429 = vmatprep.mubr.f32.mxu0 0.0
    %430 = vmatmul.mubr.f32.gmra.mrb[0].mxu0 %v340
    %v431 = vpop.f32.mrb[0].mxu0
    %v432 = vadd.f32 0.0, %v431
    %v433 = vpop.f32.mrb[0].mxu0
    %434 = vmatprep.mubr.f32.mxu0 0.0
    %435 = vmatmul.mubr.f32.gmra.mrb[0].mxu0 %v343
    %v436 = vpop.f32.mrb[0].mxu0
    %v437 = vadd.f32 0.0, %v436
    %v438 = vpop.f32.mrb[0].mxu0
    %439 = vmatprep.mubr.f32.mxu0 0.0
    %440 = vmatmul.mubr.f32.gmra.mrb[0].mxu0 %v346
    %v441 = vpop.f32.mrb[0].mxu0
    %v442 = vadd.f32 0.0, %v441
    %v443 = vpop.f32.mrb[0].mxu0
    %444 = vmatprep.mubr.f32.mxu0 0.0
    %445 = vmatmul.mubr.f32.gmra.mrb[0].mxu0 %v349
    %v446 = vpop.f32.mrb[0].mxu0
    %v447 = vadd.f32 0.0, %v446
    %v448 = vpop.f32.mrb[0].mxu0
    %449 = vmatprep.mubr.f32.mxu0 0.0
    %450 = vmatmul.mubr.f32.gmra.mrb[0].mxu0 %v352
    %v451 = vpop.f32.mrb[0].mxu0
    %v452 = vadd.f32 0.0, %v451
    %v453 = vpop.f32.mrb[0].mxu0
    %454 = vmatprep.mubr.f32.mxu0 0.0
    %455 = vmatmul.mubr.f32.gmra.mrb[0].mxu0 %v355
    %v456 = vpop.f32.mrb[0].mxu0
    %v457 = vadd.f32 0.0, %v456
    %v458 = vpop.f32.mrb[0].mxu0
    %459 = vmatprep.mubr.f32.mxu0 0.0
    %460 = vmatmul.mubr.f32.gmra.mrb[0].mxu0 %v358
    %v461 = vpop.f32.mrb[0].mxu0
    %v462 = vadd.f32 0.0, %v461
    %v463 = vpop.f32.mrb[0].mxu0
    %464 = vdwg.mxu0
    %v465 = vld [vmem:[#allocation4] sm:$0xff]
    %v466 = vld [vmem:[#allocation4 + $0x8] sm:$0xff]
    %v467 = vld [vmem:[#allocation4 + $0x10] sm:$0xff]
    %v468 = vld [vmem:[#allocation4 + $0x18] sm:$0xff]
    %v469 = vld [vmem:[#allocation4 + $0x20] sm:$0xff]
    %v470 = vld [vmem:[#allocation4 + $0x28] sm:$0xff]
    %v471 = vld [vmem:[#allocation4 + $0x30] sm:$0xff]
    %v472 = vld [vmem:[#allocation4 + $0x38] sm:$0xff]
    %474 = vset.pattern.permute.xlu0 0
    %475 = vperm.xlu0 %474, %v465
    %v476 = vpop.permute.xlu0 %475
    %479 = vset.pattern.permute.xlu0 0
    %480 = vperm.xlu0 %479, %v466
    %v481 = vpop.permute.xlu0 %480
    %484 = vset.pattern.permute.xlu0 0
    %485 = vperm.xlu0 %484, %v467
    %v486 = vpop.permute.xlu0 %485
    %489 = vset.pattern.permute.xlu0 0
    %490 = vperm.xlu0 %489, %v468
    %v491 = vpop.permute.xlu0 %490
    %494 = vset.pattern.permute.xlu0 0
    %495 = vperm.xlu0 %494, %v469
    %v496 = vpop.permute.xlu0 %495
    %499 = vset.pattern.permute.xlu0 0
    %500 = vperm.xlu0 %499, %v470
    %v501 = vpop.permute.xlu0 %500
    %504 = vset.pattern.permute.xlu0 0
    %505 = vperm.xlu0 %504, %v471
    %v506 = vpop.permute.xlu0 %505
    %509 = vset.pattern.permute.xlu0 0
    %510 = vperm.xlu0 %509, %v472
    %v511 = vpop.permute.xlu0 %510
    %v513 = vmul.f32 %v427, %v476
    %v514 = vmul.f32 %v432, %v481
    %v515 = vmul.f32 %v437, %v486
    %v516 = vmul.f32 %v442, %v491
    %v517 = vmul.f32 %v447, %v496
    %v518 = vmul.f32 %v452, %v501
    %v519 = vmul.f32 %v457, %v506
    %v520 = vmul.f32 %v462, %v511
    %v521 = vld [vmem:[%s3] sm:$0xff]
    %v522 = vld [vmem:[%s3 + $0x8] sm:$0xff]
    %v523 = vld [vmem:[%s3 + $0x10] sm:$0xff]
    %v524 = vld [vmem:[%s3 + $0x18] sm:$0xff]
    %v525 = vld [vmem:[%s3 + $0x20] sm:$0xff]
    %v526 = vld [vmem:[%s3 + $0x28] sm:$0xff]
    %v527 = vld [vmem:[%s3 + $0x30] sm:$0xff]
    %v528 = vld [vmem:[%s3 + $0x38] sm:$0xff]
    %530 = vset.pattern.permute.xlu0 0
    %531 = vperm.xlu0 %530, %v521
    %v532 = vpop.permute.xlu0 %531
    %535 = vset.pattern.permute.xlu0 0
    %536 = vperm.xlu0 %535, %v522
    %v537 = vpop.permute.xlu0 %536
    %540 = vset.pattern.permute.xlu0 0
    %541 = vperm.xlu0 %540, %v523
    %v542 = vpop.permute.xlu0 %541
    %545 = vset.pattern.permute.xlu0 0
    %546 = vperm.xlu0 %545, %v524
    %v547 = vpop.permute.xlu0 %546
    %550 = vset.pattern.permute.xlu0 0
    %551 = vperm.xlu0 %550, %v525
    %v552 = vpop.permute.xlu0 %551
    %555 = vset.pattern.permute.xlu0 0
    %556 = vperm.xlu0 %555, %v526
    %v557 = vpop.permute.xlu0 %556
    %560 = vset.pattern.permute.xlu0 0
    %561 = vperm.xlu0 %560, %v527
    %v562 = vpop.permute.xlu0 %561
    %565 = vset.pattern.permute.xlu0 0
    %566 = vperm.xlu0 %565, %v528
    %v567 = vpop.permute.xlu0 %566
    %v569 = vadd.f32 %v513, %v532
    %v570 = vadd.f32 %v514, %v537
    %v571 = vadd.f32 %v515, %v542
    %v572 = vadd.f32 %v516, %v547
    %v573 = vadd.f32 %v517, %v552
    %v574 = vadd.f32 %v518, %v557
    %v575 = vadd.f32 %v519, %v562
    %v576 = vadd.f32 %v520, %v567
    %v577 = vmax.f32 %v569, 0.0
    %v578 = vmax.f32 %v570, 0.0
    %v579 = vmax.f32 %v571, 0.0
    %v580 = vmax.f32 %v572, 0.0
    %v581 = vmax.f32 %v573, 0.0
    %v582 = vmax.f32 %v574, 0.0
    %v583 = vmax.f32 %v575, 0.0
    %v584 = vmax.f32 %v576, 0.0
    %v585 = vld [vmem:[%s4] sm:$0xff]
    %v586 = vld [vmem:[%s4 + $0x8] sm:$0xff]
    %v587 = vld [vmem:[%s4 + $0x10] sm:$0xff]
    %v588 = vld [vmem:[%s4 + $0x18] sm:$0xff]
    %v589 = vld [vmem:[%s4 + $0x20] sm:$0xff]
    %v590 = vld [vmem:[%s4 + $0x28] sm:$0xff]
    %v591 = vld [vmem:[%s4 + $0x30] sm:$0xff]
    %v592 = vld [vmem:[%s4 + $0x38] sm:$0xff]
    %v593 = vld [vmem:[%s4 + $0x40] sm:$0xff]
    %v594 = vld [vmem:[%s4 + $0x48] sm:$0xff]
    %v595 = vld [vmem:[%s4 + $0x50] sm:$0xff]
    %v596 = vld [vmem:[%s4 + $0x58] sm:$0xff]
    %v597 = vld [vmem:[%s4 + $0x60] sm:$0xff]
    %v598 = vld [vmem:[%s4 + $0x68] sm:$0xff]
    %v599 = vld [vmem:[%s4 + $0x70] sm:$0xff]
    %v600 = vld [vmem:[%s4 + $0x78] sm:$0xff]
    %609 = vrot.lane.b32.xlu0 %v577, 1
    %v610 = vpop.permute.xlu0 %609
    %611 = vrot.lane.b32.xlu0 %v578, 1
    %v612 = vpop.permute.xlu0 %611
    %613 = vrot.lane.b32.xlu0 %v579, 1
    %v614 = vpop.permute.xlu0 %613
    %615 = vrot.lane.b32.xlu0 %v580, 1
    %v616 = vpop.permute.xlu0 %615
    %617 = vrot.lane.b32.xlu0 %v581, 1
    %v618 = vpop.permute.xlu0 %617
    %619 = vrot.lane.b32.xlu0 %v582, 1
    %v620 = vpop.permute.xlu0 %619
    %621 = vrot.lane.b32.xlu0 %v583, 1
    %v622 = vpop.permute.xlu0 %621
    %623 = vrot.lane.b32.xlu0 %v584, 1
    %v624 = vpop.permute.xlu0 %623
    %633 = vrot.lane.b32.xlu0 %v577, 3
    %v634 = vpop.permute.xlu0 %633
    %635 = vrot.lane.b32.xlu0 %v578, 3
    %v636 = vpop.permute.xlu0 %635
    %637 = vrot.lane.b32.xlu0 %v579, 3
    %v638 = vpop.permute.xlu0 %637
    %639 = vrot.lane.b32.xlu0 %v580, 3
    %v640 = vpop.permute.xlu0 %639
    %641 = vrot.lane.b32.xlu0 %v581, 3
    %v642 = vpop.permute.xlu0 %641
    %643 = vrot.lane.b32.xlu0 %v582, 3
    %v644 = vpop.permute.xlu0 %643
    %645 = vrot.lane.b32.xlu0 %v583, 3
    %v646 = vpop.permute.xlu0 %645
    %647 = vrot.lane.b32.xlu0 %v584, 3
    %v648 = vpop.permute.xlu0 %647
    %v657 = vsel %vm103, 0.0, %v610
    %v658 = vsel %vm103, 0.0, %v612
    %v659 = vsel %vm103, 0.0, %v614
    %v660 = vsel %vm103, 0.0, %v616
    %v661 = vsel %vm103, 0.0, %v618
    %v662 = vsel %vm103, 0.0, %v620
    %v663 = vsel %vm103, 0.0, %v622
    %v664 = vsel %vm103, 0.0, %v624
    %vm665 = vcmask 39936
    %v666 = vsel %vm665, %v657, 0.0
    %v667 = vsel %vm665, %v658, 0.0
    %v668 = vsel %vm665, %v659, 0.0
    %v669 = vsel %vm665, %v660, 0.0
    %v670 = vsel %vm665, %v661, 0.0
    %v671 = vsel %vm665, %v662, 0.0
    %v672 = vsel %vm665, %v663, 0.0
    %v673 = vsel %vm665, %v664, 0.0
    %vm674 = vcmask 48128
    %v675 = vsel %vm674, %v666, 0.0
    %v676 = vsel %vm674, %v667, 0.0
    %v677 = vsel %vm674, %v668, 0.0
    %v678 = vsel %vm674, %v669, 0.0
    %v679 = vsel %vm674, %v670, 0.0
    %v680 = vsel %vm674, %v671, 0.0
    %v681 = vsel %vm674, %v672, 0.0
    %v682 = vsel %vm674, %v673, 0.0
    %vm683 = vcmask 56320
    %v684 = vsel %vm683, %v675, %v634
    %v685 = vsel %vm683, %v676, %v636
    %v686 = vsel %vm683, %v677, %v638
    %v687 = vsel %vm683, %v678, %v640
    %v688 = vsel %vm683, %v679, %v642
    %v689 = vsel %vm683, %v680, %v644
    %v690 = vsel %vm683, %v681, %v646
    %v691 = vsel %vm683, %v682, %v648
    %v692 = vsel %vm118, %v684, 0.0
    %v693 = vsel %vm118, %v685, 0.0
    %v694 = vsel %vm118, %v686, 0.0
    %v695 = vsel %vm118, %v687, 0.0
    %v696 = vsel %vm118, %v688, 0.0
    %v697 = vsel %vm118, %v689, 0.0
    %v698 = vsel %vm118, %v690, 0.0
    %v699 = vsel %vm118, %v691, 0.0
    %708 = vrot.lane.b32.xlu0 %v692, 126
    %v709 = vpop.permute.xlu0 %708
    %710 = vrot.lane.b32.xlu0 %v693, 126
    %v711 = vpop.permute.xlu0 %710
    %712 = vrot.lane.b32.xlu0 %v694, 126
    %v713 = vpop.permute.xlu0 %712
    %714 = vrot.lane.b32.xlu0 %v695, 126
    %v715 = vpop.permute.xlu0 %714
    %716 = vrot.lane.b32.xlu0 %v696, 126
    %v717 = vpop.permute.xlu0 %716
    %718 = vrot.lane.b32.xlu0 %v697, 126
    %v719 = vpop.permute.xlu0 %718
    %720 = vrot.lane.b32.xlu0 %v698, 126
    %v721 = vpop.permute.xlu0 %720
    %722 = vrot.lane.b32.xlu0 %v699, 126
    %v723 = vpop.permute.xlu0 %722
    %vm732 = vcmask 31744
    %v733 = vsel %vm732, %v692, %v709
    %v734 = vsel %vm732, %v693, %v711
    %v735 = vsel %vm732, %v694, %v713
    %v736 = vsel %vm732, %v695, %v715
    %v737 = vsel %vm732, %v696, %v717
    %v738 = vsel %vm732, %v697, %v719
    %v739 = vsel %vm732, %v698, %v721
    %v740 = vsel %vm732, %v699, %v723
    %741 = vrot.lane.b32.xlu0 %v692, 127
    %v742 = vpop.permute.xlu0 %741
    %743 = vrot.lane.b32.xlu0 %v693, 127
    %v744 = vpop.permute.xlu0 %743
    %745 = vrot.lane.b32.xlu0 %v694, 127
    %v746 = vpop.permute.xlu0 %745
    %747 = vrot.lane.b32.xlu0 %v695, 127
    %v748 = vpop.permute.xlu0 %747
    %749 = vrot.lane.b32.xlu0 %v696, 127
    %v750 = vpop.permute.xlu0 %749
    %751 = vrot.lane.b32.xlu0 %v697, 127
    %v752 = vpop.permute.xlu0 %751
    %753 = vrot.lane.b32.xlu0 %v698, 127
    %v754 = vpop.permute.xlu0 %753
    %755 = vrot.lane.b32.xlu0 %v699, 127
    %v756 = vpop.permute.xlu0 %755
    %765 = vrot.lane.b32.xlu0 %v692, 125
    %v766 = vpop.permute.xlu0 %765
    %767 = vrot.lane.b32.xlu0 %v693, 125
    %v768 = vpop.permute.xlu0 %767
    %769 = vrot.lane.b32.xlu0 %v694, 125
    %v770 = vpop.permute.xlu0 %769
    %771 = vrot.lane.b32.xlu0 %v695, 125
    %v772 = vpop.permute.xlu0 %771
    %773 = vrot.lane.b32.xlu0 %v696, 125
    %v774 = vpop.permute.xlu0 %773
    %775 = vrot.lane.b32.xlu0 %v697, 125
    %v776 = vpop.permute.xlu0 %775
    %777 = vrot.lane.b32.xlu0 %v698, 125
    %v778 = vpop.permute.xlu0 %777
    %779 = vrot.lane.b32.xlu0 %v699, 125
    %v780 = vpop.permute.xlu0 %779
    %v789 = vsel %vm732, %v742, %v766
    %v790 = vsel %vm732, %v744, %v768
    %v791 = vsel %vm732, %v746, %v770
    %v792 = vsel %vm732, %v748, %v772
    %v793 = vsel %vm732, %v750, %v774
    %v794 = vsel %vm732, %v752, %v776
    %v795 = vsel %vm732, %v754, %v778
    %v796 = vsel %vm732, %v756, %v780
    %797 = vrot.lane.b32.xlu0 %v692, 124
    %v798 = vpop.permute.xlu0 %797
    %799 = vrot.lane.b32.xlu0 %v693, 124
    %v800 = vpop.permute.xlu0 %799
    %801 = vrot.lane.b32.xlu0 %v694, 124
    %v802 = vpop.permute.xlu0 %801
    %803 = vrot.lane.b32.xlu0 %v695, 124
    %v804 = vpop.permute.xlu0 %803
    %805 = vrot.lane.b32.xlu0 %v696, 124
    %v806 = vpop.permute.xlu0 %805
    %807 = vrot.lane.b32.xlu0 %v697, 124
    %v808 = vpop.permute.xlu0 %807
    %809 = vrot.lane.b32.xlu0 %v698, 124
    %v810 = vpop.permute.xlu0 %809
    %811 = vrot.lane.b32.xlu0 %v699, 124
    %v812 = vpop.permute.xlu0 %811
    %v821 = vsel %vm732, %v709, %v798
    %v822 = vsel %vm732, %v711, %v800
    %v823 = vsel %vm732, %v713, %v802
    %v824 = vsel %vm732, %v715, %v804
    %v825 = vsel %vm732, %v717, %v806
    %v826 = vsel %vm732, %v719, %v808
    %v827 = vsel %vm732, %v721, %v810
    %v828 = vsel %vm732, %v723, %v812
    %vm829 = vcmask 523264
    %v831 = vsel %vm829, %v586, 0
    %v834 = vsel %vm829, %v588, 0
    %v837 = vsel %vm829, %v590, 0
    %v840 = vsel %vm829, %v592, 0
    %v843 = vsel %vm829, %v594, 0
    %v846 = vsel %vm829, %v596, 0
    %v849 = vsel %vm829, %v598, 0
    %v852 = vsel %vm829, %v600, 0
    %854 = vmatprep.subr.mxu0 0.0
    %855 = vmatpush1.msra.mxu0 %v733
    %856 = vmatprep.subr.mxu0 0.0
    %857 = vmatpush1.msra.mxu0 %v734
    %858 = vmatprep.subr.mxu0 0.0
    %859 = vmatpush1.msra.mxu0 %v735
    %860 = vmatprep.subr.mxu0 0.0
    %861 = vmatpush1.msra.mxu0 %v736
    %862 = vmatprep.subr.mxu0 0.0
    %863 = vmatpush1.msra.mxu0 %v737
    %864 = vmatprep.subr.mxu0 0.0
    %865 = vmatpush1.msra.mxu0 %v738
    %866 = vmatprep.subr.mxu0 0.0
    %867 = vmatpush1.msra.mxu0 %v739
    %868 = vmatprep.subr.mxu0 0.0
    %869 = vmatpush1.msra.mxu0 %v740
    %870 = vmatprep.subr.mxu0 0.0
    %871 = vmatpush1.msra.mxu0 %v789
    %872 = vmatprep.subr.mxu0 0.0
    %873 = vmatpush1.msra.mxu0 %v790
    %874 = vmatprep.subr.mxu0 0.0
    %875 = vmatpush1.msra.mxu0 %v791
    %876 = vmatprep.subr.mxu0 0.0
    %877 = vmatpush1.msra.mxu0 %v792
    %878 = vmatprep.subr.mxu0 0.0
    %879 = vmatpush1.msra.mxu0 %v793
    %880 = vmatprep.subr.mxu0 0.0
    %881 = vmatpush1.msra.mxu0 %v794
    %882 = vmatprep.subr.mxu0 0.0
    %883 = vmatpush1.msra.mxu0 %v795
    %884 = vmatprep.subr.mxu0 0.0
    %885 = vmatpush1.msra.mxu0 %v796
    %886 = vmatprep.subr.mxu0 0.0
    %887 = vmatpush1.msra.mxu0 %v821
    %888 = vmatprep.subr.mxu0 0.0
    %889 = vmatpush1.msra.mxu0 %v822
    %890 = vmatprep.subr.mxu0 0.0
    %891 = vmatpush1.msra.mxu0 %v823
    %892 = vmatprep.subr.mxu0 0.0
    %893 = vmatpush1.msra.mxu0 %v824
    %894 = vmatprep.subr.mxu0 0.0
    %895 = vmatpush1.msra.mxu0 %v825
    %896 = vmatprep.subr.mxu0 0.0
    %897 = vmatpush1.msra.mxu0 %v826
    %898 = vmatprep.subr.mxu0 0.0
    %899 = vmatpush1.msra.mxu0 %v827
    %900 = vmatprep.subr.mxu0 0.0
    %901 = vmatpush1.msra.mxu0 %v828
    %902 = vmatprep.subr.mxu0 0.0
    %903 = vmatpush1.msra.mxu0 0.0
    %904 = vmatprep.subr.mxu0 0.0
    %905 = vmatpush1.msra.mxu0 0.0
    %906 = vmatprep.subr.mxu0 0.0
    %907 = vmatpush1.msra.mxu0 0.0
    %908 = vmatprep.subr.mxu0 0.0
    %909 = vmatpush1.msra.mxu0 0.0
    %910 = vmatprep.subr.mxu0 0.0
    %911 = vmatpush1.msra.mxu0 0.0
    %912 = vmatprep.subr.mxu0 0.0
    %913 = vmatpush1.msra.mxu0 0.0
    %914 = vmatprep.subr.mxu0 0.0
    %915 = vmatpush1.msra.mxu0 0.0
    %916 = vmatprep.subr.mxu0 0.0
    %917 = vmatpush1.msra.mxu0 0.0
    %918 = vmatprep.mubr.f32.mxu0 %v831
    %919 = vmatmul.mubr.f32.gmra.mrb[0].mxu0 %v585
    %v920 = vpop.f32.mrb[0].mxu0
    %v921 = vadd.f32 0.0, %v920
    %v922 = vpop.f32.mrb[0].mxu0
    %923 = vmatprep.mubr.f32.mxu0 %v834
    %924 = vmatmul.mubr.f32.gmra.mrb[0].mxu0 %v587
    %v925 = vpop.f32.mrb[0].mxu0
    %v926 = vadd.f32 0.0, %v925
    %v927 = vpop.f32.mrb[0].mxu0
    %928 = vmatprep.mubr.f32.mxu0 %v837
    %929 = vmatmul.mubr.f32.gmra.mrb[0].mxu0 %v589
    %v930 = vpop.f32.mrb[0].mxu0
    %v931 = vadd.f32 0.0, %v930
    %v932 = vpop.f32.mrb[0].mxu0
    %933 = vmatprep.mubr.f32.mxu0 %v840
    %934 = vmatmul.mubr.f32.gmra.mrb[0].mxu0 %v591
    %v935 = vpop.f32.mrb[0].mxu0
    %v936 = vadd.f32 0.0, %v935
    %v937 = vpop.f32.mrb[0].mxu0
    %938 = vmatprep.mubr.f32.mxu0 %v843
    %939 = vmatmul.mubr.f32.gmra.mrb[0].mxu0 %v593
    %v940 = vpop.f32.mrb[0].mxu0
    %v941 = vadd.f32 0.0, %v940
    %v942 = vpop.f32.mrb[0].mxu0
    %943 = vmatprep.mubr.f32.mxu0 %v846
    %944 = vmatmul.mubr.f32.gmra.mrb[0].mxu0 %v595
    %v945 = vpop.f32.mrb[0].mxu0
    %v946 = vadd.f32 0.0, %v945
    %v947 = vpop.f32.mrb[0].mxu0
    %948 = vmatprep.mubr.f32.mxu0 %v849
    %949 = vmatmul.mubr.f32.gmra.mrb[0].mxu0 %v597
    %v950 = vpop.f32.mrb[0].mxu0
    %v951 = vadd.f32 0.0, %v950
    %v952 = vpop.f32.mrb[0].mxu0
    %953 = vmatprep.mubr.f32.mxu0 %v852
    %954 = vmatmul.mubr.f32.gmra.mrb[0].mxu0 %v599
    %v955 = vpop.f32.mrb[0].mxu0
    %v956 = vadd.f32 0.0, %v955
    %v957 = vpop.f32.mrb[0].mxu0
    %958 = vdwg.mxu0
    %v959 = vld [vmem:[%s5] sm:$0xff]
    %v960 = vld [vmem:[%s5 + $0x8] sm:$0xff]
    %v961 = vld [vmem:[%s5 + $0x10] sm:$0xff]
    %v962 = vld [vmem:[%s5 + $0x18] sm:$0xff]
    %v963 = vld [vmem:[%s5 + $0x20] sm:$0xff]
    %v964 = vld [vmem:[%s5 + $0x28] sm:$0xff]
    %v965 = vld [vmem:[%s5 + $0x30] sm:$0xff]
    %v966 = vld [vmem:[%s5 + $0x38] sm:$0xff]
    %968 = vset.pattern.permute.xlu0 0
    %969 = vperm.xlu0 %968, %v959
    %v970 = vpop.permute.xlu0 %969
    %973 = vset.pattern.permute.xlu0 0
    %974 = vperm.xlu0 %973, %v960
    %v975 = vpop.permute.xlu0 %974
    %978 = vset.pattern.permute.xlu0 0
    %979 = vperm.xlu0 %978, %v961
    %v980 = vpop.permute.xlu0 %979
    %983 = vset.pattern.permute.xlu0 0
    %984 = vperm.xlu0 %983, %v962
    %v985 = vpop.permute.xlu0 %984
    %988 = vset.pattern.permute.xlu0 0
    %989 = vperm.xlu0 %988, %v963
    %v990 = vpop.permute.xlu0 %989
    %993 = vset.pattern.permute.xlu0 0
    %994 = vperm.xlu0 %993, %v964
    %v995 = vpop.permute.xlu0 %994
    %998 = vset.pattern.permute.xlu0 0
    %999 = vperm.xlu0 %998, %v965
    %v1000 = vpop.permute.xlu0 %999
    %1003 = vset.pattern.permute.xlu0 0
    %1004 = vperm.xlu0 %1003, %v966
    %v1005 = vpop.permute.xlu0 %1004
    %v1007 = vmul.f32 %v921, %v970
    %v1008 = vmul.f32 %v926, %v975
    %v1009 = vmul.f32 %v931, %v980
    %v1010 = vmul.f32 %v936, %v985
    %v1011 = vmul.f32 %v941, %v990
    %v1012 = vmul.f32 %v946, %v995
    %v1013 = vmul.f32 %v951, %v1000
    %v1014 = vmul.f32 %v956, %v1005
    %v1015 = vld [vmem:[%s6] sm:$0xff]
    %v1016 = vld [vmem:[%s6 + $0x8] sm:$0xff]
    %v1017 = vld [vmem:[%s6 + $0x10] sm:$0xff]
    %v1018 = vld [vmem:[%s6 + $0x18] sm:$0xff]
    %v1019 = vld [vmem:[%s6 + $0x20] sm:$0xff]
    %v1020 = vld [vmem:[%s6 + $0x28] sm:$0xff]
    %v1021 = vld [vmem:[%s6 + $0x30] sm:$0xff]
    %v1022 = vld [vmem:[%s6 + $0x38] sm:$0xff]
    %1024 = vset.pattern.permute.xlu0 0
    %1025 = vperm.xlu0 %1024, %v1015
    %v1026 = vpop.permute.xlu0 %1025
    %1029 = vset.pattern.permute.xlu0 0
    %1030 = vperm.xlu0 %1029, %v1016
    %v1031 = vpop.permute.xlu0 %1030
    %1034 = vset.pattern.permute.xlu0 0
    %1035 = vperm.xlu0 %1034, %v1017
    %v1036 = vpop.permute.xlu0 %1035
    %1039 = vset.pattern.permute.xlu0 0
    %1040 = vperm.xlu0 %1039, %v1018
    %v1041 = vpop.permute.xlu0 %1040
    %1044 = vset.pattern.permute.xlu0 0
    %1045 = vperm.xlu0 %1044, %v1019
    %v1046 = vpop.permute.xlu0 %1045
    %1049 = vset.pattern.permute.xlu0 0
    %1050 = vperm.xlu0 %1049, %v1020
    %v1051 = vpop.permute.xlu0 %1050
    %1054 = vset.pattern.permute.xlu0 0
    %1055 = vperm.xlu0 %1054, %v1021
    %v1056 = vpop.permute.xlu0 %1055
    %1059 = vset.pattern.permute.xlu0 0
    %1060 = vperm.xlu0 %1059, %v1022
    %v1061 = vpop.permute.xlu0 %1060
    %v1063 = vadd.f32 %v1007, %v1026
    %v1064 = vadd.f32 %v1008, %v1031
    %v1065 = vadd.f32 %v1009, %v1036
    %v1066 = vadd.f32 %v1010, %v1041
    %v1067 = vadd.f32 %v1011, %v1046
    %v1068 = vadd.f32 %v1012, %v1051
    %v1069 = vadd.f32 %v1013, %v1056
    %v1070 = vadd.f32 %v1014, %v1061
    %v1071 = vsel %vm335, %v63, 0
    %v1073 = vsel %vm335, %v64, 0
    %v1075 = vsel %vm335, %v65, 0
    %v1077 = vsel %vm335, %v66, 0
    %1079 = vmatprep.subr.mxu0 0.0
    %1080 = vmatpush1.msra.mxu0 %v333
    %1081 = vmatprep.subr.mxu0 0.0
    %1082 = vmatpush1.msra.mxu0 %v334
    %1083 = vmatprep.subr.mxu0 0.0
    %1084 = vmatpush1.msra.mxu0 0.0
    %1085 = vmatprep.subr.mxu0 0.0
    %1086 = vmatpush1.msra.mxu0 0.0
    %1087 = vmatprep.subr.mxu0 0.0
    %1088 = vmatpush1.msra.mxu0 0.0
    %1089 = vmatprep.subr.mxu0 0.0
    %1090 = vmatpush1.msra.mxu0 0.0
    %1091 = vmatprep.subr.mxu0 0.0
    %1092 = vmatpush1.msra.mxu0 0.0
    %1093 = vmatprep.subr.mxu0 0.0
    %1094 = vmatpush1.msra.mxu0 0.0
    %1095 = vmatprep.subr.mxu0 0.0
    %1096 = vmatpush1.msra.mxu0 0.0
    %1097 = vmatprep.subr.mxu0 0.0
    %1098 = vmatpush1.msra.mxu0 0.0
    %1099 = vmatprep.subr.mxu0 0.0
    %1100 = vmatpush1.msra.mxu0 0.0
    %1101 = vmatprep.subr.mxu0 0.0
    %1102 = vmatpush1.msra.mxu0 0.0
    %1103 = vmatprep.subr.mxu0 0.0
    %1104 = vmatpush1.msra.mxu0 0.0
    %1105 = vmatprep.subr.mxu0 0.0
    %1106 = vmatpush1.msra.mxu0 0.0
    %1107 = vmatprep.subr.mxu0 0.0
    %1108 = vmatpush1.msra.mxu0 0.0
    %1109 = vmatprep.subr.mxu0 0.0
    %1110 = vmatpush1.msra.mxu0 0.0
    %1111 = vmatprep.subr.mxu0 0.0
    %1112 = vmatpush1.msra.mxu0 0.0
    %1113 = vmatprep.subr.mxu0 0.0
    %1114 = vmatpush1.msra.mxu0 0.0
    %1115 = vmatprep.subr.mxu0 0.0
    %1116 = vmatpush1.msra.mxu0 0.0
    %1117 = vmatprep.subr.mxu0 0.0
    %1118 = vmatpush1.msra.mxu0 0.0
    %1119 = vmatprep.subr.mxu0 0.0
    %1120 = vmatpush1.msra.mxu0 0.0
    %1121 = vmatprep.subr.mxu0 0.0
    %1122 = vmatpush1.msra.mxu0 0.0
    %1123 = vmatprep.subr.mxu0 0.0
    %1124 = vmatpush1.msra.mxu0 0.0
    %1125 = vmatprep.subr.mxu0 0.0
    %1126 = vmatpush1.msra.mxu0 0.0
    %1127 = vmatprep.subr.mxu0 0.0
    %1128 = vmatpush1.msra.mxu0 0.0
    %1129 = vmatprep.subr.mxu0 0.0
    %1130 = vmatpush1.msra.mxu0 0.0
    %1131 = vmatprep.subr.mxu0 0.0
    %1132 = vmatpush1.msra.mxu0 0.0
    %1133 = vmatprep.subr.mxu0 0.0
    %1134 = vmatpush1.msra.mxu0 0.0
    %1135 = vmatprep.subr.mxu0 0.0
    %1136 = vmatpush1.msra.mxu0 0.0
    %1137 = vmatprep.subr.mxu0 0.0
    %1138 = vmatpush1.msra.mxu0 0.0
    %1139 = vmatprep.subr.mxu0 0.0
    %1140 = vmatpush1.msra.mxu0 0.0
    %1141 = vmatprep.subr.mxu0 0.0
    %1142 = vmatpush1.msra.mxu0 0.0
    %1143 = vmatprep.mubr.f32.mxu0 0.0
    %1144 = vmatmul.mubr.f32.gmra.mrb[0].mxu0 %v1071
    %v1145 = vpop.f32.mrb[0].mxu0
    %v1146 = vadd.f32 0.0, %v1145
    %v1147 = vpop.f32.mrb[0].mxu0
    %1148 = vmatprep.mubr.f32.mxu0 0.0
    %1149 = vmatmul.mubr.f32.gmra.mrb[0].mxu0 %v1073
    %v1150 = vpop.f32.mrb[0].mxu0
    %v1151 = vadd.f32 0.0, %v1150
    %v1152 = vpop.f32.mrb[0].mxu0
    %1153 = vmatprep.mubr.f32.mxu0 0.0
    %1154 = vmatmul.mubr.f32.gmra.mrb[0].mxu0 %v1075
    %v1155 = vpop.f32.mrb[0].mxu0
    %v1156 = vadd.f32 0.0, %v1155
    %v1157 = vpop.f32.mrb[0].mxu0
    %1158 = vmatprep.mubr.f32.mxu0 0.0
    %1159 = vmatmul.mubr.f32.gmra.mrb[0].mxu0 %v1077
    %v1160 = vpop.f32.mrb[0].mxu0
    %v1161 = vadd.f32 0.0, %v1160
    %v1162 = vpop.f32.mrb[0].mxu0
    %1163 = vdwg.mxu0
    %v1164 = vld [vmem:[%s7] sm:$0xff]
    %v1165 = vld [vmem:[%s7 + $0x8] sm:$0xff]
    %v1166 = vld [vmem:[%s7 + $0x10] sm:$0xff]
    %v1167 = vld [vmem:[%s7 + $0x18] sm:$0xff]
    %v1168 = vld [vmem:[%s7 + $0x20] sm:$0xff]
    %v1169 = vld [vmem:[%s7 + $0x28] sm:$0xff]
    %v1170 = vld [vmem:[%s7 + $0x30] sm:$0xff]
    %v1171 = vld [vmem:[%s7 + $0x38] sm:$0xff]
    %vm1172 = vcmask 261120
    %v1174 = vsel %vm1172, %v1164, 0
    %v1177 = vsel %vm1172, %v1165, 0
    %v1180 = vsel %vm1172, %v1166, 0
    %v1183 = vsel %vm1172, %v1167, 0
    %v1186 = vsel %vm1172, %v1168, 0
    %v1189 = vsel %vm1172, %v1169, 0
    %v1192 = vsel %vm1172, %v1170, 0
    %v1195 = vsel %vm1172, %v1171, 0
    %1197 = vmatprep.subr.mxu0 0.0
    %1198 = vmatpush1.msra.mxu0 %v1146
    %1199 = vmatprep.subr.mxu0 0.0
    %1200 = vmatpush1.msra.mxu0 %v1151
    %1201 = vmatprep.subr.mxu0 0.0
    %1202 = vmatpush1.msra.mxu0 %v1156
    %1203 = vmatprep.subr.mxu0 0.0
    %1204 = vmatpush1.msra.mxu0 %v1161
    %1205 = vmatprep.subr.mxu0 0.0
    %1206 = vmatpush1.msra.mxu0 0.0
    %1207 = vmatprep.subr.mxu0 0.0
    %1208 = vmatpush1.msra.mxu0 0.0
    %1209 = vmatprep.subr.mxu0 0.0
    %1210 = vmatpush1.msra.mxu0 0.0
    %1211 = vmatprep.subr.mxu0 0.0
    %1212 = vmatpush1.msra.mxu0 0.0
    %1213 = vmatprep.subr.mxu0 0.0
    %1214 = vmatpush1.msra.mxu0 0.0
    %1215 = vmatprep.subr.mxu0 0.0
    %1216 = vmatpush1.msra.mxu0 0.0
    %1217 = vmatprep.subr.mxu0 0.0
    %1218 = vmatpush1.msra.mxu0 0.0
    %1219 = vmatprep.subr.mxu0 0.0
    %1220 = vmatpush1.msra.mxu0 0.0
    %1221 = vmatprep.subr.mxu0 0.0
    %1222 = vmatpush1.msra.mxu0 0.0
    %1223 = vmatprep.subr.mxu0 0.0
    %1224 = vmatpush1.msra.mxu0 0.0
    %1225 = vmatprep.subr.mxu0 0.0
    %1226 = vmatpush1.msra.mxu0 0.0
    %1227 = vmatprep.subr.mxu0 0.0
    %1228 = vmatpush1.msra.mxu0 0.0
    %1229 = vmatprep.subr.mxu0 0.0
    %1230 = vmatpush1.msra.mxu0 0.0
    %1231 = vmatprep.subr.mxu0 0.0
    %1232 = vmatpush1.msra.mxu0 0.0
    %1233 = vmatprep.subr.mxu0 0.0
    %1234 = vmatpush1.msra.mxu0 0.0
    %1235 = vmatprep.subr.mxu0 0.0
    %1236 = vmatpush1.msra.mxu0 0.0
    %1237 = vmatprep.subr.mxu0 0.0
    %1238 = vmatpush1.msra.mxu0 0.0
    %1239 = vmatprep.subr.mxu0 0.0
    %1240 = vmatpush1.msra.mxu0 0.0
    %1241 = vmatprep.subr.mxu0 0.0
    %1242 = vmatpush1.msra.mxu0 0.0
    %1243 = vmatprep.subr.mxu0 0.0
    %1244 = vmatpush1.msra.mxu0 0.0
    %1245 = vmatprep.subr.mxu0 0.0
    %1246 = vmatpush1.msra.mxu0 0.0
    %1247 = vmatprep.subr.mxu0 0.0
    %1248 = vmatpush1.msra.mxu0 0.0
    %1249 = vmatprep.subr.mxu0 0.0
    %1250 = vmatpush1.msra.mxu0 0.0
    %1251 = vmatprep.subr.mxu0 0.0
    %1252 = vmatpush1.msra.mxu0 0.0
    %1253 = vmatprep.subr.mxu0 0.0
    %1254 = vmatpush1.msra.mxu0 0.0
    %1255 = vmatprep.subr.mxu0 0.0
    %1256 = vmatpush1.msra.mxu0 0.0
    %1257 = vmatprep.subr.mxu0 0.0
    %1258 = vmatpush1.msra.mxu0 0.0
    %1259 = vmatprep.subr.mxu0 0.0
    %1260 = vmatpush1.msra.mxu0 0.0
    %1261 = vmatprep.mubr.f32.mxu0 0.0
    %1262 = vmatmul.mubr.f32.gmra.mrb[0].mxu0 %v1174
    %v1263 = vpop.f32.mrb[0].mxu0
    %v1264 = vadd.f32 0.0, %v1263
    %v1265 = vpop.f32.mrb[0].mxu0
    %1266 = vmatprep.mubr.f32.mxu0 0.0
    %1267 = vmatmul.mubr.f32.gmra.mrb[0].mxu0 %v1177
    %v1268 = vpop.f32.mrb[0].mxu0
    %v1269 = vadd.f32 0.0, %v1268
    %v1270 = vpop.f32.mrb[0].mxu0
    %1271 = vmatprep.mubr.f32.mxu0 0.0
    %1272 = vmatmul.mubr.f32.gmra.mrb[0].mxu0 %v1180
    %v1273 = vpop.f32.mrb[0].mxu0
    %v1274 = vadd.f32 0.0, %v1273
    %v1275 = vpop.f32.mrb[0].mxu0
    %1276 = vmatprep.mubr.f32.mxu0 0.0
    %1277 = vmatmul.mubr.f32.gmra.mrb[0].mxu0 %v1183
    %v1278 = vpop.f32.mrb[0].mxu0
    %v1279 = vadd.f32 0.0, %v1278
    %v1280 = vpop.f32.mrb[0].mxu0
    %1281 = vmatprep.mubr.f32.mxu0 0.0
    %1282 = vmatmul.mubr.f32.gmra.mrb[0].mxu0 %v1186
    %v1283 = vpop.f32.mrb[0].mxu0
    %v1284 = vadd.f32 0.0, %v1283
    %v1285 = vpop.f32.mrb[0].mxu0
    %1286 = vmatprep.mubr.f32.mxu0 0.0
    %1287 = vmatmul.mubr.f32.gmra.mrb[0].mxu0 %v1189
    %v1288 = vpop.f32.mrb[0].mxu0
    %v1289 = vadd.f32 0.0, %v1288
    %v1290 = vpop.f32.mrb[0].mxu0
    %1291 = vmatprep.mubr.f32.mxu0 0.0
    %1292 = vmatmul.mubr.f32.gmra.mrb[0].mxu0 %v1192
    %v1293 = vpop.f32.mrb[0].mxu0
    %v1294 = vadd.f32 0.0, %v1293
    %v1295 = vpop.f32.mrb[0].mxu0
    %1296 = vmatprep.mubr.f32.mxu0 0.0
    %1297 = vmatmul.mubr.f32.gmra.mrb[0].mxu0 %v1195
    %v1298 = vpop.f32.mrb[0].mxu0
    %v1299 = vadd.f32 0.0, %v1298
    %v1300 = vpop.f32.mrb[0].mxu0
    %1301 = vdwg.mxu0
    %v1302 = vld [vmem:[%s8] sm:$0xff]
    %v1303 = vld [vmem:[%s8 + $0x8] sm:$0xff]
    %v1304 = vld [vmem:[%s8 + $0x10] sm:$0xff]
    %v1305 = vld [vmem:[%s8 + $0x18] sm:$0xff]
    %v1306 = vld [vmem:[%s8 + $0x20] sm:$0xff]
    %v1307 = vld [vmem:[%s8 + $0x28] sm:$0xff]
    %v1308 = vld [vmem:[%s8 + $0x30] sm:$0xff]
    %v1309 = vld [vmem:[%s8 + $0x38] sm:$0xff]
    %1311 = vset.pattern.permute.xlu0 0
    %1312 = vperm.xlu0 %1311, %v1302
    %v1313 = vpop.permute.xlu0 %1312
    %1316 = vset.pattern.permute.xlu0 0
    %1317 = vperm.xlu0 %1316, %v1303
    %v1318 = vpop.permute.xlu0 %1317
    %1321 = vset.pattern.permute.xlu0 0
    %1322 = vperm.xlu0 %1321, %v1304
    %v1323 = vpop.permute.xlu0 %1322
    %1326 = vset.pattern.permute.xlu0 0
    %1327 = vperm.xlu0 %1326, %v1305
    %v1328 = vpop.permute.xlu0 %1327
    %1331 = vset.pattern.permute.xlu0 0
    %1332 = vperm.xlu0 %1331, %v1306
    %v1333 = vpop.permute.xlu0 %1332
    %1336 = vset.pattern.permute.xlu0 0
    %1337 = vperm.xlu0 %1336, %v1307
    %v1338 = vpop.permute.xlu0 %1337
    %1341 = vset.pattern.permute.xlu0 0
    %1342 = vperm.xlu0 %1341, %v1308
    %v1343 = vpop.permute.xlu0 %1342
    %1346 = vset.pattern.permute.xlu0 0
    %1347 = vperm.xlu0 %1346, %v1309
    %v1348 = vpop.permute.xlu0 %1347
    %v1350 = vmul.f32 %v1264, %v1313
    %v1351 = vmul.f32 %v1269, %v1318
    %v1352 = vmul.f32 %v1274, %v1323
    %v1353 = vmul.f32 %v1279, %v1328
    %v1354 = vmul.f32 %v1284, %v1333
    %v1355 = vmul.f32 %v1289, %v1338
    %v1356 = vmul.f32 %v1294, %v1343
    %v1357 = vmul.f32 %v1299, %v1348
    %v1358 = vld [vmem:[%s9] sm:$0xff]
    %v1359 = vld [vmem:[%s9 + $0x8] sm:$0xff]
    %v1360 = vld [vmem:[%s9 + $0x10] sm:$0xff]
    %v1361 = vld [vmem:[%s9 + $0x18] sm:$0xff]
    %v1362 = vld [vmem:[%s9 + $0x20] sm:$0xff]
    %v1363 = vld [vmem:[%s9 + $0x28] sm:$0xff]
    %v1364 = vld [vmem:[%s9 + $0x30] sm:$0xff]
    %v1365 = vld [vmem:[%s9 + $0x38] sm:$0xff]
    %1367 = vset.pattern.permute.xlu0 0
    %1368 = vperm.xlu0 %1367, %v1358
    %v1369 = vpop.permute.xlu0 %1368
    %1372 = vset.pattern.permute.xlu0 0
    %1373 = vperm.xlu0 %1372, %v1359
    %v1374 = vpop.permute.xlu0 %1373
    %1377 = vset.pattern.permute.xlu0 0
    %1378 = vperm.xlu0 %1377, %v1360
    %v1379 = vpop.permute.xlu0 %1378
    %1382 = vset.pattern.permute.xlu0 0
    %1383 = vperm.xlu0 %1382, %v1361
    %v1384 = vpop.permute.xlu0 %1383
    %1387 = vset.pattern.permute.xlu0 0
    %1388 = vperm.xlu0 %1387, %v1362
    %v1389 = vpop.permute.xlu0 %1388
    %1392 = vset.pattern.permute.xlu0 0
    %1393 = vperm.xlu0 %1392, %v1363
    %v1394 = vpop.permute.xlu0 %1393
    %1397 = vset.pattern.permute.xlu0 0
    %1398 = vperm.xlu0 %1397, %v1364
    %v1399 = vpop.permute.xlu0 %1398
    %1402 = vset.pattern.permute.xlu0 0
    %1403 = vperm.xlu0 %1402, %v1365
    %v1404 = vpop.permute.xlu0 %1403
    %v1406 = vadd.f32 %v1350, %v1369
    %v1407 = vadd.f32 %v1351, %v1374
    %v1408 = vadd.f32 %v1352, %v1379
    %v1409 = vadd.f32 %v1353, %v1384
    %v1410 = vadd.f32 %v1354, %v1389
    %v1411 = vadd.f32 %v1355, %v1394
    %v1412 = vadd.f32 %v1356, %v1399
    %v1413 = vadd.f32 %v1357, %v1404
    %v1414 = vadd.f32 %v1063, %v1406
    %v1415 = vadd.f32 %v1064, %v1407
    %v1416 = vadd.f32 %v1065, %v1408
    %v1417 = vadd.f32 %v1066, %v1409
    %v1418 = vadd.f32 %v1067, %v1410
    %v1419 = vadd.f32 %v1068, %v1411
    %v1420 = vadd.f32 %v1069, %v1412
    %v1421 = vadd.f32 %v1070, %v1413
    %v1422 = vmax.f32 %v1414, 0.0
    %v1423 = vmax.f32 %v1415, 0.0
    %v1424 = vmax.f32 %v1416, 0.0
    %v1425 = vmax.f32 %v1417, 0.0
    %v1426 = vmax.f32 %v1418, 0.0
    %v1427 = vmax.f32 %v1419, 0.0
    %v1428 = vmax.f32 %v1420, 0.0
    %v1429 = vmax.f32 %v1421, 0.0
    %1430 = vst.msk [vmem:[%s10] sm:$0xff] %vm144, %v1422
    %1431 = vst.msk [vmem:[%s10 + $0x8] sm:$0xff] %vm144, %v1423
    %1432 = vst.msk [vmem:[%s10 + $0x10] sm:$0xff] %vm144, %v1424
    %1433 = vst.msk [vmem:[%s10 + $0x18] sm:$0xff] %vm144, %v1425
    %1434 = vst.msk [vmem:[%s10 + $0x20] sm:$0xff] %vm144, %v1426
    %1435 = vst.msk [vmem:[%s10 + $0x28] sm:$0xff] %vm144, %v1427
    %1436 = vst.msk [vmem:[%s10 + $0x30] sm:$0xff] %vm144, %v1428
    %1437 = vst.msk [vmem:[%s10 + $0x38] sm:$0xff] %vm144, %v1429
    // Predicated region
    $region50: #{run.10} parent=1 // pred_check
      _
    $region51: #{run.10} parent=1 // pred_check_branch
      %1439 = sbr.rel (0) target = $region53
    $region52: #{run.10} parent=1 // pred_region
      _
    $region53: #{run.10} parent=1 // pred_fallthru
      _
    // Predicated region
    $region54: #{run.10} parent=1 // pred_check
      _
    $region55: #{run.10} parent=1 // pred_check_branch
      %1441 = sbr.rel (0) target = $region57
    $region56: #{run.10} parent=1 // pred_region
      _
    $region57: #{run.10} parent=1 // pred_fallthru
      _
    %1442 = vsyncpa [#allocation3], 1
    %1443 = vsyncpa [#allocation5], 1

// kernel: run.11
$region0: #{run.11}
  #allocation0 [shape = 'u32[]', space=smem, size = 0x4, offset = 0x4, fixed_abs, tag = 'smem constant byte address 0x4 - core index']
  #allocation1 [shape = 'u32[144,128]{1,0:T(1,128)}', space=vmem, size = 0x12000, scoped, tag = 'internal scratch']
  #allocation2 [shape = 'f32[1,1]{1,0:T(1,128)S(1)}', space=vmem, size = 0x200, scoped, tag = 'scoped memory for run.11']
  %s0 = inlined_call_operand.vmem [shape: f32[64,8], index: 0, kind: input, shape index: {}]
  %s1 = inlined_call_operand.vmem [shape: f32[256,64], index: 1, kind: input, shape index: {}]
  %s2 = inlined_call_operand.vmem [shape: f32[256,1], index: 2, kind: input, shape index: {}]
  %s3 = inlined_call_operand.vmem [shape: f32[96,256], index: 3, kind: input, shape index: {}]
  %s4 = inlined_call_operand.vmem [shape: f32[96,1], index: 4, kind: input, shape index: {}]
  %s5 = inlined_call_operand.vmem [shape: f32[1,96], index: 5, kind: input, shape index: {}]
  %s6 = inlined_call_operand.<no memory space> [shape: f32[1,1], index: 6, kind: input, shape index: {}]
  %s7 = inlined_call_operand.hbm [shape: f32[1,2], index: 7, kind: output, shape index: {}]
  %s8 = sld [smem:[#allocation0]]
  $region38: #{run.11} parent=0
    _
  %s10 = ssub.s32 1, %s8
  %s11 = scalar_select 0, %s10, %s8
  %v12 = vstv %s6
  %13 = vst [vmem:[#allocation2] sm:$0x1] %v12
  $region1: #{run.11} parent=0
    #allocation3 [shape = 'u8[512]{0}', space=vmem, size = 0x400, scoped, tag = 'output window, operand 0, single buffered']
    #allocation4 [shape = 's32[1]{0}', space=sflag, size = 0x4, scoped, tag = 'scoped memory for run.11']
    %14 = vsyncpa [#allocation4], 0
    // Predicated region
    $region2: #{run.11} parent=1 // pred_check
      _
    $region3: #{run.11} parent=1 // pred_check_branch
      %16 = sbr.rel (0) target = $region5
    $region4: #{run.11} parent=1 // pred_region
      _
    $region5: #{run.11} parent=1 // pred_fallthru
      _
    // Predicated region
    $region6: #{run.11} parent=1 // pred_check
      _
    $region7: #{run.11} parent=1 // pred_check_branch
      %18 = sbr.rel (0) target = $region9
    $region8: #{run.11} parent=1 // pred_region
      _
    $region9: #{run.11} parent=1 // pred_fallthru
      _
    // Predicated region
    $region10: #{run.11} parent=1 // pred_check
      _
    $region11: #{run.11} parent=1 // pred_check_branch
      %20 = sbr.rel (0) target = $region13
    $region12: #{run.11} parent=1 // pred_region
      _
    $region13: #{run.11} parent=1 // pred_fallthru
      _
    // Predicated region
    $region14: #{run.11} parent=1 // pred_check
      _
    $region15: #{run.11} parent=1 // pred_check_branch
      %22 = sbr.rel (0) target = $region17
    $region16: #{run.11} parent=1 // pred_region
      _
    $region17: #{run.11} parent=1 // pred_fallthru
      _
    // Predicated region
    $region18: #{run.11} parent=1 // pred_check
      _
    $region19: #{run.11} parent=1 // pred_check_branch
      %24 = sbr.rel (0) target = $region21
    $region20: #{run.11} parent=1 // pred_region
      _
    $region21: #{run.11} parent=1 // pred_fallthru
      _
    // Predicated region
    $region22: #{run.11} parent=1 // pred_check
      _
    $region23: #{run.11} parent=1 // pred_check_branch
      %26 = sbr.rel (0) target = $region25
    $region24: #{run.11} parent=1 // pred_region
      _
    $region25: #{run.11} parent=1 // pred_fallthru
      _
    // Predicated region
    $region26: #{run.11} parent=1 // pred_check
      _
    $region27: #{run.11} parent=1 // pred_check_branch
      %28 = sbr.rel (0) target = $region29
    $region28: #{run.11} parent=1 // pred_region
      _
    $region29: #{run.11} parent=1 // pred_fallthru
      _
    %v29 = vld [vmem:[%s0] sm:$0xff]
    %v30 = vld [vmem:[%s0 + $0x8] sm:$0xff]
    %v31 = vld [vmem:[%s0 + $0x10] sm:$0xff]
    %v32 = vld [vmem:[%s0 + $0x18] sm:$0xff]
    %v33 = vld [vmem:[%s0 + $0x20] sm:$0xff]
    %v34 = vld [vmem:[%s0 + $0x28] sm:$0xff]
    %v35 = vld [vmem:[%s0 + $0x30] sm:$0xff]
    %v36 = vld [vmem:[%s0 + $0x38] sm:$0xff]
    %vm37 = vcmask 31744
    %v38 = vsel %vm37, %v29, 0.0
    %39 = vadd.xlane.f32.xlu0 %v38
    %v40 = vpop.xlane.xlu0 %39
    %v41 = vsel %vm37, %v30, 0.0
    %42 = vadd.xlane.f32.xlu0 %v41
    %v43 = vpop.xlane.xlu0 %42
    %v44 = vsel %vm37, %v31, 0.0
    %45 = vadd.xlane.f32.xlu0 %v44
    %v46 = vpop.xlane.xlu0 %45
    %v47 = vsel %vm37, %v32, 0.0
    %48 = vadd.xlane.f32.xlu0 %v47
    %v49 = vpop.xlane.xlu0 %48
    %v50 = vsel %vm37, %v33, 0.0
    %51 = vadd.xlane.f32.xlu0 %v50
    %v52 = vpop.xlane.xlu0 %51
    %v53 = vsel %vm37, %v34, 0.0
    %54 = vadd.xlane.f32.xlu0 %v53
    %v55 = vpop.xlane.xlu0 %54
    %v56 = vsel %vm37, %v35, 0.0
    %57 = vadd.xlane.f32.xlu0 %v56
    %v58 = vpop.xlane.xlu0 %57
    %v59 = vsel %vm37, %v36, 0.0
    %60 = vadd.xlane.f32.xlu0 %v59
    %v61 = vpop.xlane.xlu0 %60
    %v62 = vmul.f32 %v40, 0.25
    %v63 = vmul.f32 %v43, 0.25
    %v64 = vmul.f32 %v46, 0.25
    %v65 = vmul.f32 %v49, 0.25
    %v66 = vmul.f32 %v52, 0.25
    %v67 = vmul.f32 %v55, 0.25
    %v68 = vmul.f32 %v58, 0.25
    %v69 = vmul.f32 %v61, 0.25
    %78 = vrot.lane.b32.xlu0 %v29, 124
    %v79 = vpop.permute.xlu0 %78
    %80 = vrot.lane.b32.xlu0 %v30, 124
    %v81 = vpop.permute.xlu0 %80
    %82 = vrot.lane.b32.xlu0 %v31, 124
    %v83 = vpop.permute.xlu0 %82
    %84 = vrot.lane.b32.xlu0 %v32, 124
    %v85 = vpop.permute.xlu0 %84
    %86 = vrot.lane.b32.xlu0 %v33, 124
    %v87 = vpop.permute.xlu0 %86
    %88 = vrot.lane.b32.xlu0 %v34, 124
    %v89 = vpop.permute.xlu0 %88
    %90 = vrot.lane.b32.xlu0 %v35, 124
    %v91 = vpop.permute.xlu0 %90
    %92 = vrot.lane.b32.xlu0 %v36, 124
    %v93 = vpop.permute.xlu0 %92
    %v102 = vsel %vm37, %v79, 0.0
    %103 = vadd.xlane.f32.xlu0 %v102
    %v104 = vpop.xlane.xlu0 %103
    %v105 = vsel %vm37, %v81, 0.0
    %106 = vadd.xlane.f32.xlu0 %v105
    %v107 = vpop.xlane.xlu0 %106
    %v108 = vsel %vm37, %v83, 0.0
    %109 = vadd.xlane.f32.xlu0 %v108
    %v110 = vpop.xlane.xlu0 %109
    %v111 = vsel %vm37, %v85, 0.0
    %112 = vadd.xlane.f32.xlu0 %v111
    %v113 = vpop.xlane.xlu0 %112
    %v114 = vsel %vm37, %v87, 0.0
    %115 = vadd.xlane.f32.xlu0 %v114
    %v116 = vpop.xlane.xlu0 %115
    %v117 = vsel %vm37, %v89, 0.0
    %118 = vadd.xlane.f32.xlu0 %v117
    %v119 = vpop.xlane.xlu0 %118
    %v120 = vsel %vm37, %v91, 0.0
    %121 = vadd.xlane.f32.xlu0 %v120
    %v122 = vpop.xlane.xlu0 %121
    %v123 = vsel %vm37, %v93, 0.0
    %124 = vadd.xlane.f32.xlu0 %v123
    %v125 = vpop.xlane.xlu0 %124
    %v126 = vmul.f32 %v104, 0.25
    %v127 = vmul.f32 %v107, 0.25
    %v128 = vmul.f32 %v110, 0.25
    %v129 = vmul.f32 %v113, 0.25
    %v130 = vmul.f32 %v116, 0.25
    %v131 = vmul.f32 %v119, 0.25
    %v132 = vmul.f32 %v122, 0.25
    %v133 = vmul.f32 %v125, 0.25
    %vm134 = vcmask 7168
    %v135 = vsel %vm134, %v62, %v126
    %v136 = vsel %vm134, %v63, %v127
    %v137 = vsel %vm134, %v64, %v128
    %v138 = vsel %vm134, %v65, %v129
    %v139 = vsel %vm134, %v66, %v130
    %v140 = vsel %vm134, %v67, %v131
    %v141 = vsel %vm134, %v68, %v132
    %v142 = vsel %vm134, %v69, %v133
    %v143 = vld [vmem:[%s1] sm:$0xff]
    %v144 = vld [vmem:[%s1 + $0x8] sm:$0xff]
    %v145 = vld [vmem:[%s1 + $0x10] sm:$0xff]
    %v146 = vld [vmem:[%s1 + $0x18] sm:$0xff]
    %v147 = vld [vmem:[%s1 + $0x20] sm:$0xff]
    %v148 = vld [vmem:[%s1 + $0x28] sm:$0xff]
    %v149 = vld [vmem:[%s1 + $0x30] sm:$0xff]
    %v150 = vld [vmem:[%s1 + $0x38] sm:$0xff]
    %v151 = vld [vmem:[%s1 + $0x40] sm:$0xff]
    %v152 = vld [vmem:[%s1 + $0x48] sm:$0xff]
    %v153 = vld [vmem:[%s1 + $0x50] sm:$0xff]
    %v154 = vld [vmem:[%s1 + $0x58] sm:$0xff]
    %v155 = vld [vmem:[%s1 + $0x60] sm:$0xff]
    %v156 = vld [vmem:[%s1 + $0x68] sm:$0xff]
    %v157 = vld [vmem:[%s1 + $0x70] sm:$0xff]
    %v158 = vld [vmem:[%s1 + $0x78] sm:$0xff]
    %v159 = vld [vmem:[%s1 + $0x80] sm:$0xff]
    %v160 = vld [vmem:[%s1 + $0x88] sm:$0xff]
    %v161 = vld [vmem:[%s1 + $0x90] sm:$0xff]
    %v162 = vld [vmem:[%s1 + $0x98] sm:$0xff]
    %v163 = vld [vmem:[%s1 + $0xa0] sm:$0xff]
    %v164 = vld [vmem:[%s1 + $0xa8] sm:$0xff]
    %v165 = vld [vmem:[%s1 + $0xb0] sm:$0xff]
    %v166 = vld [vmem:[%s1 + $0xb8] sm:$0xff]
    %v167 = vld [vmem:[%s1 + $0xc0] sm:$0xff]
    %v168 = vld [vmem:[%s1 + $0xc8] sm:$0xff]
    %v169 = vld [vmem:[%s1 + $0xd0] sm:$0xff]
    %v170 = vld [vmem:[%s1 + $0xd8] sm:$0xff]
    %v171 = vld [vmem:[%s1 + $0xe0] sm:$0xff]
    %v172 = vld [vmem:[%s1 + $0xe8] sm:$0xff]
    %v173 = vld [vmem:[%s1 + $0xf0] sm:$0xff]
    %v174 = vld [vmem:[%s1 + $0xf8] sm:$0xff]
    %v175 = vld [vmem:[%s2] sm:$0xff]
    %v176 = vld [vmem:[%s2 + $0x8] sm:$0xff]
    %v177 = vld [vmem:[%s2 + $0x10] sm:$0xff]
    %v178 = vld [vmem:[%s2 + $0x18] sm:$0xff]
    %v179 = vld [vmem:[%s2 + $0x20] sm:$0xff]
    %v180 = vld [vmem:[%s2 + $0x28] sm:$0xff]
    %v181 = vld [vmem:[%s2 + $0x30] sm:$0xff]
    %v182 = vld [vmem:[%s2 + $0x38] sm:$0xff]
    %v183 = vld [vmem:[%s2 + $0x40] sm:$0xff]
    %v184 = vld [vmem:[%s2 + $0x48] sm:$0xff]
    %v185 = vld [vmem:[%s2 + $0x50] sm:$0xff]
    %v186 = vld [vmem:[%s2 + $0x58] sm:$0xff]
    %v187 = vld [vmem:[%s2 + $0x60] sm:$0xff]
    %v188 = vld [vmem:[%s2 + $0x68] sm:$0xff]
    %v189 = vld [vmem:[%s2 + $0x70] sm:$0xff]
    %v190 = vld [vmem:[%s2 + $0x78] sm:$0xff]
    %v191 = vld [vmem:[%s2 + $0x80] sm:$0xff]
    %v192 = vld [vmem:[%s2 + $0x88] sm:$0xff]
    %v193 = vld [vmem:[%s2 + $0x90] sm:$0xff]
    %v194 = vld [vmem:[%s2 + $0x98] sm:$0xff]
    %v195 = vld [vmem:[%s2 + $0xa0] sm:$0xff]
    %v196 = vld [vmem:[%s2 + $0xa8] sm:$0xff]
    %v197 = vld [vmem:[%s2 + $0xb0] sm:$0xff]
    %v198 = vld [vmem:[%s2 + $0xb8] sm:$0xff]
    %v199 = vld [vmem:[%s2 + $0xc0] sm:$0xff]
    %v200 = vld [vmem:[%s2 + $0xc8] sm:$0xff]
    %v201 = vld [vmem:[%s2 + $0xd0] sm:$0xff]
    %v202 = vld [vmem:[%s2 + $0xd8] sm:$0xff]
    %v203 = vld [vmem:[%s2 + $0xe0] sm:$0xff]
    %v204 = vld [vmem:[%s2 + $0xe8] sm:$0xff]
    %v205 = vld [vmem:[%s2 + $0xf0] sm:$0xff]
    %v206 = vld [vmem:[%s2 + $0xf8] sm:$0xff]
    %208 = vset.pattern.permute.xlu0 0
    %209 = vperm.xlu0 %208, %v175
    %v210 = vpop.permute.xlu0 %209
    %213 = vset.pattern.permute.xlu0 0
    %214 = vperm.xlu0 %213, %v176
    %v215 = vpop.permute.xlu0 %214
    %218 = vset.pattern.permute.xlu0 0
    %219 = vperm.xlu0 %218, %v177
    %v220 = vpop.permute.xlu0 %219
    %223 = vset.pattern.permute.xlu0 0
    %224 = vperm.xlu0 %223, %v178
    %v225 = vpop.permute.xlu0 %224
    %228 = vset.pattern.permute.xlu0 0
    %229 = vperm.xlu0 %228, %v179
    %v230 = vpop.permute.xlu0 %229
    %233 = vset.pattern.permute.xlu0 0
    %234 = vperm.xlu0 %233, %v180
    %v235 = vpop.permute.xlu0 %234
    %238 = vset.pattern.permute.xlu0 0
    %239 = vperm.xlu0 %238, %v181
    %v240 = vpop.permute.xlu0 %239
    %243 = vset.pattern.permute.xlu0 0
    %244 = vperm.xlu0 %243, %v182
    %v245 = vpop.permute.xlu0 %244
    %248 = vset.pattern.permute.xlu0 0
    %249 = vperm.xlu0 %248, %v183
    %v250 = vpop.permute.xlu0 %249
    %253 = vset.pattern.permute.xlu0 0
    %254 = vperm.xlu0 %253, %v184
    %v255 = vpop.permute.xlu0 %254
    %258 = vset.pattern.permute.xlu0 0
    %259 = vperm.xlu0 %258, %v185
    %v260 = vpop.permute.xlu0 %259
    %263 = vset.pattern.permute.xlu0 0
    %264 = vperm.xlu0 %263, %v186
    %v265 = vpop.permute.xlu0 %264
    %268 = vset.pattern.permute.xlu0 0
    %269 = vperm.xlu0 %268, %v187
    %v270 = vpop.permute.xlu0 %269
    %273 = vset.pattern.permute.xlu0 0
    %274 = vperm.xlu0 %273, %v188
    %v275 = vpop.permute.xlu0 %274
    %278 = vset.pattern.permute.xlu0 0
    %279 = vperm.xlu0 %278, %v189
    %v280 = vpop.permute.xlu0 %279
    %283 = vset.pattern.permute.xlu0 0
    %284 = vperm.xlu0 %283, %v190
    %v285 = vpop.permute.xlu0 %284
    %288 = vset.pattern.permute.xlu0 0
    %289 = vperm.xlu0 %288, %v191
    %v290 = vpop.permute.xlu0 %289
    %293 = vset.pattern.permute.xlu0 0
    %294 = vperm.xlu0 %293, %v192
    %v295 = vpop.permute.xlu0 %294
    %298 = vset.pattern.permute.xlu0 0
    %299 = vperm.xlu0 %298, %v193
    %v300 = vpop.permute.xlu0 %299
    %303 = vset.pattern.permute.xlu0 0
    %304 = vperm.xlu0 %303, %v194
    %v305 = vpop.permute.xlu0 %304
    %308 = vset.pattern.permute.xlu0 0
    %309 = vperm.xlu0 %308, %v195
    %v310 = vpop.permute.xlu0 %309
    %313 = vset.pattern.permute.xlu0 0
    %314 = vperm.xlu0 %313, %v196
    %v315 = vpop.permute.xlu0 %314
    %318 = vset.pattern.permute.xlu0 0
    %319 = vperm.xlu0 %318, %v197
    %v320 = vpop.permute.xlu0 %319
    %323 = vset.pattern.permute.xlu0 0
    %324 = vperm.xlu0 %323, %v198
    %v325 = vpop.permute.xlu0 %324
    %328 = vset.pattern.permute.xlu0 0
    %329 = vperm.xlu0 %328, %v199
    %v330 = vpop.permute.xlu0 %329
    %333 = vset.pattern.permute.xlu0 0
    %334 = vperm.xlu0 %333, %v200
    %v335 = vpop.permute.xlu0 %334
    %338 = vset.pattern.permute.xlu0 0
    %339 = vperm.xlu0 %338, %v201
    %v340 = vpop.permute.xlu0 %339
    %343 = vset.pattern.permute.xlu0 0
    %344 = vperm.xlu0 %343, %v202
    %v345 = vpop.permute.xlu0 %344
    %348 = vset.pattern.permute.xlu0 0
    %349 = vperm.xlu0 %348, %v203
    %v350 = vpop.permute.xlu0 %349
    %353 = vset.pattern.permute.xlu0 0
    %354 = vperm.xlu0 %353, %v204
    %v355 = vpop.permute.xlu0 %354
    %358 = vset.pattern.permute.xlu0 0
    %359 = vperm.xlu0 %358, %v205
    %v360 = vpop.permute.xlu0 %359
    %363 = vset.pattern.permute.xlu0 0
    %364 = vperm.xlu0 %363, %v206
    %v365 = vpop.permute.xlu0 %364
    %vm367 = vcmask 523264
    %v369 = vsel %vm367, %v143, 0
    %v372 = vsel %vm367, %v144, 0
    %v375 = vsel %vm367, %v145, 0
    %v378 = vsel %vm367, %v146, 0
    %v381 = vsel %vm367, %v147, 0
    %v384 = vsel %vm367, %v148, 0
    %v387 = vsel %vm367, %v149, 0
    %v390 = vsel %vm367, %v150, 0
    %v393 = vsel %vm367, %v151, 0
    %v396 = vsel %vm367, %v152, 0
    %v399 = vsel %vm367, %v153, 0
    %v402 = vsel %vm367, %v154, 0
    %v405 = vsel %vm367, %v155, 0
    %v408 = vsel %vm367, %v156, 0
    %v411 = vsel %vm367, %v157, 0
    %v414 = vsel %vm367, %v158, 0
    %v417 = vsel %vm367, %v159, 0
    %v420 = vsel %vm367, %v160, 0
    %v423 = vsel %vm367, %v161, 0
    %v426 = vsel %vm367, %v162, 0
    %v429 = vsel %vm367, %v163, 0
    %v432 = vsel %vm367, %v164, 0
    %v435 = vsel %vm367, %v165, 0
    %v438 = vsel %vm367, %v166, 0
    %v441 = vsel %vm367, %v167, 0
    %v444 = vsel %vm367, %v168, 0
    %v447 = vsel %vm367, %v169, 0
    %v450 = vsel %vm367, %v170, 0
    %v453 = vsel %vm367, %v171, 0
    %v456 = vsel %vm367, %v172, 0
    %v459 = vsel %vm367, %v173, 0
    %v462 = vsel %vm367, %v174, 0
    %464 = vmatprep.subr.mxu0 0.0
    %465 = vmatpush1.msra.mxu0 %v135
    %466 = vmatprep.subr.mxu0 0.0
    %467 = vmatpush1.msra.mxu0 %v136
    %468 = vmatprep.subr.mxu0 0.0
    %469 = vmatpush1.msra.mxu0 %v137
    %470 = vmatprep.subr.mxu0 0.0
    %471 = vmatpush1.msra.mxu0 %v138
    %472 = vmatprep.subr.mxu0 0.0
    %473 = vmatpush1.msra.mxu0 %v139
    %474 = vmatprep.subr.mxu0 0.0
    %475 = vmatpush1.msra.mxu0 %v140
    %476 = vmatprep.subr.mxu0 0.0
    %477 = vmatpush1.msra.mxu0 %v141
    %478 = vmatprep.subr.mxu0 0.0
    %479 = vmatpush1.msra.mxu0 %v142
    %480 = vmatprep.subr.mxu0 0.0
    %481 = vmatpush1.msra.mxu0 0.0
    %482 = vmatprep.subr.mxu0 0.0
    %483 = vmatpush1.msra.mxu0 0.0
    %484 = vmatprep.subr.mxu0 0.0
    %485 = vmatpush1.msra.mxu0 0.0
    %486 = vmatprep.subr.mxu0 0.0
    %487 = vmatpush1.msra.mxu0 0.0
    %488 = vmatprep.subr.mxu0 0.0
    %489 = vmatpush1.msra.mxu0 0.0
    %490 = vmatprep.subr.mxu0 0.0
    %491 = vmatpush1.msra.mxu0 0.0
    %492 = vmatprep.subr.mxu0 0.0
    %493 = vmatpush1.msra.mxu0 0.0
    %494 = vmatprep.subr.mxu0 0.0
    %495 = vmatpush1.msra.mxu0 0.0
    %496 = vmatprep.subr.mxu0 0.0
    %497 = vmatpush1.msra.mxu0 0.0
    %498 = vmatprep.subr.mxu0 0.0
    %499 = vmatpush1.msra.mxu0 0.0
    %500 = vmatprep.subr.mxu0 0.0
    %501 = vmatpush1.msra.mxu0 0.0
    %502 = vmatprep.subr.mxu0 0.0
    %503 = vmatpush1.msra.mxu0 0.0
    %504 = vmatprep.subr.mxu0 0.0
    %505 = vmatpush1.msra.mxu0 0.0
    %506 = vmatprep.subr.mxu0 0.0
    %507 = vmatpush1.msra.mxu0 0.0
    %508 = vmatprep.subr.mxu0 0.0
    %509 = vmatpush1.msra.mxu0 0.0
    %510 = vmatprep.subr.mxu0 0.0
    %511 = vmatpush1.msra.mxu0 0.0
    %512 = vmatprep.subr.mxu0 0.0
    %513 = vmatpush1.msra.mxu0 0.0
    %514 = vmatprep.subr.mxu0 0.0
    %515 = vmatpush1.msra.mxu0 0.0
    %516 = vmatprep.subr.mxu0 0.0
    %517 = vmatpush1.msra.mxu0 0.0
    %518 = vmatprep.subr.mxu0 0.0
    %519 = vmatpush1.msra.mxu0 0.0
    %520 = vmatprep.subr.mxu0 0.0
    %521 = vmatpush1.msra.mxu0 0.0
    %522 = vmatprep.subr.mxu0 0.0
    %523 = vmatpush1.msra.mxu0 0.0
    %524 = vmatprep.subr.mxu0 0.0
    %525 = vmatpush1.msra.mxu0 0.0
    %526 = vmatprep.subr.mxu0 0.0
    %527 = vmatpush1.msra.mxu0 0.0
    %528 = vmatprep.mubr.f32.mxu0 0.0
    %529 = vmatmul.mubr.f32.gmra.mrb[0].mxu0 %v369
    %v530 = vpop.f32.mrb[0].mxu0
    %v531 = vadd.f32 %v210, %v530
    %v532 = vpop.f32.mrb[0].mxu0
    %533 = vmatprep.mubr.f32.mxu0 0.0
    %534 = vmatmul.mubr.f32.gmra.mrb[0].mxu0 %v372
    %v535 = vpop.f32.mrb[0].mxu0
    %v536 = vadd.f32 %v215, %v535
    %v537 = vpop.f32.mrb[0].mxu0
    %538 = vmatprep.mubr.f32.mxu0 0.0
    %539 = vmatmul.mubr.f32.gmra.mrb[0].mxu0 %v375
    %v540 = vpop.f32.mrb[0].mxu0
    %v541 = vadd.f32 %v220, %v540
    %v542 = vpop.f32.mrb[0].mxu0
    %543 = vmatprep.mubr.f32.mxu0 0.0
    %544 = vmatmul.mubr.f32.gmra.mrb[0].mxu0 %v378
    %v545 = vpop.f32.mrb[0].mxu0
    %v546 = vadd.f32 %v225, %v545
    %v547 = vpop.f32.mrb[0].mxu0
    %548 = vmatprep.mubr.f32.mxu0 0.0
    %549 = vmatmul.mubr.f32.gmra.mrb[0].mxu0 %v381
    %v550 = vpop.f32.mrb[0].mxu0
    %v551 = vadd.f32 %v230, %v550
    %v552 = vpop.f32.mrb[0].mxu0
    %553 = vmatprep.mubr.f32.mxu0 0.0
    %554 = vmatmul.mubr.f32.gmra.mrb[0].mxu0 %v384
    %v555 = vpop.f32.mrb[0].mxu0
    %v556 = vadd.f32 %v235, %v555
    %v557 = vpop.f32.mrb[0].mxu0
    %558 = vmatprep.mubr.f32.mxu0 0.0
    %559 = vmatmul.mubr.f32.gmra.mrb[0].mxu0 %v387
    %v560 = vpop.f32.mrb[0].mxu0
    %v561 = vadd.f32 %v240, %v560
    %v562 = vpop.f32.mrb[0].mxu0
    %563 = vmatprep.mubr.f32.mxu0 0.0
    %564 = vmatmul.mubr.f32.gmra.mrb[0].mxu0 %v390
    %v565 = vpop.f32.mrb[0].mxu0
    %v566 = vadd.f32 %v245, %v565
    %v567 = vpop.f32.mrb[0].mxu0
    %568 = vmatprep.mubr.f32.mxu0 0.0
    %569 = vmatmul.mubr.f32.gmra.mrb[0].mxu0 %v393
    %v570 = vpop.f32.mrb[0].mxu0
    %v571 = vadd.f32 %v250, %v570
    %v572 = vpop.f32.mrb[0].mxu0
    %573 = vmatprep.mubr.f32.mxu0 0.0
    %574 = vmatmul.mubr.f32.gmra.mrb[0].mxu0 %v396
    %v575 = vpop.f32.mrb[0].mxu0
    %v576 = vadd.f32 %v255, %v575
    %v577 = vpop.f32.mrb[0].mxu0
    %578 = vmatprep.mubr.f32.mxu0 0.0
    %579 = vmatmul.mubr.f32.gmra.mrb[0].mxu0 %v399
    %v580 = vpop.f32.mrb[0].mxu0
    %v581 = vadd.f32 %v260, %v580
    %v582 = vpop.f32.mrb[0].mxu0
    %583 = vmatprep.mubr.f32.mxu0 0.0
    %584 = vmatmul.mubr.f32.gmra.mrb[0].mxu0 %v402
    %v585 = vpop.f32.mrb[0].mxu0
    %v586 = vadd.f32 %v265, %v585
    %v587 = vpop.f32.mrb[0].mxu0
    %588 = vmatprep.mubr.f32.mxu0 0.0
    %589 = vmatmul.mubr.f32.gmra.mrb[0].mxu0 %v405
    %v590 = vpop.f32.mrb[0].mxu0
    %v591 = vadd.f32 %v270, %v590
    %v592 = vpop.f32.mrb[0].mxu0
    %593 = vmatprep.mubr.f32.mxu0 0.0
    %594 = vmatmul.mubr.f32.gmra.mrb[0].mxu0 %v408
    %v595 = vpop.f32.mrb[0].mxu0
    %v596 = vadd.f32 %v275, %v595
    %v597 = vpop.f32.mrb[0].mxu0
    %598 = vmatprep.mubr.f32.mxu0 0.0
    %599 = vmatmul.mubr.f32.gmra.mrb[0].mxu0 %v411
    %v600 = vpop.f32.mrb[0].mxu0
    %v601 = vadd.f32 %v280, %v600
    %v602 = vpop.f32.mrb[0].mxu0
    %603 = vmatprep.mubr.f32.mxu0 0.0
    %604 = vmatmul.mubr.f32.gmra.mrb[0].mxu0 %v414
    %v605 = vpop.f32.mrb[0].mxu0
    %v606 = vadd.f32 %v285, %v605
    %v607 = vpop.f32.mrb[0].mxu0
    %608 = vmatprep.mubr.f32.mxu0 0.0
    %609 = vmatmul.mubr.f32.gmra.mrb[0].mxu0 %v417
    %v610 = vpop.f32.mrb[0].mxu0
    %v611 = vadd.f32 %v290, %v610
    %v612 = vpop.f32.mrb[0].mxu0
    %613 = vmatprep.mubr.f32.mxu0 0.0
    %614 = vmatmul.mubr.f32.gmra.mrb[0].mxu0 %v420
    %v615 = vpop.f32.mrb[0].mxu0
    %v616 = vadd.f32 %v295, %v615
    %v617 = vpop.f32.mrb[0].mxu0
    %618 = vmatprep.mubr.f32.mxu0 0.0
    %619 = vmatmul.mubr.f32.gmra.mrb[0].mxu0 %v423
    %v620 = vpop.f32.mrb[0].mxu0
    %v621 = vadd.f32 %v300, %v620
    %v622 = vpop.f32.mrb[0].mxu0
    %623 = vmatprep.mubr.f32.mxu0 0.0
    %624 = vmatmul.mubr.f32.gmra.mrb[0].mxu0 %v426
    %v625 = vpop.f32.mrb[0].mxu0
    %v626 = vadd.f32 %v305, %v625
    %v627 = vpop.f32.mrb[0].mxu0
    %628 = vmatprep.mubr.f32.mxu0 0.0
    %629 = vmatmul.mubr.f32.gmra.mrb[0].mxu0 %v429
    %v630 = vpop.f32.mrb[0].mxu0
    %v631 = vadd.f32 %v310, %v630
    %v632 = vpop.f32.mrb[0].mxu0
    %633 = vmatprep.mubr.f32.mxu0 0.0
    %634 = vmatmul.mubr.f32.gmra.mrb[0].mxu0 %v432
    %v635 = vpop.f32.mrb[0].mxu0
    %v636 = vadd.f32 %v315, %v635
    %v637 = vpop.f32.mrb[0].mxu0
    %638 = vmatprep.mubr.f32.mxu0 0.0
    %639 = vmatmul.mubr.f32.gmra.mrb[0].mxu0 %v435
    %v640 = vpop.f32.mrb[0].mxu0
    %v641 = vadd.f32 %v320, %v640
    %v642 = vpop.f32.mrb[0].mxu0
    %643 = vmatprep.mubr.f32.mxu0 0.0
    %644 = vmatmul.mubr.f32.gmra.mrb[0].mxu0 %v438
    %v645 = vpop.f32.mrb[0].mxu0
    %v646 = vadd.f32 %v325, %v645
    %v647 = vpop.f32.mrb[0].mxu0
    %648 = vmatprep.mubr.f32.mxu0 0.0
    %649 = vmatmul.mubr.f32.gmra.mrb[0].mxu0 %v441
    %v650 = vpop.f32.mrb[0].mxu0
    %v651 = vadd.f32 %v330, %v650
    %v652 = vpop.f32.mrb[0].mxu0
    %653 = vmatprep.mubr.f32.mxu0 0.0
    %654 = vmatmul.mubr.f32.gmra.mrb[0].mxu0 %v444
    %v655 = vpop.f32.mrb[0].mxu0
    %v656 = vadd.f32 %v335, %v655
    %v657 = vpop.f32.mrb[0].mxu0
    %658 = vmatprep.mubr.f32.mxu0 0.0
    %659 = vmatmul.mubr.f32.gmra.mrb[0].mxu0 %v447
    %v660 = vpop.f32.mrb[0].mxu0
    %v661 = vadd.f32 %v340, %v660
    %v662 = vpop.f32.mrb[0].mxu0
    %663 = vmatprep.mubr.f32.mxu0 0.0
    %664 = vmatmul.mubr.f32.gmra.mrb[0].mxu0 %v450
    %v665 = vpop.f32.mrb[0].mxu0
    %v666 = vadd.f32 %v345, %v665
    %v667 = vpop.f32.mrb[0].mxu0
    %668 = vmatprep.mubr.f32.mxu0 0.0
    %669 = vmatmul.mubr.f32.gmra.mrb[0].mxu0 %v453
    %v670 = vpop.f32.mrb[0].mxu0
    %v671 = vadd.f32 %v350, %v670
    %v672 = vpop.f32.mrb[0].mxu0
    %673 = vmatprep.mubr.f32.mxu0 0.0
    %674 = vmatmul.mubr.f32.gmra.mrb[0].mxu0 %v456
    %v675 = vpop.f32.mrb[0].mxu0
    %v676 = vadd.f32 %v355, %v675
    %v677 = vpop.f32.mrb[0].mxu0
    %678 = vmatprep.mubr.f32.mxu0 0.0
    %679 = vmatmul.mubr.f32.gmra.mrb[0].mxu0 %v459
    %v680 = vpop.f32.mrb[0].mxu0
    %v681 = vadd.f32 %v360, %v680
    %v682 = vpop.f32.mrb[0].mxu0
    %683 = vmatprep.mubr.f32.mxu0 0.0
    %684 = vmatmul.mubr.f32.gmra.mrb[0].mxu0 %v462
    %v685 = vpop.f32.mrb[0].mxu0
    %v686 = vadd.f32 %v365, %v685
    %v687 = vpop.f32.mrb[0].mxu0
    %688 = vdwg.mxu0
    %v689 = vmax.f32 %v531, 0.0
    %v690 = vmax.f32 %v536, 0.0
    %v691 = vmax.f32 %v541, 0.0
    %v692 = vmax.f32 %v546, 0.0
    %v693 = vmax.f32 %v551, 0.0
    %v694 = vmax.f32 %v556, 0.0
    %v695 = vmax.f32 %v561, 0.0
    %v696 = vmax.f32 %v566, 0.0
    %v697 = vmax.f32 %v571, 0.0
    %v698 = vmax.f32 %v576, 0.0
    %v699 = vmax.f32 %v581, 0.0
    %v700 = vmax.f32 %v586, 0.0
    %v701 = vmax.f32 %v591, 0.0
    %v702 = vmax.f32 %v596, 0.0
    %v703 = vmax.f32 %v601, 0.0
    %v704 = vmax.f32 %v606, 0.0
    %v705 = vmax.f32 %v611, 0.0
    %v706 = vmax.f32 %v616, 0.0
    %v707 = vmax.f32 %v621, 0.0
    %v708 = vmax.f32 %v626, 0.0
    %v709 = vmax.f32 %v631, 0.0
    %v710 = vmax.f32 %v636, 0.0
    %v711 = vmax.f32 %v641, 0.0
    %v712 = vmax.f32 %v646, 0.0
    %v713 = vmax.f32 %v651, 0.0
    %v714 = vmax.f32 %v656, 0.0
    %v715 = vmax.f32 %v661, 0.0
    %v716 = vmax.f32 %v666, 0.0
    %v717 = vmax.f32 %v671, 0.0
    %v718 = vmax.f32 %v676, 0.0
    %v719 = vmax.f32 %v681, 0.0
    %v720 = vmax.f32 %v686, 0.0
    %v721 = vld [vmem:[%s3] sm:$0xff]
    %v722 = vld [vmem:[%s3 + $0x8] sm:$0xff]
    %v723 = vld [vmem:[%s3 + $0x10] sm:$0xff]
    %v724 = vld [vmem:[%s3 + $0x18] sm:$0xff]
    %v725 = vld [vmem:[%s3 + $0x20] sm:$0xff]
    %v726 = vld [vmem:[%s3 + $0x28] sm:$0xff]
    %v727 = vld [vmem:[%s3 + $0x30] sm:$0xff]
    %v728 = vld [vmem:[%s3 + $0x38] sm:$0xff]
    %v729 = vld [vmem:[%s3 + $0x40] sm:$0xff]
    %v730 = vld [vmem:[%s3 + $0x48] sm:$0xff]
    %v731 = vld [vmem:[%s3 + $0x50] sm:$0xff]
    %v732 = vld [vmem:[%s3 + $0x58] sm:$0xff]
    %v733 = vld [vmem:[%s3 + $0x60] sm:$0xff]
    %v734 = vld [vmem:[%s3 + $0x68] sm:$0xff]
    %v735 = vld [vmem:[%s3 + $0x70] sm:$0xff]
    %v736 = vld [vmem:[%s3 + $0x78] sm:$0xff]
    %v737 = vld [vmem:[%s3 + $0x80] sm:$0xff]
    %v738 = vld [vmem:[%s3 + $0x88] sm:$0xff]
    %v739 = vld [vmem:[%s3 + $0x90] sm:$0xff]
    %v740 = vld [vmem:[%s3 + $0x98] sm:$0xff]
    %v741 = vld [vmem:[%s3 + $0xa0] sm:$0xff]
    %v742 = vld [vmem:[%s3 + $0xa8] sm:$0xff]
    %v743 = vld [vmem:[%s3 + $0xb0] sm:$0xff]
    %v744 = vld [vmem:[%s3 + $0xb8] sm:$0xff]
    %v745 = vld [vmem:[%s4] sm:$0xff]
    %v746 = vld [vmem:[%s4 + $0x8] sm:$0xff]
    %v747 = vld [vmem:[%s4 + $0x10] sm:$0xff]
    %v748 = vld [vmem:[%s4 + $0x18] sm:$0xff]
    %v749 = vld [vmem:[%s4 + $0x20] sm:$0xff]
    %v750 = vld [vmem:[%s4 + $0x28] sm:$0xff]
    %v751 = vld [vmem:[%s4 + $0x30] sm:$0xff]
    %v752 = vld [vmem:[%s4 + $0x38] sm:$0xff]
    %v753 = vld [vmem:[%s4 + $0x40] sm:$0xff]
    %v754 = vld [vmem:[%s4 + $0x48] sm:$0xff]
    %v755 = vld [vmem:[%s4 + $0x50] sm:$0xff]
    %v756 = vld [vmem:[%s4 + $0x58] sm:$0xff]
    %758 = vset.pattern.permute.xlu0 0
    %759 = vperm.xlu0 %758, %v745
    %v760 = vpop.permute.xlu0 %759
    %763 = vset.pattern.permute.xlu0 0
    %764 = vperm.xlu0 %763, %v746
    %v765 = vpop.permute.xlu0 %764
    %768 = vset.pattern.permute.xlu0 0
    %769 = vperm.xlu0 %768, %v747
    %v770 = vpop.permute.xlu0 %769
    %773 = vset.pattern.permute.xlu0 0
    %774 = vperm.xlu0 %773, %v748
    %v775 = vpop.permute.xlu0 %774
    %778 = vset.pattern.permute.xlu0 0
    %779 = vperm.xlu0 %778, %v749
    %v780 = vpop.permute.xlu0 %779
    %783 = vset.pattern.permute.xlu0 0
    %784 = vperm.xlu0 %783, %v750
    %v785 = vpop.permute.xlu0 %784
    %788 = vset.pattern.permute.xlu0 0
    %789 = vperm.xlu0 %788, %v751
    %v790 = vpop.permute.xlu0 %789
    %793 = vset.pattern.permute.xlu0 0
    %794 = vperm.xlu0 %793, %v752
    %v795 = vpop.permute.xlu0 %794
    %798 = vset.pattern.permute.xlu0 0
    %799 = vperm.xlu0 %798, %v753
    %v800 = vpop.permute.xlu0 %799
    %803 = vset.pattern.permute.xlu0 0
    %804 = vperm.xlu0 %803, %v754
    %v805 = vpop.permute.xlu0 %804
    %808 = vset.pattern.permute.xlu0 0
    %809 = vperm.xlu0 %808, %v755
    %v810 = vpop.permute.xlu0 %809
    %813 = vset.pattern.permute.xlu0 0
    %814 = vperm.xlu0 %813, %v756
    %v815 = vpop.permute.xlu0 %814
    %817 = vmatprep.subr.mxu0 0.0
    %818 = vmatpush1.msra.mxu0 %v689
    %819 = vmatprep.subr.mxu0 0.0
    %820 = vmatpush1.msra.mxu0 %v690
    %821 = vmatprep.subr.mxu0 0.0
    %822 = vmatpush1.msra.mxu0 %v691
    %823 = vmatprep.subr.mxu0 0.0
    %824 = vmatpush1.msra.mxu0 %v692
    %825 = vmatprep.subr.mxu0 0.0
    %826 = vmatpush1.msra.mxu0 %v693
    %827 = vmatprep.subr.mxu0 0.0
    %828 = vmatpush1.msra.mxu0 %v694
    %829 = vmatprep.subr.mxu0 0.0
    %830 = vmatpush1.msra.mxu0 %v695
    %831 = vmatprep.subr.mxu0 0.0
    %832 = vmatpush1.msra.mxu0 %v696
    %833 = vmatprep.subr.mxu0 0.0
    %834 = vmatpush1.msra.mxu0 %v697
    %835 = vmatprep.subr.mxu0 0.0
    %836 = vmatpush1.msra.mxu0 %v698
    %837 = vmatprep.subr.mxu0 0.0
    %838 = vmatpush1.msra.mxu0 %v699
    %839 = vmatprep.subr.mxu0 0.0
    %840 = vmatpush1.msra.mxu0 %v700
    %841 = vmatprep.subr.mxu0 0.0
    %842 = vmatpush1.msra.mxu0 %v701
    %843 = vmatprep.subr.mxu0 0.0
    %844 = vmatpush1.msra.mxu0 %v702
    %845 = vmatprep.subr.mxu0 0.0
    %846 = vmatpush1.msra.mxu0 %v703
    %847 = vmatprep.subr.mxu0 0.0
    %848 = vmatpush1.msra.mxu0 %v704
    %849 = vmatprep.subr.mxu0 0.0
    %850 = vmatpush1.msra.mxu0 %v705
    %851 = vmatprep.subr.mxu0 0.0
    %852 = vmatpush1.msra.mxu0 %v706
    %853 = vmatprep.subr.mxu0 0.0
    %854 = vmatpush1.msra.mxu0 %v707
    %855 = vmatprep.subr.mxu0 0.0
    %856 = vmatpush1.msra.mxu0 %v708
    %857 = vmatprep.subr.mxu0 0.0
    %858 = vmatpush1.msra.mxu0 %v709
    %859 = vmatprep.subr.mxu0 0.0
    %860 = vmatpush1.msra.mxu0 %v710
    %861 = vmatprep.subr.mxu0 0.0
    %862 = vmatpush1.msra.mxu0 %v711
    %863 = vmatprep.subr.mxu0 0.0
    %864 = vmatpush1.msra.mxu0 %v712
    %865 = vmatprep.subr.mxu0 0.0
    %866 = vmatpush1.msra.mxu0 %v713
    %867 = vmatprep.subr.mxu0 0.0
    %868 = vmatpush1.msra.mxu0 %v714
    %869 = vmatprep.subr.mxu0 0.0
    %870 = vmatpush1.msra.mxu0 %v715
    %871 = vmatprep.subr.mxu0 0.0
    %872 = vmatpush1.msra.mxu0 %v716
    %873 = vmatprep.subr.mxu0 0.0
    %874 = vmatpush1.msra.mxu0 %v717
    %875 = vmatprep.subr.mxu0 0.0
    %876 = vmatpush1.msra.mxu0 %v718
    %877 = vmatprep.subr.mxu0 0.0
    %878 = vmatpush1.msra.mxu0 %v719
    %879 = vmatprep.subr.mxu0 0.0
    %880 = vmatpush1.msra.mxu0 %v720
    %881 = vmatprep.mubr.f32.mxu0 %v722
    %882 = vmatmul.mubr.f32.gmra.mrb[0].mxu0 %v721
    %v883 = vpop.f32.mrb[0].mxu0
    %v884 = vadd.f32 %v760, %v883
    %v885 = vpop.f32.mrb[0].mxu0
    %886 = vmatprep.mubr.f32.mxu0 %v724
    %887 = vmatmul.mubr.f32.gmra.mrb[0].mxu0 %v723
    %v888 = vpop.f32.mrb[0].mxu0
    %v889 = vadd.f32 %v765, %v888
    %v890 = vpop.f32.mrb[0].mxu0
    %891 = vmatprep.mubr.f32.mxu0 %v726
    %892 = vmatmul.mubr.f32.gmra.mrb[0].mxu0 %v725
    %v893 = vpop.f32.mrb[0].mxu0
    %v894 = vadd.f32 %v770, %v893
    %v895 = vpop.f32.mrb[0].mxu0
    %896 = vmatprep.mubr.f32.mxu0 %v728
    %897 = vmatmul.mubr.f32.gmra.mrb[0].mxu0 %v727
    %v898 = vpop.f32.mrb[0].mxu0
    %v899 = vadd.f32 %v775, %v898
    %v900 = vpop.f32.mrb[0].mxu0
    %901 = vmatprep.mubr.f32.mxu0 %v730
    %902 = vmatmul.mubr.f32.gmra.mrb[0].mxu0 %v729
    %v903 = vpop.f32.mrb[0].mxu0
    %v904 = vadd.f32 %v780, %v903
    %v905 = vpop.f32.mrb[0].mxu0
    %906 = vmatprep.mubr.f32.mxu0 %v732
    %907 = vmatmul.mubr.f32.gmra.mrb[0].mxu0 %v731
    %v908 = vpop.f32.mrb[0].mxu0
    %v909 = vadd.f32 %v785, %v908
    %v910 = vpop.f32.mrb[0].mxu0
    %911 = vmatprep.mubr.f32.mxu0 %v734
    %912 = vmatmul.mubr.f32.gmra.mrb[0].mxu0 %v733
    %v913 = vpop.f32.mrb[0].mxu0
    %v914 = vadd.f32 %v790, %v913
    %v915 = vpop.f32.mrb[0].mxu0
    %916 = vmatprep.mubr.f32.mxu0 %v736
    %917 = vmatmul.mubr.f32.gmra.mrb[0].mxu0 %v735
    %v918 = vpop.f32.mrb[0].mxu0
    %v919 = vadd.f32 %v795, %v918
    %v920 = vpop.f32.mrb[0].mxu0
    %921 = vmatprep.mubr.f32.mxu0 %v738
    %922 = vmatmul.mubr.f32.gmra.mrb[0].mxu0 %v737
    %v923 = vpop.f32.mrb[0].mxu0
    %v924 = vadd.f32 %v800, %v923
    %v925 = vpop.f32.mrb[0].mxu0
    %926 = vmatprep.mubr.f32.mxu0 %v740
    %927 = vmatmul.mubr.f32.gmra.mrb[0].mxu0 %v739
    %v928 = vpop.f32.mrb[0].mxu0
    %v929 = vadd.f32 %v805, %v928
    %v930 = vpop.f32.mrb[0].mxu0
    %931 = vmatprep.mubr.f32.mxu0 %v742
    %932 = vmatmul.mubr.f32.gmra.mrb[0].mxu0 %v741
    %v933 = vpop.f32.mrb[0].mxu0
    %v934 = vadd.f32 %v810, %v933
    %v935 = vpop.f32.mrb[0].mxu0
    %936 = vmatprep.mubr.f32.mxu0 %v744
    %937 = vmatmul.mubr.f32.gmra.mrb[0].mxu0 %v743
    %v938 = vpop.f32.mrb[0].mxu0
    %v939 = vadd.f32 %v815, %v938
    %v940 = vpop.f32.mrb[0].mxu0
    %941 = vdwg.mxu0
    %v942 = vmax.f32 %v884, 0.0
    %v943 = vmax.f32 %v889, 0.0
    %v944 = vmax.f32 %v894, 0.0
    %v945 = vmax.f32 %v899, 0.0
    %v946 = vmax.f32 %v904, 0.0
    %v947 = vmax.f32 %v909, 0.0
    %v948 = vmax.f32 %v914, 0.0
    %v949 = vmax.f32 %v919, 0.0
    %v950 = vmax.f32 %v924, 0.0
    %v951 = vmax.f32 %v929, 0.0
    %v952 = vmax.f32 %v934, 0.0
    %v953 = vmax.f32 %v939, 0.0
    %v954 = vld [vmem:[%s5] sm:$0x1]
    %v955 = vld [vmem:[#allocation2] sm:$0x1]
    %957 = vset.pattern.permute.xlu0 0
    %958 = vperm.xlu0 %957, %v955
    %v959 = vpop.permute.xlu0 %958
    %v961 = vlaneseq
    %v962 = vshrl.u32 %v961, 7
    %v963 = vsub.s32 0, %v962
    %v964 = vrot.slane %v959, %v963
    %vm965 = vcmask 785408
    %v967 = vsel %vm965, %v954, 0
    %969 = vmatprep.subr.mxu0 0.0
    %970 = vmatpush1.msra.mxu0 %v942
    %971 = vmatprep.subr.mxu0 0.0
    %972 = vmatpush1.msra.mxu0 %v943
    %973 = vmatprep.subr.mxu0 0.0
    %974 = vmatpush1.msra.mxu0 %v944
    %975 = vmatprep.subr.mxu0 0.0
    %976 = vmatpush1.msra.mxu0 %v945
    %977 = vmatprep.subr.mxu0 0.0
    %978 = vmatpush1.msra.mxu0 %v946
    %979 = vmatprep.subr.mxu0 0.0
    %980 = vmatpush1.msra.mxu0 %v947
    %981 = vmatprep.subr.mxu0 0.0
    %982 = vmatpush1.msra.mxu0 %v948
    %983 = vmatprep.subr.mxu0 0.0
    %984 = vmatpush1.msra.mxu0 %v949
    %985 = vmatprep.subr.mxu0 0.0
    %986 = vmatpush1.msra.mxu0 %v950
    %987 = vmatprep.subr.mxu0 0.0
    %988 = vmatpush1.msra.mxu0 %v951
    %989 = vmatprep.subr.mxu0 0.0
    %990 = vmatpush1.msra.mxu0 %v952
    %991 = vmatprep.subr.mxu0 0.0
    %992 = vmatpush1.msra.mxu0 %v953
    %993 = vmatprep.subr.mxu0 0.0
    %994 = vmatpush1.msra.mxu0 0.0
    %995 = vmatprep.subr.mxu0 0.0
    %996 = vmatpush1.msra.mxu0 0.0
    %997 = vmatprep.subr.mxu0 0.0
    %998 = vmatpush1.msra.mxu0 0.0
    %999 = vmatprep.subr.mxu0 0.0
    %1000 = vmatpush1.msra.mxu0 0.0
    %1001 = vmatprep.subr.mxu0 0.0
    %1002 = vmatpush1.msra.mxu0 0.0
    %1003 = vmatprep.subr.mxu0 0.0
    %1004 = vmatpush1.msra.mxu0 0.0
    %1005 = vmatprep.subr.mxu0 0.0
    %1006 = vmatpush1.msra.mxu0 0.0
    %1007 = vmatprep.subr.mxu0 0.0
    %1008 = vmatpush1.msra.mxu0 0.0
    %1009 = vmatprep.subr.mxu0 0.0
    %1010 = vmatpush1.msra.mxu0 0.0
    %1011 = vmatprep.subr.mxu0 0.0
    %1012 = vmatpush1.msra.mxu0 0.0
    %1013 = vmatprep.subr.mxu0 0.0
    %1014 = vmatpush1.msra.mxu0 0.0
    %1015 = vmatprep.subr.mxu0 0.0
    %1016 = vmatpush1.msra.mxu0 0.0
    %1017 = vmatprep.subr.mxu0 0.0
    %1018 = vmatpush1.msra.mxu0 0.0
    %1019 = vmatprep.subr.mxu0 0.0
    %1020 = vmatpush1.msra.mxu0 0.0
    %1021 = vmatprep.subr.mxu0 0.0
    %1022 = vmatpush1.msra.mxu0 0.0
    %1023 = vmatprep.subr.mxu0 0.0
    %1024 = vmatpush1.msra.mxu0 0.0
    %1025 = vmatprep.subr.mxu0 0.0
    %1026 = vmatpush1.msra.mxu0 0.0
    %1027 = vmatprep.subr.mxu0 0.0
    %1028 = vmatpush1.msra.mxu0 0.0
    %1029 = vmatprep.subr.mxu0 0.0
    %1030 = vmatpush1.msra.mxu0 0.0
    %1031 = vmatprep.subr.mxu0 0.0
    %1032 = vmatpush1.msra.mxu0 0.0
    %1033 = vmatprep.mubr.f32.mxu0 0.0
    %1034 = vmatmul.mubr.f32.gmra.mrb[0].mxu0 %v967
    %v1035 = vpop.f32.mrb[0].mxu0
    %v1036 = vadd.f32 %v964, %v1035
    %v1037 = vpop.f32.mrb[0].mxu0
    %1038 = vdwg.mxu0
    %vm1039 = vcmask 8192
    %1040 = vst.msk [vmem:[#allocation3] sm:$0x1] %vm1039, %v1036
    // Predicated region
    $region30: #{run.11} parent=1 // pred_check
      _
    $region31: #{run.11} parent=1 // pred_check_branch
      %1042 = sbr.rel (0) target = $region33
    $region32: #{run.11} parent=1 // pred_region
      %s1044 = ssub.s32 16, 16
      %1045 = vsyncadd [#allocation4], %s1044
      %s1047 = sshll.u32 [#allocation3], 4
      %s1048 = int_to_ptr.vmem [resolvable:$true] %s1047
      %1050 = dma.vmem_to_hbm [thread:$0]  %s1048, 16, %s7, [#allocation4]
    $region33: #{run.11} parent=1 // pred_fallthru
      _
    // Predicated region
    $region34: #{run.11} parent=1 // pred_check
      _
    $region35: #{run.11} parent=1 // pred_check_branch
      %1052 = sbr.rel (0) target = $region37
    $region36: #{run.11} parent=1 // pred_region
      %1053 = dma.done [#allocation4], 16
    $region37: #{run.11} parent=1 // pred_fallthru
      _
    %1054 = vsyncpa [#allocation4], 1

</llo_original>
